<compile_context>
chip_gen: v7x
topology: tpu7x:2x2x1
jax: 0.10.0
libtpu: 0.0.40
codegen_flags: <defaults>
</compile_context>

<pallas_src>
import jax
import jax.numpy as jnp
from jax import lax
from jax.experimental import pallas as pl
from jax.experimental.pallas import tpu as pltpu


LANE = 128


def _round_up(n, m):
    return ((n + m - 1) // m) * m


def _tanh_sigmoid(x):
    # sigmoid(x) == 0.5 * tanh(0.5 * x) + 0.5 : one EUP push per element.
    return 0.5 * jnp.tanh(0.5 * x) + 0.5


def _make_lstm_kernel(num_layers, t_chunk, hidden_pad, compute_dtype):
    """Kernel ref order:
         (x, [w_ih_l, w_hh_l, b_l]*num_layers, w_fc, b_fc, out,
          h_state, c_state, act, gates_x)
       x:   (T_CHUNK, tile_b, D_pad)  time-major input chunk
       out: (T_CHUNK, tile_b, O_pad)  time-major output chunk
       w_ih_l: (D_l_pad, 4*H_pad)  gate order [i, f, g, o] along lanes
       w_hh_l: (H_pad,   4*H_pad)
       b_l:    (1, 4*H_pad) f32 (= b_ih + b_hh, zero in padded lanes)
    """
    n_params = 3 * num_layers + 2

    def kernel(*refs):
        x_ref = refs[0]
        params = refs[1:1 + n_params]
        out_ref = refs[1 + n_params]
        h_ref, c_ref, act_ref, gx_ref = refs[1 + n_params + 1:]

        tb = x_ref.shape[1]
        hp = hidden_pad
        o_pad = out_ref.shape[-1]

        # First time-chunk of a batch tile: reset the recurrent state.
        @pl.when(pl.program_id(1) == 0)
        def _():
            h_ref[...] = jnp.zeros_like(h_ref)
            c_ref[...] = jnp.zeros_like(c_ref)

        unroll = int(min(t_chunk, 8))

        for layer in range(num_layers):
            w_ih = params[3 * layer][...]        # (D_l_pad, 4*hp), compute dtype
            w_hh = params[3 * layer + 1][...]    # (hp, 4*hp),      compute dtype
            b = params[3 * layer + 2][...]       # (1, 4*hp),       f32

            # Hoisted input projection: one batched GEMM for the whole chunk.
            if layer == 0:
                inp = x_ref[...].astype(compute_dtype)
            else:
                inp = act_ref[...].astype(compute_dtype)
            inp2 = inp.reshape(t_chunk * tb, inp.shape[-1])
            gx = jnp.dot(inp2, w_ih, preferred_element_type=jnp.float32) + b
            gx_ref[...] = gx.reshape(t_chunk, tb, 4 * hp)

            # Serial recurrence: only h @ w_hh on the dependence chain.
            def step(t, carry):
                h, c = carry
                gates = gx_ref[t] + jnp.dot(
                    h.astype(compute_dtype), w_hh,
                    preferred_element_type=jnp.float32)
                i_g = _tanh_sigmoid(gates[:, 0 * hp:1 * hp])
                f_g = _tanh_sigmoid(gates[:, 1 * hp:2 * hp])
                g_g = jnp.tanh(gates[:, 2 * hp:3 * hp])
                o_g = _tanh_sigmoid(gates[:, 3 * hp:4 * hp])
                c = f_g * c + i_g * g_g
                h = o_g * jnp.tanh(c)
                act_ref[t] = h            # stage for next layer / FC head
                return h, c

            h, c = lax.fori_loop(0, t_chunk, step,
                                 (h_ref[layer], c_ref[layer]),
                                 unroll=unroll)
            h_ref[layer] = h
            c_ref[layer] = c

            # TODO(synk): inter-layer nn.Dropout is identity at inference;
            # training-mode masking (pltpu.prng_seed / prng_random_bits) omitted.

        # Linear head: one GEMM + one contiguous lane-dense store per chunk.
        w_fc = params[-2][...]                    # (hp, o_pad), compute dtype
        b_fc = params[-1][...]                    # (1, o_pad),  f32
        hh = act_ref[...].astype(compute_dtype).reshape(t_chunk * tb, hp)
        y = jnp.dot(hh, w_fc, preferred_element_type=jnp.float32) + b_fc
        out_ref[...] = y.reshape(t_chunk, tb, o_pad).astype(out_ref.dtype)

    return kernel


def lstm_forecaster_forward(x, params, *, compute_dtype=jnp.float32,
                            max_batch_tile=128, time_chunk=8):
    """Fused LSTM(+Linear) forward.

    Args:
      x: (B, T, input_dim) float32, batch_first.
      params: dict from init_lstm_params (PyTorch weight layout).
      compute_dtype: jnp.float32 (default) or jnp.bfloat16 (fast MXU path on
        v6e/v7x; accumulation and recurrent h/c state remain f32).
    Returns:
      (B, T, output_dim) float32.
    """
    layers = params["layers"]
    num_layers = len(layers)
    hidden_dim = layers[0]["w_hh"].shape[1]
    output_dim = params["fc_w"].shape[0]
    B, T, input_dim = x.shape

    h_pad = _round_up(hidden_dim, LANE)
    d_pad = _round_up(input_dim, LANE)
    o_pad = _round_up(output_dim, LANE)

    # Batch tiling: aim for >=2 tiles when the batch allows (megacore on v7x).
    b_pad8 = _round_up(B, 8)
    tile_b = min(max_batch_tile, b_pad8)
    if b_pad8 >= 16 and b_pad8 // tile_b < 2:
        tile_b = min(tile_b, _round_up((b_pad8 + 1) // 2, 8))
    b_pad = _round_up(b_pad8, tile_b)
    n_tiles = b_pad // tile_b

    # Time chunking: VMEM footprint independent of T; h/c carried across chunks.
    t_chunk = min(time_chunk, T)
    t_pad = _round_up(T, t_chunk)
    n_chunks = t_pad // t_chunk

    # ---- one-time layout plumbing: pad + transpose to time-major ----
    xp = jnp.zeros((b_pad, t_pad, d_pad), jnp.float32)
    xp = xp.at[:B, :T, :input_dim].set(x)
    xp = jnp.transpose(xp, (1, 0, 2))                      # (T_pad, B_pad, D_pad)

    def pack_gate_mat(w, in_dim, in_dim_pad):
        # w: (4*hidden, in_dim) PyTorch layout, gate order [i, f, g, o].
        # -> (in_dim_pad, 4*h_pad): each gate block padded to h_pad lanes with
        #    zeros so padded lanes never contribute; pre-cast to compute dtype.
        w4 = w.reshape(4, hidden_dim, in_dim)
        out = jnp.zeros((4, in_dim_pad, h_pad), jnp.float32)
        out = out.at[:, :in_dim, :hidden_dim].set(jnp.transpose(w4, (0, 2, 1)))
        out = jnp.transpose(out, (1, 0, 2)).reshape(in_dim_pad, 4 * h_pad)
        return out.astype(compute_dtype)

    def pack_gate_bias(b_ih, b_hh):
        b = (b_ih + b_hh).reshape(4, hidden_dim)
        out = jnp.zeros((4, h_pad), jnp.float32).at[:, :hidden_dim].set(b)
        return out.reshape(1, 4 * h_pad)                   # f32 (post-GEMM add)

    kernel_args = [xp]
    in_specs = [pl.BlockSpec((t_chunk, tile_b, d_pad), lambda i, t: (t, i, 0))]

    weight_bytes = 0
    for li, lp in enumerate(layers):
        in_dim = input_dim if li == 0 else hidden_dim
        in_dim_pad = d_pad if li == 0 else h_pad
        packed = (
            pack_gate_mat(lp["w_ih"], in_dim, in_dim_pad),
            pack_gate_mat(lp["w_hh"], hidden_dim, h_pad),
            pack_gate_bias(lp["b_ih"], lp["b_hh"]),
        )
        for arr in packed:
            kernel_args.append(arr)
            in_specs.append(pl.BlockSpec(arr.shape, lambda i, t: (0, 0)))
            weight_bytes += int(arr.size) * arr.dtype.itemsize

    w_fc = jnp.zeros((h_pad, o_pad), jnp.float32)
    w_fc = w_fc.at[:hidden_dim, :output_dim].set(params["fc_w"].T)
    w_fc = w_fc.astype(compute_dtype)
    b_fc = jnp.zeros((1, o_pad), jnp.float32).at[0, :output_dim].set(params["fc_b"])
    for arr in (w_fc, b_fc):
        kernel_args.append(arr)
        in_specs.append(pl.BlockSpec(arr.shape, lambda i, t: (0, 0)))
        weight_bytes += int(arr.size) * arr.dtype.itemsize

    out_specs = pl.BlockSpec((t_chunk, tile_b, o_pad), lambda i, t: (t, i, 0))

    scratch_shapes = [
        pltpu.VMEM((num_layers, tile_b, h_pad), jnp.float32),   # h state
        pltpu.VMEM((num_layers, tile_b, h_pad), jnp.float32),   # c state
        pltpu.VMEM((t_chunk, tile_b, h_pad), jnp.float32),      # hidden staging
        pltpu.VMEM((t_chunk, tile_b, 4 * h_pad), jnp.float32),  # gate pre-acts
    ]

    # Explicit VMEM budget (input/output blocks + weights double-buffered).
    block_bytes = 2 * t_chunk * tile_b * (d_pad + o_pad) * 4
    scratch_bytes = (2 * num_layers * tile_b * h_pad
                     + t_chunk * tile_b * h_pad
                     + t_chunk * tile_b * 4 * h_pad) * 4
    vmem_need = block_bytes + 2 * weight_bytes + scratch_bytes
    vmem_limit = int(min(max(int(1.5 * vmem_need) + (4 << 20), 32 << 20),
                         128 << 20))

    # Advisory cost hint (weights counted once, not per grid step).
    per_row = 0
    for li in range(num_layers):
        d_l = d_pad if li == 0 else h_pad
        per_row += 2 * (d_l * 4 * h_pad + h_pad * 4 * h_pad)
    per_row += 2 * h_pad * o_pad
    flops = b_pad * t_pad * per_row
    transcendentals = 5 * b_pad * t_pad * num_layers * h_pad
    bytes_accessed = int(xp.size) * 4 + b_pad * t_pad * o_pad * 4 + weight_bytes

    kernel = _make_lstm_kernel(num_layers, t_chunk, h_pad, compute_dtype)

    out = pl.pallas_call(
        kernel,
        out_shape=jax.ShapeDtypeStruct((t_pad, b_pad, o_pad), jnp.float32),
        grid=(n_tiles, n_chunks),
        in_specs=in_specs,
        out_specs=out_specs,
        scratch_shapes=scratch_shapes,
        compiler_params=pltpu.CompilerParams(
            dimension_semantics=("parallel", "arbitrary"),
            vmem_limit_bytes=vmem_limit),
        cost_estimate=pl.CostEstimate(
            flops=int(flops),
            transcendentals=int(transcendentals),
            bytes_accessed=int(bytes_accessed)),
    )(*kernel_args)

    # Back to batch_first, drop batch/time/feature padding.
    return jnp.transpose(out, (1, 0, 2))[:B, :T, :output_dim]


def init_lstm_params(key, input_dim, hidden_dim, output_dim, num_layers):
    """PyTorch-default-style init, PyTorch weight layout (weights NOT padded)."""
    params = {"layers": []}
    k = 1.0 / jnp.sqrt(jnp.float32(hidden_dim))
    for li in range(num_layers):
        in_dim = input_dim if li == 0 else hidden_dim
        key, k1, k2, k3, k4 = jax.random.split(key, 5)
        params["layers"].append({
            "w_ih": jax.random.uniform(k1, (4 * hidden_dim, in_dim), jnp.float32, -k, k),
            "w_hh": jax.random.uniform(k2, (4 * hidden_dim, hidden_dim), jnp.float32, -k, k),
            "b_ih": jax.random.uniform(k3, (4 * hidden_dim,), jnp.float32, -k, k),
            "b_hh": jax.random.uniform(k4, (4 * hidden_dim,), jnp.float32, -k, k),
        })
    key, k1, k2 = jax.random.split(key, 3)
    params["fc_w"] = jax.random.uniform(k1, (output_dim, hidden_dim), jnp.float32, -k, k)
    params["fc_b"] = jax.random.uniform(k2, (output_dim,), jnp.float32, -k, k)
    return params


def reference_forward(x, params, hidden_dim):
    """Plain-JAX reference matching PyTorch nn.LSTM + nn.Linear (inference)."""
    h_seq = x
    for lp in params["layers"]:
        w_ih, w_hh = lp["w_ih"], lp["w_hh"]
        b = lp["b_ih"] + lp["b_hh"]
        B, T, _ = h_seq.shape
        h = jnp.zeros((B, hidden_dim), jnp.float32)
        c = jnp.zeros((B, hidden_dim), jnp.float32)
        outs = []
        for t in range(T):
            gates = h_seq[:, t, :] @ w_ih.T + h @ w_hh.T + b
            i_g = jax.nn.sigmoid(gates[:, :hidden_dim])
            f_g = jax.nn.sigmoid(gates[:, hidden_dim:2 * hidden_dim])
            g_g = jnp.tanh(gates[:, 2 * hidden_dim:3 * hidden_dim])
            o_g = jax.nn.sigmoid(gates[:, 3 * hidden_dim:])
            c = f_g * c + i_g * g_g
            h = o_g * jnp.tanh(c)
            outs.append(h)
        h_seq = jnp.stack(outs, axis=1)
    return h_seq @ params["fc_w"].T + params["fc_b"]


if __name__ == "__main__":
    # LSTMForecaster(input_dim=8, hidden_dim=32, output_dim=4, num_layers=2)
    # applied to x of shape (batch=4, seq=8, input_dim=8).
    input_dim, hidden_dim, output_dim = 8, 32, 4
    num_layers, batch, seq_len = 2, 4, 8

    key = jax.random.PRNGKey(0)
    key, xkey, pkey = jax.random.split(key, 3)
    x = jax.random.normal(xkey, (batch, seq_len, input_dim), jnp.float32)
    params = init_lstm_params(pkey, input_dim, hidden_dim, output_dim, num_layers)

    # Exact-ish f32 path (f32 MXU accumulation).
    out = jax.block_until_ready(
        lstm_forecaster_forward(x, params, compute_dtype=jnp.float32))
    assert out.shape == (batch, seq_len, output_dim)

    with jax.default_matmul_precision("highest"):
        ref = jax.block_until_ready(reference_forward(x, params, hidden_dim))
    err = float(jnp.max(jnp.abs(out - ref)))
    assert err < 2e-2, f"f32 path mismatch vs reference, max abs err = {err}"

    # Fast bf16 compute path (v6e/v7x MXU native); f32 accumulate + f32 state.
    out_bf16 = jax.block_until_ready(
        lstm_forecaster_forward(x, params, compute_dtype=jnp.bfloat16))
    err_bf16 = float(jnp.max(jnp.abs(out_bf16 - ref)))
    assert out_bf16.shape == (batch, seq_len, output_dim)
    assert err_bf16 < 0.15, f"bf16 path mismatch vs reference, max abs err = {err_bf16}"

    print("KERNEL_OK")
</pallas_src>

<mosaic_0001>
module attributes {stable_mosaic.version = 11 : i64} {
  func.func @kernel(%arg0: i32, %arg1: i32, %arg2: memref<8x8x128xf32, #tpu.memory_space<vmem>>, %arg3: memref<128x512xf32, #tpu.memory_space<vmem>>, %arg4: memref<128x512xf32, #tpu.memory_space<vmem>>, %arg5: memref<1x512xf32, #tpu.memory_space<vmem>>, %arg6: memref<128x512xf32, #tpu.memory_space<vmem>>, %arg7: memref<128x512xf32, #tpu.memory_space<vmem>>, %arg8: memref<1x512xf32, #tpu.memory_space<vmem>>, %arg9: memref<128x128xf32, #tpu.memory_space<vmem>>, %arg10: memref<1x128xf32, #tpu.memory_space<vmem>>, %arg11: memref<8x8x128xf32, #tpu.memory_space<vmem>>, %arg12: memref<2x8x128xf32, #tpu.memory_space<vmem>>, %arg13: memref<2x8x128xf32, #tpu.memory_space<vmem>>, %arg14: memref<8x8x128xf32, #tpu.memory_space<vmem>>, %arg15: memref<8x8x512xf32, #tpu.memory_space<vmem>>) attributes {dimension_semantics = [#tpu.dimension_semantics<parallel>, #tpu.dimension_semantics<arbitrary>], iteration_bounds = array<i64: 1, 1>, scalar_prefetch = 0 : i64, scratch_operands = 4 : i64, tpu.core_type = #tpu.core_type<tc>, window_params = [{transform_indices = @transform_0, window_bounds = array<i64: 8, 8, 128>}, {pipeline_mode = #tpu.pipeline_mode<synchronous>, transform_indices = @transform_1, window_bounds = array<i64: 128, 512>}, {pipeline_mode = #tpu.pipeline_mode<synchronous>, transform_indices = @transform_2, window_bounds = array<i64: 128, 512>}, {pipeline_mode = #tpu.pipeline_mode<synchronous>, transform_indices = @transform_3, window_bounds = array<i64: 1, 512>}, {pipeline_mode = #tpu.pipeline_mode<synchronous>, transform_indices = @transform_4, window_bounds = array<i64: 128, 512>}, {pipeline_mode = #tpu.pipeline_mode<synchronous>, transform_indices = @transform_5, window_bounds = array<i64: 128, 512>}, {pipeline_mode = #tpu.pipeline_mode<synchronous>, transform_indices = @transform_6, window_bounds = array<i64: 1, 512>}, {pipeline_mode = #tpu.pipeline_mode<synchronous>, transform_indices = @transform_7, window_bounds = array<i64: 128, 128>}, {pipeline_mode = #tpu.pipeline_mode<synchronous>, transform_indices = @transform_8, window_bounds = array<i64: 1, 128>}, {transform_indices = @transform_9, window_bounds = array<i64: 8, 8, 128>}]} {
    %c0_i32 = arith.constant 0 : i32
    %0 = arith.cmpi eq, %arg1, %c0_i32 : i32
    %1 = arith.extui %0 : i1 to i32
    %c0_i32_0 = arith.constant 0 : i32
    %2 = arith.cmpi ne, %1, %c0_i32_0 : i32
    scf.if %2 {
      %cst_293 = arith.constant 0.000000e+00 : f32
      %692 = vector.broadcast %cst_293 : f32 to vector<2x8x128xf32>
      %c0_294 = arith.constant 0 : index
      %c0_295 = arith.constant 0 : index
      %c0_296 = arith.constant 0 : index
      %693 = vector.load %arg12[%c0_294, %c0_295, %c0_296] : memref<2x8x128xf32, #tpu.memory_space<vmem>>, vector<2x8x128xf32>
      tpu.vector_store %arg12[%c0_294, %c0_295, %c0_296], %692 {strides = array<i32>} : memref<2x8x128xf32, #tpu.memory_space<vmem>>, vector<2x8x128xf32>,
      %cst_297 = arith.constant 0.000000e+00 : f32
      %694 = vector.broadcast %cst_297 : f32 to vector<2x8x128xf32>
      %c0_298 = arith.constant 0 : index
      %c0_299 = arith.constant 0 : index
      %c0_300 = arith.constant 0 : index
      %695 = vector.load %arg13[%c0_298, %c0_299, %c0_300] : memref<2x8x128xf32, #tpu.memory_space<vmem>>, vector<2x8x128xf32>
      tpu.vector_store %arg13[%c0_298, %c0_299, %c0_300], %694 {strides = array<i32>} : memref<2x8x128xf32, #tpu.memory_space<vmem>>, vector<2x8x128xf32>,
    } else {
    }
    %c0 = arith.constant 0 : index
    %c0_1 = arith.constant 0 : index
    %3 = vector.load %arg3[%c0, %c0_1] : memref<128x512xf32, #tpu.memory_space<vmem>>, vector<128x512xf32>
    %c0_2 = arith.constant 0 : index
    %c0_3 = arith.constant 0 : index
    %4 = vector.load %arg4[%c0_2, %c0_3] : memref<128x512xf32, #tpu.memory_space<vmem>>, vector<128x512xf32>
    %c0_4 = arith.constant 0 : index
    %c0_5 = arith.constant 0 : index
    %5 = vector.load %arg5[%c0_4, %c0_5] : memref<1x512xf32, #tpu.memory_space<vmem>>, vector<1x512xf32>
    %c0_6 = arith.constant 0 : index
    %c0_7 = arith.constant 0 : index
    %c0_8 = arith.constant 0 : index
    %6 = vector.load %arg2[%c0_6, %c0_7, %c0_8] : memref<8x8x128xf32, #tpu.memory_space<vmem>>, vector<8x8x128xf32>
    %7 = vector.shape_cast %6 : vector<8x8x128xf32> to vector<64x128xf32>
    %cst = arith.constant dense<0.000000e+00> : vector<64x512xf32>
    %8 = tpu.matmul %7, %3, %cst {dimension_numbers = #tpu.dot_dimension_numbers<[1], [0], [0], [1], [0, 0, 1, 1], [], []>} : vector<64x128xf32>, vector<128x512xf32>, vector<64x512xf32> -> vector<64x512xf32>
    %9 = vector.broadcast %5 : vector<1x512xf32> to vector<64x512xf32>
    %10 = arith.addf %8, %9 : vector<64x512xf32>
    %11 = vector.shape_cast %10 : vector<64x512xf32> to vector<8x8x512xf32>
    %c0_9 = arith.constant 0 : index
    %c0_10 = arith.constant 0 : index
    %c0_11 = arith.constant 0 : index
    %12 = vector.load %arg15[%c0_9, %c0_10, %c0_11] : memref<8x8x512xf32, #tpu.memory_space<vmem>>, vector<8x8x512xf32>
    tpu.vector_store %arg15[%c0_9, %c0_10, %c0_11], %11 {strides = array<i32>} : memref<8x8x512xf32, #tpu.memory_space<vmem>>, vector<8x8x512xf32>,
    %c0_12 = arith.constant 0 : index
    %c0_13 = arith.constant 0 : index
    %c0_14 = arith.constant 0 : index
    %13 = vector.load %arg12[%c0_12, %c0_13, %c0_14] : memref<2x8x128xf32, #tpu.memory_space<vmem>>, vector<1x8x128xf32>
    %14 = vector.shape_cast %13 : vector<1x8x128xf32> to vector<8x128xf32>
    %c0_15 = arith.constant 0 : index
    %c0_16 = arith.constant 0 : index
    %c0_17 = arith.constant 0 : index
    %15 = vector.load %arg13[%c0_15, %c0_16, %c0_17] : memref<2x8x128xf32, #tpu.memory_space<vmem>>, vector<1x8x128xf32>
    %16 = vector.shape_cast %15 : vector<1x8x128xf32> to vector<8x128xf32>
    %c0_i32_18 = arith.constant 0 : i32
    %17 = arith.index_cast %c0_i32_18 : i32 to index
    %c0_19 = arith.constant 0 : index
    %c0_20 = arith.constant 0 : index
    %18 = vector.load %arg15[%17, %c0_19, %c0_20] : memref<8x8x512xf32, #tpu.memory_space<vmem>>, vector<1x8x512xf32>
    %19 = vector.shape_cast %18 : vector<1x8x512xf32> to vector<8x512xf32>
    %cst_21 = arith.constant dense<0.000000e+00> : vector<8x512xf32>
    %20 = tpu.matmul %14, %4, %cst_21 {dimension_numbers = #tpu.dot_dimension_numbers<[1], [0], [0], [1], [0, 0, 1, 1], [], []>} : vector<8x128xf32>, vector<128x512xf32>, vector<8x512xf32> -> vector<8x512xf32>
    %21 = arith.addf %19, %20 : vector<8x512xf32>
    %22 = vector.extract_strided_slice %21 {offsets = [0, 0], sizes = [8, 128], strides = [1, 1]} : vector<8x512xf32> to vector<8x128xf32>
    %cst_22 = arith.constant 5.000000e-01 : f32
    %23 = vector.broadcast %cst_22 : f32 to vector<8x128xf32>
    %24 = arith.mulf %23, %22 : vector<8x128xf32>
    %25 = math.tanh %24 : vector<8x128xf32>
    %cst_23 = arith.constant 5.000000e-01 : f32
    %26 = vector.broadcast %cst_23 : f32 to vector<8x128xf32>
    %27 = arith.mulf %26, %25 : vector<8x128xf32>
    %cst_24 = arith.constant 5.000000e-01 : f32
    %28 = vector.broadcast %cst_24 : f32 to vector<8x128xf32>
    %29 = arith.addf %27, %28 : vector<8x128xf32>
    %30 = vector.extract_strided_slice %21 {offsets = [0, 128], sizes = [8, 128], strides = [1, 1]} : vector<8x512xf32> to vector<8x128xf32>
    %cst_25 = arith.constant 5.000000e-01 : f32
    %31 = vector.broadcast %cst_25 : f32 to vector<8x128xf32>
    %32 = arith.mulf %31, %30 : vector<8x128xf32>
    %33 = math.tanh %32 : vector<8x128xf32>
    %cst_26 = arith.constant 5.000000e-01 : f32
    %34 = vector.broadcast %cst_26 : f32 to vector<8x128xf32>
    %35 = arith.mulf %34, %33 : vector<8x128xf32>
    %cst_27 = arith.constant 5.000000e-01 : f32
    %36 = vector.broadcast %cst_27 : f32 to vector<8x128xf32>
    %37 = arith.addf %35, %36 : vector<8x128xf32>
    %38 = vector.extract_strided_slice %21 {offsets = [0, 256], sizes = [8, 128], strides = [1, 1]} : vector<8x512xf32> to vector<8x128xf32>
    %39 = math.tanh %38 : vector<8x128xf32>
    %40 = vector.extract_strided_slice %21 {offsets = [0, 384], sizes = [8, 128], strides = [1, 1]} : vector<8x512xf32> to vector<8x128xf32>
    %cst_28 = arith.constant 5.000000e-01 : f32
    %41 = vector.broadcast %cst_28 : f32 to vector<8x128xf32>
    %42 = arith.mulf %41, %40 : vector<8x128xf32>
    %43 = math.tanh %42 : vector<8x128xf32>
    %cst_29 = arith.constant 5.000000e-01 : f32
    %44 = vector.broadcast %cst_29 : f32 to vector<8x128xf32>
    %45 = arith.mulf %44, %43 : vector<8x128xf32>
    %cst_30 = arith.constant 5.000000e-01 : f32
    %46 = vector.broadcast %cst_30 : f32 to vector<8x128xf32>
    %47 = arith.addf %45, %46 : vector<8x128xf32>
    %48 = arith.mulf %37, %16 : vector<8x128xf32>
    %49 = arith.mulf %29, %39 : vector<8x128xf32>
    %50 = arith.addf %48, %49 : vector<8x128xf32>
    %51 = math.tanh %50 : vector<8x128xf32>
    %52 = arith.mulf %47, %51 : vector<8x128xf32>
    %53 = arith.index_cast %c0_i32_18 : i32 to index
    %c0_31 = arith.constant 0 : index
    %c0_32 = arith.constant 0 : index
    %54 = vector.load %arg14[%53, %c0_31, %c0_32] : memref<8x8x128xf32, #tpu.memory_space<vmem>>, vector<1x8x128xf32>
    %55 = vector.shape_cast %54 : vector<1x8x128xf32> to vector<8x128xf32>
    %56 = vector.shape_cast %52 : vector<8x128xf32> to vector<1x8x128xf32>
    tpu.vector_store %arg14[%53, %c0_31, %c0_32], %56 {strides = array<i32>} : memref<8x8x128xf32, #tpu.memory_space<vmem>>, vector<1x8x128xf32>,
    %c1_i32 = arith.constant 1 : i32
    %57 = arith.index_cast %c1_i32 : i32 to index
    %c0_33 = arith.constant 0 : index
    %c0_34 = arith.constant 0 : index
    %58 = vector.load %arg15[%57, %c0_33, %c0_34] : memref<8x8x512xf32, #tpu.memory_space<vmem>>, vector<1x8x512xf32>
    %59 = vector.shape_cast %58 : vector<1x8x512xf32> to vector<8x512xf32>
    %cst_35 = arith.constant dense<0.000000e+00> : vector<8x512xf32>
    %60 = tpu.matmul %52, %4, %cst_35 {dimension_numbers = #tpu.dot_dimension_numbers<[1], [0], [0], [1], [0, 0, 1, 1], [], []>} : vector<8x128xf32>, vector<128x512xf32>, vector<8x512xf32> -> vector<8x512xf32>
    %61 = arith.addf %59, %60 : vector<8x512xf32>
    %62 = vector.extract_strided_slice %61 {offsets = [0, 0], sizes = [8, 128], strides = [1, 1]} : vector<8x512xf32> to vector<8x128xf32>
    %cst_36 = arith.constant 5.000000e-01 : f32
    %63 = vector.broadcast %cst_36 : f32 to vector<8x128xf32>
    %64 = arith.mulf %63, %62 : vector<8x128xf32>
    %65 = math.tanh %64 : vector<8x128xf32>
    %cst_37 = arith.constant 5.000000e-01 : f32
    %66 = vector.broadcast %cst_37 : f32 to vector<8x128xf32>
    %67 = arith.mulf %66, %65 : vector<8x128xf32>
    %cst_38 = arith.constant 5.000000e-01 : f32
    %68 = vector.broadcast %cst_38 : f32 to vector<8x128xf32>
    %69 = arith.addf %67, %68 : vector<8x128xf32>
    %70 = vector.extract_strided_slice %61 {offsets = [0, 128], sizes = [8, 128], strides = [1, 1]} : vector<8x512xf32> to vector<8x128xf32>
    %cst_39 = arith.constant 5.000000e-01 : f32
    %71 = vector.broadcast %cst_39 : f32 to vector<8x128xf32>
    %72 = arith.mulf %71, %70 : vector<8x128xf32>
    %73 = math.tanh %72 : vector<8x128xf32>
    %cst_40 = arith.constant 5.000000e-01 : f32
    %74 = vector.broadcast %cst_40 : f32 to vector<8x128xf32>
    %75 = arith.mulf %74, %73 : vector<8x128xf32>
    %cst_41 = arith.constant 5.000000e-01 : f32
    %76 = vector.broadcast %cst_41 : f32 to vector<8x128xf32>
    %77 = arith.addf %75, %76 : vector<8x128xf32>
    %78 = vector.extract_strided_slice %61 {offsets = [0, 256], sizes = [8, 128], strides = [1, 1]} : vector<8x512xf32> to vector<8x128xf32>
    %79 = math.tanh %78 : vector<8x128xf32>
    %80 = vector.extract_strided_slice %61 {offsets = [0, 384], sizes = [8, 128], strides = [1, 1]} : vector<8x512xf32> to vector<8x128xf32>
    %cst_42 = arith.constant 5.000000e-01 : f32
    %81 = vector.broadcast %cst_42 : f32 to vector<8x128xf32>
    %82 = arith.mulf %81, %80 : vector<8x128xf32>
    %83 = math.tanh %82 : vector<8x128xf32>
    %cst_43 = arith.constant 5.000000e-01 : f32
    %84 = vector.broadcast %cst_43 : f32 to vector<8x128xf32>
    %85 = arith.mulf %84, %83 : vector<8x128xf32>
    %cst_44 = arith.constant 5.000000e-01 : f32
    %86 = vector.broadcast %cst_44 : f32 to vector<8x128xf32>
    %87 = arith.addf %85, %86 : vector<8x128xf32>
    %88 = arith.mulf %77, %50 : vector<8x128xf32>
    %89 = arith.mulf %69, %79 : vector<8x128xf32>
    %90 = arith.addf %88, %89 : vector<8x128xf32>
    %91 = math.tanh %90 : vector<8x128xf32>
    %92 = arith.mulf %87, %91 : vector<8x128xf32>
    %93 = arith.index_cast %c1_i32 : i32 to index
    %c0_45 = arith.constant 0 : index
    %c0_46 = arith.constant 0 : index
    %94 = vector.load %arg14[%93, %c0_45, %c0_46] : memref<8x8x128xf32, #tpu.memory_space<vmem>>, vector<1x8x128xf32>
    %95 = vector.shape_cast %94 : vector<1x8x128xf32> to vector<8x128xf32>
    %96 = vector.shape_cast %92 : vector<8x128xf32> to vector<1x8x128xf32>
    tpu.vector_store %arg14[%93, %c0_45, %c0_46], %96 {strides = array<i32>} : memref<8x8x128xf32, #tpu.memory_space<vmem>>, vector<1x8x128xf32>,
    %c2_i32 = arith.constant 2 : i32
    %97 = arith.index_cast %c2_i32 : i32 to index
    %c0_47 = arith.constant 0 : index
    %c0_48 = arith.constant 0 : index
    %98 = vector.load %arg15[%97, %c0_47, %c0_48] : memref<8x8x512xf32, #tpu.memory_space<vmem>>, vector<1x8x512xf32>
    %99 = vector.shape_cast %98 : vector<1x8x512xf32> to vector<8x512xf32>
    %cst_49 = arith.constant dense<0.000000e+00> : vector<8x512xf32>
    %100 = tpu.matmul %92, %4, %cst_49 {dimension_numbers = #tpu.dot_dimension_numbers<[1], [0], [0], [1], [0, 0, 1, 1], [], []>} : vector<8x128xf32>, vector<128x512xf32>, vector<8x512xf32> -> vector<8x512xf32>
    %101 = arith.addf %99, %100 : vector<8x512xf32>
    %102 = vector.extract_strided_slice %101 {offsets = [0, 0], sizes = [8, 128], strides = [1, 1]} : vector<8x512xf32> to vector<8x128xf32>
    %cst_50 = arith.constant 5.000000e-01 : f32
    %103 = vector.broadcast %cst_50 : f32 to vector<8x128xf32>
    %104 = arith.mulf %103, %102 : vector<8x128xf32>
    %105 = math.tanh %104 : vector<8x128xf32>
    %cst_51 = arith.constant 5.000000e-01 : f32
    %106 = vector.broadcast %cst_51 : f32 to vector<8x128xf32>
    %107 = arith.mulf %106, %105 : vector<8x128xf32>
    %cst_52 = arith.constant 5.000000e-01 : f32
    %108 = vector.broadcast %cst_52 : f32 to vector<8x128xf32>
    %109 = arith.addf %107, %108 : vector<8x128xf32>
    %110 = vector.extract_strided_slice %101 {offsets = [0, 128], sizes = [8, 128], strides = [1, 1]} : vector<8x512xf32> to vector<8x128xf32>
    %cst_53 = arith.constant 5.000000e-01 : f32
    %111 = vector.broadcast %cst_53 : f32 to vector<8x128xf32>
    %112 = arith.mulf %111, %110 : vector<8x128xf32>
    %113 = math.tanh %112 : vector<8x128xf32>
    %cst_54 = arith.constant 5.000000e-01 : f32
    %114 = vector.broadcast %cst_54 : f32 to vector<8x128xf32>
    %115 = arith.mulf %114, %113 : vector<8x128xf32>
    %cst_55 = arith.constant 5.000000e-01 : f32
    %116 = vector.broadcast %cst_55 : f32 to vector<8x128xf32>
    %117 = arith.addf %115, %116 : vector<8x128xf32>
    %118 = vector.extract_strided_slice %101 {offsets = [0, 256], sizes = [8, 128], strides = [1, 1]} : vector<8x512xf32> to vector<8x128xf32>
    %119 = math.tanh %118 : vector<8x128xf32>
    %120 = vector.extract_strided_slice %101 {offsets = [0, 384], sizes = [8, 128], strides = [1, 1]} : vector<8x512xf32> to vector<8x128xf32>
    %cst_56 = arith.constant 5.000000e-01 : f32
    %121 = vector.broadcast %cst_56 : f32 to vector<8x128xf32>
    %122 = arith.mulf %121, %120 : vector<8x128xf32>
    %123 = math.tanh %122 : vector<8x128xf32>
    %cst_57 = arith.constant 5.000000e-01 : f32
    %124 = vector.broadcast %cst_57 : f32 to vector<8x128xf32>
    %125 = arith.mulf %124, %123 : vector<8x128xf32>
    %cst_58 = arith.constant 5.000000e-01 : f32
    %126 = vector.broadcast %cst_58 : f32 to vector<8x128xf32>
    %127 = arith.addf %125, %126 : vector<8x128xf32>
    %128 = arith.mulf %117, %90 : vector<8x128xf32>
    %129 = arith.mulf %109, %119 : vector<8x128xf32>
    %130 = arith.addf %128, %129 : vector<8x128xf32>
    %131 = math.tanh %130 : vector<8x128xf32>
    %132 = arith.mulf %127, %131 : vector<8x128xf32>
    %133 = arith.index_cast %c2_i32 : i32 to index
    %c0_59 = arith.constant 0 : index
    %c0_60 = arith.constant 0 : index
    %134 = vector.load %arg14[%133, %c0_59, %c0_60] : memref<8x8x128xf32, #tpu.memory_space<vmem>>, vector<1x8x128xf32>
    %135 = vector.shape_cast %134 : vector<1x8x128xf32> to vector<8x128xf32>
    %136 = vector.shape_cast %132 : vector<8x128xf32> to vector<1x8x128xf32>
    tpu.vector_store %arg14[%133, %c0_59, %c0_60], %136 {strides = array<i32>} : memref<8x8x128xf32, #tpu.memory_space<vmem>>, vector<1x8x128xf32>,
    %c3_i32 = arith.constant 3 : i32
    %137 = arith.index_cast %c3_i32 : i32 to index
    %c0_61 = arith.constant 0 : index
    %c0_62 = arith.constant 0 : index
    %138 = vector.load %arg15[%137, %c0_61, %c0_62] : memref<8x8x512xf32, #tpu.memory_space<vmem>>, vector<1x8x512xf32>
    %139 = vector.shape_cast %138 : vector<1x8x512xf32> to vector<8x512xf32>
    %cst_63 = arith.constant dense<0.000000e+00> : vector<8x512xf32>
    %140 = tpu.matmul %132, %4, %cst_63 {dimension_numbers = #tpu.dot_dimension_numbers<[1], [0], [0], [1], [0, 0, 1, 1], [], []>} : vector<8x128xf32>, vector<128x512xf32>, vector<8x512xf32> -> vector<8x512xf32>
    %141 = arith.addf %139, %140 : vector<8x512xf32>
    %142 = vector.extract_strided_slice %141 {offsets = [0, 0], sizes = [8, 128], strides = [1, 1]} : vector<8x512xf32> to vector<8x128xf32>
    %cst_64 = arith.constant 5.000000e-01 : f32
    %143 = vector.broadcast %cst_64 : f32 to vector<8x128xf32>
    %144 = arith.mulf %143, %142 : vector<8x128xf32>
    %145 = math.tanh %144 : vector<8x128xf32>
    %cst_65 = arith.constant 5.000000e-01 : f32
    %146 = vector.broadcast %cst_65 : f32 to vector<8x128xf32>
    %147 = arith.mulf %146, %145 : vector<8x128xf32>
    %cst_66 = arith.constant 5.000000e-01 : f32
    %148 = vector.broadcast %cst_66 : f32 to vector<8x128xf32>
    %149 = arith.addf %147, %148 : vector<8x128xf32>
    %150 = vector.extract_strided_slice %141 {offsets = [0, 128], sizes = [8, 128], strides = [1, 1]} : vector<8x512xf32> to vector<8x128xf32>
    %cst_67 = arith.constant 5.000000e-01 : f32
    %151 = vector.broadcast %cst_67 : f32 to vector<8x128xf32>
    %152 = arith.mulf %151, %150 : vector<8x128xf32>
    %153 = math.tanh %152 : vector<8x128xf32>
    %cst_68 = arith.constant 5.000000e-01 : f32
    %154 = vector.broadcast %cst_68 : f32 to vector<8x128xf32>
    %155 = arith.mulf %154, %153 : vector<8x128xf32>
    %cst_69 = arith.constant 5.000000e-01 : f32
    %156 = vector.broadcast %cst_69 : f32 to vector<8x128xf32>
    %157 = arith.addf %155, %156 : vector<8x128xf32>
    %158 = vector.extract_strided_slice %141 {offsets = [0, 256], sizes = [8, 128], strides = [1, 1]} : vector<8x512xf32> to vector<8x128xf32>
    %159 = math.tanh %158 : vector<8x128xf32>
    %160 = vector.extract_strided_slice %141 {offsets = [0, 384], sizes = [8, 128], strides = [1, 1]} : vector<8x512xf32> to vector<8x128xf32>
    %cst_70 = arith.constant 5.000000e-01 : f32
    %161 = vector.broadcast %cst_70 : f32 to vector<8x128xf32>
    %162 = arith.mulf %161, %160 : vector<8x128xf32>
    %163 = math.tanh %162 : vector<8x128xf32>
    %cst_71 = arith.constant 5.000000e-01 : f32
    %164 = vector.broadcast %cst_71 : f32 to vector<8x128xf32>
    %165 = arith.mulf %164, %163 : vector<8x128xf32>
    %cst_72 = arith.constant 5.000000e-01 : f32
    %166 = vector.broadcast %cst_72 : f32 to vector<8x128xf32>
    %167 = arith.addf %165, %166 : vector<8x128xf32>
    %168 = arith.mulf %157, %130 : vector<8x128xf32>
    %169 = arith.mulf %149, %159 : vector<8x128xf32>
    %170 = arith.addf %168, %169 : vector<8x128xf32>
    %171 = math.tanh %170 : vector<8x128xf32>
    %172 = arith.mulf %167, %171 : vector<8x128xf32>
    %173 = arith.index_cast %c3_i32 : i32 to index
    %c0_73 = arith.constant 0 : index
    %c0_74 = arith.constant 0 : index
    %174 = vector.load %arg14[%173, %c0_73, %c0_74] : memref<8x8x128xf32, #tpu.memory_space<vmem>>, vector<1x8x128xf32>
    %175 = vector.shape_cast %174 : vector<1x8x128xf32> to vector<8x128xf32>
    %176 = vector.shape_cast %172 : vector<8x128xf32> to vector<1x8x128xf32>
    tpu.vector_store %arg14[%173, %c0_73, %c0_74], %176 {strides = array<i32>} : memref<8x8x128xf32, #tpu.memory_space<vmem>>, vector<1x8x128xf32>,
    %c4_i32 = arith.constant 4 : i32
    %177 = arith.index_cast %c4_i32 : i32 to index
    %c0_75 = arith.constant 0 : index
    %c0_76 = arith.constant 0 : index
    %178 = vector.load %arg15[%177, %c0_75, %c0_76] : memref<8x8x512xf32, #tpu.memory_space<vmem>>, vector<1x8x512xf32>
    %179 = vector.shape_cast %178 : vector<1x8x512xf32> to vector<8x512xf32>
    %cst_77 = arith.constant dense<0.000000e+00> : vector<8x512xf32>
    %180 = tpu.matmul %172, %4, %cst_77 {dimension_numbers = #tpu.dot_dimension_numbers<[1], [0], [0], [1], [0, 0, 1, 1], [], []>} : vector<8x128xf32>, vector<128x512xf32>, vector<8x512xf32> -> vector<8x512xf32>
    %181 = arith.addf %179, %180 : vector<8x512xf32>
    %182 = vector.extract_strided_slice %181 {offsets = [0, 0], sizes = [8, 128], strides = [1, 1]} : vector<8x512xf32> to vector<8x128xf32>
    %cst_78 = arith.constant 5.000000e-01 : f32
    %183 = vector.broadcast %cst_78 : f32 to vector<8x128xf32>
    %184 = arith.mulf %183, %182 : vector<8x128xf32>
    %185 = math.tanh %184 : vector<8x128xf32>
    %cst_79 = arith.constant 5.000000e-01 : f32
    %186 = vector.broadcast %cst_79 : f32 to vector<8x128xf32>
    %187 = arith.mulf %186, %185 : vector<8x128xf32>
    %cst_80 = arith.constant 5.000000e-01 : f32
    %188 = vector.broadcast %cst_80 : f32 to vector<8x128xf32>
    %189 = arith.addf %187, %188 : vector<8x128xf32>
    %190 = vector.extract_strided_slice %181 {offsets = [0, 128], sizes = [8, 128], strides = [1, 1]} : vector<8x512xf32> to vector<8x128xf32>
    %cst_81 = arith.constant 5.000000e-01 : f32
    %191 = vector.broadcast %cst_81 : f32 to vector<8x128xf32>
    %192 = arith.mulf %191, %190 : vector<8x128xf32>
    %193 = math.tanh %192 : vector<8x128xf32>
    %cst_82 = arith.constant 5.000000e-01 : f32
    %194 = vector.broadcast %cst_82 : f32 to vector<8x128xf32>
    %195 = arith.mulf %194, %193 : vector<8x128xf32>
    %cst_83 = arith.constant 5.000000e-01 : f32
    %196 = vector.broadcast %cst_83 : f32 to vector<8x128xf32>
    %197 = arith.addf %195, %196 : vector<8x128xf32>
    %198 = vector.extract_strided_slice %181 {offsets = [0, 256], sizes = [8, 128], strides = [1, 1]} : vector<8x512xf32> to vector<8x128xf32>
    %199 = math.tanh %198 : vector<8x128xf32>
    %200 = vector.extract_strided_slice %181 {offsets = [0, 384], sizes = [8, 128], strides = [1, 1]} : vector<8x512xf32> to vector<8x128xf32>
    %cst_84 = arith.constant 5.000000e-01 : f32
    %201 = vector.broadcast %cst_84 : f32 to vector<8x128xf32>
    %202 = arith.mulf %201, %200 : vector<8x128xf32>
    %203 = math.tanh %202 : vector<8x128xf32>
    %cst_85 = arith.constant 5.000000e-01 : f32
    %204 = vector.broadcast %cst_85 : f32 to vector<8x128xf32>
    %205 = arith.mulf %204, %203 : vector<8x128xf32>
    %cst_86 = arith.constant 5.000000e-01 : f32
    %206 = vector.broadcast %cst_86 : f32 to vector<8x128xf32>
    %207 = arith.addf %205, %206 : vector<8x128xf32>
    %208 = arith.mulf %197, %170 : vector<8x128xf32>
    %209 = arith.mulf %189, %199 : vector<8x128xf32>
    %210 = arith.addf %208, %209 : vector<8x128xf32>
    %211 = math.tanh %210 : vector<8x128xf32>
    %212 = arith.mulf %207, %211 : vector<8x128xf32>
    %213 = arith.index_cast %c4_i32 : i32 to index
    %c0_87 = arith.constant 0 : index
    %c0_88 = arith.constant 0 : index
    %214 = vector.load %arg14[%213, %c0_87, %c0_88] : memref<8x8x128xf32, #tpu.memory_space<vmem>>, vector<1x8x128xf32>
    %215 = vector.shape_cast %214 : vector<1x8x128xf32> to vector<8x128xf32>
    %216 = vector.shape_cast %212 : vector<8x128xf32> to vector<1x8x128xf32>
    tpu.vector_store %arg14[%213, %c0_87, %c0_88], %216 {strides = array<i32>} : memref<8x8x128xf32, #tpu.memory_space<vmem>>, vector<1x8x128xf32>,
    %c5_i32 = arith.constant 5 : i32
    %217 = arith.index_cast %c5_i32 : i32 to index
    %c0_89 = arith.constant 0 : index
    %c0_90 = arith.constant 0 : index
    %218 = vector.load %arg15[%217, %c0_89, %c0_90] : memref<8x8x512xf32, #tpu.memory_space<vmem>>, vector<1x8x512xf32>
    %219 = vector.shape_cast %218 : vector<1x8x512xf32> to vector<8x512xf32>
    %cst_91 = arith.constant dense<0.000000e+00> : vector<8x512xf32>
    %220 = tpu.matmul %212, %4, %cst_91 {dimension_numbers = #tpu.dot_dimension_numbers<[1], [0], [0], [1], [0, 0, 1, 1], [], []>} : vector<8x128xf32>, vector<128x512xf32>, vector<8x512xf32> -> vector<8x512xf32>
    %221 = arith.addf %219, %220 : vector<8x512xf32>
    %222 = vector.extract_strided_slice %221 {offsets = [0, 0], sizes = [8, 128], strides = [1, 1]} : vector<8x512xf32> to vector<8x128xf32>
    %cst_92 = arith.constant 5.000000e-01 : f32
    %223 = vector.broadcast %cst_92 : f32 to vector<8x128xf32>
    %224 = arith.mulf %223, %222 : vector<8x128xf32>
    %225 = math.tanh %224 : vector<8x128xf32>
    %cst_93 = arith.constant 5.000000e-01 : f32
    %226 = vector.broadcast %cst_93 : f32 to vector<8x128xf32>
    %227 = arith.mulf %226, %225 : vector<8x128xf32>
    %cst_94 = arith.constant 5.000000e-01 : f32
    %228 = vector.broadcast %cst_94 : f32 to vector<8x128xf32>
    %229 = arith.addf %227, %228 : vector<8x128xf32>
    %230 = vector.extract_strided_slice %221 {offsets = [0, 128], sizes = [8, 128], strides = [1, 1]} : vector<8x512xf32> to vector<8x128xf32>
    %cst_95 = arith.constant 5.000000e-01 : f32
    %231 = vector.broadcast %cst_95 : f32 to vector<8x128xf32>
    %232 = arith.mulf %231, %230 : vector<8x128xf32>
    %233 = math.tanh %232 : vector<8x128xf32>
    %cst_96 = arith.constant 5.000000e-01 : f32
    %234 = vector.broadcast %cst_96 : f32 to vector<8x128xf32>
    %235 = arith.mulf %234, %233 : vector<8x128xf32>
    %cst_97 = arith.constant 5.000000e-01 : f32
    %236 = vector.broadcast %cst_97 : f32 to vector<8x128xf32>
    %237 = arith.addf %235, %236 : vector<8x128xf32>
    %238 = vector.extract_strided_slice %221 {offsets = [0, 256], sizes = [8, 128], strides = [1, 1]} : vector<8x512xf32> to vector<8x128xf32>
    %239 = math.tanh %238 : vector<8x128xf32>
    %240 = vector.extract_strided_slice %221 {offsets = [0, 384], sizes = [8, 128], strides = [1, 1]} : vector<8x512xf32> to vector<8x128xf32>
    %cst_98 = arith.constant 5.000000e-01 : f32
    %241 = vector.broadcast %cst_98 : f32 to vector<8x128xf32>
    %242 = arith.mulf %241, %240 : vector<8x128xf32>
    %243 = math.tanh %242 : vector<8x128xf32>
    %cst_99 = arith.constant 5.000000e-01 : f32
    %244 = vector.broadcast %cst_99 : f32 to vector<8x128xf32>
    %245 = arith.mulf %244, %243 : vector<8x128xf32>
    %cst_100 = arith.constant 5.000000e-01 : f32
    %246 = vector.broadcast %cst_100 : f32 to vector<8x128xf32>
    %247 = arith.addf %245, %246 : vector<8x128xf32>
    %248 = arith.mulf %237, %210 : vector<8x128xf32>
    %249 = arith.mulf %229, %239 : vector<8x128xf32>
    %250 = arith.addf %248, %249 : vector<8x128xf32>
    %251 = math.tanh %250 : vector<8x128xf32>
    %252 = arith.mulf %247, %251 : vector<8x128xf32>
    %253 = arith.index_cast %c5_i32 : i32 to index
    %c0_101 = arith.constant 0 : index
    %c0_102 = arith.constant 0 : index
    %254 = vector.load %arg14[%253, %c0_101, %c0_102] : memref<8x8x128xf32, #tpu.memory_space<vmem>>, vector<1x8x128xf32>
    %255 = vector.shape_cast %254 : vector<1x8x128xf32> to vector<8x128xf32>
    %256 = vector.shape_cast %252 : vector<8x128xf32> to vector<1x8x128xf32>
    tpu.vector_store %arg14[%253, %c0_101, %c0_102], %256 {strides = array<i32>} : memref<8x8x128xf32, #tpu.memory_space<vmem>>, vector<1x8x128xf32>,
    %c6_i32 = arith.constant 6 : i32
    %257 = arith.index_cast %c6_i32 : i32 to index
    %c0_103 = arith.constant 0 : index
    %c0_104 = arith.constant 0 : index
    %258 = vector.load %arg15[%257, %c0_103, %c0_104] : memref<8x8x512xf32, #tpu.memory_space<vmem>>, vector<1x8x512xf32>
    %259 = vector.shape_cast %258 : vector<1x8x512xf32> to vector<8x512xf32>
    %cst_105 = arith.constant dense<0.000000e+00> : vector<8x512xf32>
    %260 = tpu.matmul %252, %4, %cst_105 {dimension_numbers = #tpu.dot_dimension_numbers<[1], [0], [0], [1], [0, 0, 1, 1], [], []>} : vector<8x128xf32>, vector<128x512xf32>, vector<8x512xf32> -> vector<8x512xf32>
    %261 = arith.addf %259, %260 : vector<8x512xf32>
    %262 = vector.extract_strided_slice %261 {offsets = [0, 0], sizes = [8, 128], strides = [1, 1]} : vector<8x512xf32> to vector<8x128xf32>
    %cst_106 = arith.constant 5.000000e-01 : f32
    %263 = vector.broadcast %cst_106 : f32 to vector<8x128xf32>
    %264 = arith.mulf %263, %262 : vector<8x128xf32>
    %265 = math.tanh %264 : vector<8x128xf32>
    %cst_107 = arith.constant 5.000000e-01 : f32
    %266 = vector.broadcast %cst_107 : f32 to vector<8x128xf32>
    %267 = arith.mulf %266, %265 : vector<8x128xf32>
    %cst_108 = arith.constant 5.000000e-01 : f32
    %268 = vector.broadcast %cst_108 : f32 to vector<8x128xf32>
    %269 = arith.addf %267, %268 : vector<8x128xf32>
    %270 = vector.extract_strided_slice %261 {offsets = [0, 128], sizes = [8, 128], strides = [1, 1]} : vector<8x512xf32> to vector<8x128xf32>
    %cst_109 = arith.constant 5.000000e-01 : f32
    %271 = vector.broadcast %cst_109 : f32 to vector<8x128xf32>
    %272 = arith.mulf %271, %270 : vector<8x128xf32>
    %273 = math.tanh %272 : vector<8x128xf32>
    %cst_110 = arith.constant 5.000000e-01 : f32
    %274 = vector.broadcast %cst_110 : f32 to vector<8x128xf32>
    %275 = arith.mulf %274, %273 : vector<8x128xf32>
    %cst_111 = arith.constant 5.000000e-01 : f32
    %276 = vector.broadcast %cst_111 : f32 to vector<8x128xf32>
    %277 = arith.addf %275, %276 : vector<8x128xf32>
    %278 = vector.extract_strided_slice %261 {offsets = [0, 256], sizes = [8, 128], strides = [1, 1]} : vector<8x512xf32> to vector<8x128xf32>
    %279 = math.tanh %278 : vector<8x128xf32>
    %280 = vector.extract_strided_slice %261 {offsets = [0, 384], sizes = [8, 128], strides = [1, 1]} : vector<8x512xf32> to vector<8x128xf32>
    %cst_112 = arith.constant 5.000000e-01 : f32
    %281 = vector.broadcast %cst_112 : f32 to vector<8x128xf32>
    %282 = arith.mulf %281, %280 : vector<8x128xf32>
    %283 = math.tanh %282 : vector<8x128xf32>
    %cst_113 = arith.constant 5.000000e-01 : f32
    %284 = vector.broadcast %cst_113 : f32 to vector<8x128xf32>
    %285 = arith.mulf %284, %283 : vector<8x128xf32>
    %cst_114 = arith.constant 5.000000e-01 : f32
    %286 = vector.broadcast %cst_114 : f32 to vector<8x128xf32>
    %287 = arith.addf %285, %286 : vector<8x128xf32>
    %288 = arith.mulf %277, %250 : vector<8x128xf32>
    %289 = arith.mulf %269, %279 : vector<8x128xf32>
    %290 = arith.addf %288, %289 : vector<8x128xf32>
    %291 = math.tanh %290 : vector<8x128xf32>
    %292 = arith.mulf %287, %291 : vector<8x128xf32>
    %293 = arith.index_cast %c6_i32 : i32 to index
    %c0_115 = arith.constant 0 : index
    %c0_116 = arith.constant 0 : index
    %294 = vector.load %arg14[%293, %c0_115, %c0_116] : memref<8x8x128xf32, #tpu.memory_space<vmem>>, vector<1x8x128xf32>
    %295 = vector.shape_cast %294 : vector<1x8x128xf32> to vector<8x128xf32>
    %296 = vector.shape_cast %292 : vector<8x128xf32> to vector<1x8x128xf32>
    tpu.vector_store %arg14[%293, %c0_115, %c0_116], %296 {strides = array<i32>} : memref<8x8x128xf32, #tpu.memory_space<vmem>>, vector<1x8x128xf32>,
    %c7_i32 = arith.constant 7 : i32
    %297 = arith.index_cast %c7_i32 : i32 to index
    %c0_117 = arith.constant 0 : index
    %c0_118 = arith.constant 0 : index
    %298 = vector.load %arg15[%297, %c0_117, %c0_118] : memref<8x8x512xf32, #tpu.memory_space<vmem>>, vector<1x8x512xf32>
    %299 = vector.shape_cast %298 : vector<1x8x512xf32> to vector<8x512xf32>
    %cst_119 = arith.constant dense<0.000000e+00> : vector<8x512xf32>
    %300 = tpu.matmul %292, %4, %cst_119 {dimension_numbers = #tpu.dot_dimension_numbers<[1], [0], [0], [1], [0, 0, 1, 1], [], []>} : vector<8x128xf32>, vector<128x512xf32>, vector<8x512xf32> -> vector<8x512xf32>
    %301 = arith.addf %299, %300 : vector<8x512xf32>
    %302 = vector.extract_strided_slice %301 {offsets = [0, 0], sizes = [8, 128], strides = [1, 1]} : vector<8x512xf32> to vector<8x128xf32>
    %cst_120 = arith.constant 5.000000e-01 : f32
    %303 = vector.broadcast %cst_120 : f32 to vector<8x128xf32>
    %304 = arith.mulf %303, %302 : vector<8x128xf32>
    %305 = math.tanh %304 : vector<8x128xf32>
    %cst_121 = arith.constant 5.000000e-01 : f32
    %306 = vector.broadcast %cst_121 : f32 to vector<8x128xf32>
    %307 = arith.mulf %306, %305 : vector<8x128xf32>
    %cst_122 = arith.constant 5.000000e-01 : f32
    %308 = vector.broadcast %cst_122 : f32 to vector<8x128xf32>
    %309 = arith.addf %307, %308 : vector<8x128xf32>
    %310 = vector.extract_strided_slice %301 {offsets = [0, 128], sizes = [8, 128], strides = [1, 1]} : vector<8x512xf32> to vector<8x128xf32>
    %cst_123 = arith.constant 5.000000e-01 : f32
    %311 = vector.broadcast %cst_123 : f32 to vector<8x128xf32>
    %312 = arith.mulf %311, %310 : vector<8x128xf32>
    %313 = math.tanh %312 : vector<8x128xf32>
    %cst_124 = arith.constant 5.000000e-01 : f32
    %314 = vector.broadcast %cst_124 : f32 to vector<8x128xf32>
    %315 = arith.mulf %314, %313 : vector<8x128xf32>
    %cst_125 = arith.constant 5.000000e-01 : f32
    %316 = vector.broadcast %cst_125 : f32 to vector<8x128xf32>
    %317 = arith.addf %315, %316 : vector<8x128xf32>
    %318 = vector.extract_strided_slice %301 {offsets = [0, 256], sizes = [8, 128], strides = [1, 1]} : vector<8x512xf32> to vector<8x128xf32>
    %319 = math.tanh %318 : vector<8x128xf32>
    %320 = vector.extract_strided_slice %301 {offsets = [0, 384], sizes = [8, 128], strides = [1, 1]} : vector<8x512xf32> to vector<8x128xf32>
    %cst_126 = arith.constant 5.000000e-01 : f32
    %321 = vector.broadcast %cst_126 : f32 to vector<8x128xf32>
    %322 = arith.mulf %321, %320 : vector<8x128xf32>
    %323 = math.tanh %322 : vector<8x128xf32>
    %cst_127 = arith.constant 5.000000e-01 : f32
    %324 = vector.broadcast %cst_127 : f32 to vector<8x128xf32>
    %325 = arith.mulf %324, %323 : vector<8x128xf32>
    %cst_128 = arith.constant 5.000000e-01 : f32
    %326 = vector.broadcast %cst_128 : f32 to vector<8x128xf32>
    %327 = arith.addf %325, %326 : vector<8x128xf32>
    %328 = arith.mulf %317, %290 : vector<8x128xf32>
    %329 = arith.mulf %309, %319 : vector<8x128xf32>
    %330 = arith.addf %328, %329 : vector<8x128xf32>
    %331 = math.tanh %330 : vector<8x128xf32>
    %332 = arith.mulf %327, %331 : vector<8x128xf32>
    %333 = arith.index_cast %c7_i32 : i32 to index
    %c0_129 = arith.constant 0 : index
    %c0_130 = arith.constant 0 : index
    %334 = vector.load %arg14[%333, %c0_129, %c0_130] : memref<8x8x128xf32, #tpu.memory_space<vmem>>, vector<1x8x128xf32>
    %335 = vector.shape_cast %334 : vector<1x8x128xf32> to vector<8x128xf32>
    %336 = vector.shape_cast %332 : vector<8x128xf32> to vector<1x8x128xf32>
    tpu.vector_store %arg14[%333, %c0_129, %c0_130], %336 {strides = array<i32>} : memref<8x8x128xf32, #tpu.memory_space<vmem>>, vector<1x8x128xf32>,
    %c8_i32 = arith.constant 8 : i32
    %c0_131 = arith.constant 0 : index
    %c0_132 = arith.constant 0 : index
    %c0_133 = arith.constant 0 : index
    %337 = vector.load %arg12[%c0_131, %c0_132, %c0_133] : memref<2x8x128xf32, #tpu.memory_space<vmem>>, vector<1x8x128xf32>
    %338 = vector.shape_cast %337 : vector<1x8x128xf32> to vector<8x128xf32>
    %339 = vector.shape_cast %332 : vector<8x128xf32> to vector<1x8x128xf32>
    tpu.vector_store %arg12[%c0_131, %c0_132, %c0_133], %339 {strides = array<i32>} : memref<2x8x128xf32, #tpu.memory_space<vmem>>, vector<1x8x128xf32>,
    %c0_134 = arith.constant 0 : index
    %c0_135 = arith.constant 0 : index
    %c0_136 = arith.constant 0 : index
    %340 = vector.load %arg13[%c0_134, %c0_135, %c0_136] : memref<2x8x128xf32, #tpu.memory_space<vmem>>, vector<1x8x128xf32>
    %341 = vector.shape_cast %340 : vector<1x8x128xf32> to vector<8x128xf32>
    %342 = vector.shape_cast %330 : vector<8x128xf32> to vector<1x8x128xf32>
    tpu.vector_store %arg13[%c0_134, %c0_135, %c0_136], %342 {strides = array<i32>} : memref<2x8x128xf32, #tpu.memory_space<vmem>>, vector<1x8x128xf32>,
    %c0_137 = arith.constant 0 : index
    %c0_138 = arith.constant 0 : index
    %343 = vector.load %arg6[%c0_137, %c0_138] : memref<128x512xf32, #tpu.memory_space<vmem>>, vector<128x512xf32>
    %c0_139 = arith.constant 0 : index
    %c0_140 = arith.constant 0 : index
    %344 = vector.load %arg7[%c0_139, %c0_140] : memref<128x512xf32, #tpu.memory_space<vmem>>, vector<128x512xf32>
    %c0_141 = arith.constant 0 : index
    %c0_142 = arith.constant 0 : index
    %345 = vector.load %arg8[%c0_141, %c0_142] : memref<1x512xf32, #tpu.memory_space<vmem>>, vector<1x512xf32>
    %c0_143 = arith.constant 0 : index
    %c0_144 = arith.constant 0 : index
    %c0_145 = arith.constant 0 : index
    %346 = vector.load %arg14[%c0_143, %c0_144, %c0_145] : memref<8x8x128xf32, #tpu.memory_space<vmem>>, vector<8x8x128xf32>
    %347 = vector.shape_cast %346 : vector<8x8x128xf32> to vector<64x128xf32>
    %cst_146 = arith.constant dense<0.000000e+00> : vector<64x512xf32>
    %348 = tpu.matmul %347, %343, %cst_146 {dimension_numbers = #tpu.dot_dimension_numbers<[1], [0], [0], [1], [0, 0, 1, 1], [], []>} : vector<64x128xf32>, vector<128x512xf32>, vector<64x512xf32> -> vector<64x512xf32>
    %349 = vector.broadcast %345 : vector<1x512xf32> to vector<64x512xf32>
    %350 = arith.addf %348, %349 : vector<64x512xf32>
    %351 = vector.shape_cast %350 : vector<64x512xf32> to vector<8x8x512xf32>
    %c0_147 = arith.constant 0 : index
    %c0_148 = arith.constant 0 : index
    %c0_149 = arith.constant 0 : index
    %352 = vector.load %arg15[%c0_147, %c0_148, %c0_149] : memref<8x8x512xf32, #tpu.memory_space<vmem>>, vector<8x8x512xf32>
    tpu.vector_store %arg15[%c0_147, %c0_148, %c0_149], %351 {strides = array<i32>} : memref<8x8x512xf32, #tpu.memory_space<vmem>>, vector<8x8x512xf32>,
    %c1 = arith.constant 1 : index
    %c0_150 = arith.constant 0 : index
    %c0_151 = arith.constant 0 : index
    %353 = vector.load %arg12[%c1, %c0_150, %c0_151] : memref<2x8x128xf32, #tpu.memory_space<vmem>>, vector<1x8x128xf32>
    %354 = vector.shape_cast %353 : vector<1x8x128xf32> to vector<8x128xf32>
    %c1_152 = arith.constant 1 : index
    %c0_153 = arith.constant 0 : index
    %c0_154 = arith.constant 0 : index
    %355 = vector.load %arg13[%c1_152, %c0_153, %c0_154] : memref<2x8x128xf32, #tpu.memory_space<vmem>>, vector<1x8x128xf32>
    %356 = vector.shape_cast %355 : vector<1x8x128xf32> to vector<8x128xf32>
    %c0_i32_155 = arith.constant 0 : i32
    %357 = arith.index_cast %c0_i32_155 : i32 to index
    %c0_156 = arith.constant 0 : index
    %c0_157 = arith.constant 0 : index
    %358 = vector.load %arg15[%357, %c0_156, %c0_157] : memref<8x8x512xf32, #tpu.memory_space<vmem>>, vector<1x8x512xf32>
    %359 = vector.shape_cast %358 : vector<1x8x512xf32> to vector<8x512xf32>
    %cst_158 = arith.constant dense<0.000000e+00> : vector<8x512xf32>
    %360 = tpu.matmul %354, %344, %cst_158 {dimension_numbers = #tpu.dot_dimension_numbers<[1], [0], [0], [1], [0, 0, 1, 1], [], []>} : vector<8x128xf32>, vector<128x512xf32>, vector<8x512xf32> -> vector<8x512xf32>
    %361 = arith.addf %359, %360 : vector<8x512xf32>
    %362 = vector.extract_strided_slice %361 {offsets = [0, 0], sizes = [8, 128], strides = [1, 1]} : vector<8x512xf32> to vector<8x128xf32>
    %cst_159 = arith.constant 5.000000e-01 : f32
    %363 = vector.broadcast %cst_159 : f32 to vector<8x128xf32>
    %364 = arith.mulf %363, %362 : vector<8x128xf32>
    %365 = math.tanh %364 : vector<8x128xf32>
    %cst_160 = arith.constant 5.000000e-01 : f32
    %366 = vector.broadcast %cst_160 : f32 to vector<8x128xf32>
    %367 = arith.mulf %366, %365 : vector<8x128xf32>
    %cst_161 = arith.constant 5.000000e-01 : f32
    %368 = vector.broadcast %cst_161 : f32 to vector<8x128xf32>
    %369 = arith.addf %367, %368 : vector<8x128xf32>
    %370 = vector.extract_strided_slice %361 {offsets = [0, 128], sizes = [8, 128], strides = [1, 1]} : vector<8x512xf32> to vector<8x128xf32>
    %cst_162 = arith.constant 5.000000e-01 : f32
    %371 = vector.broadcast %cst_162 : f32 to vector<8x128xf32>
    %372 = arith.mulf %371, %370 : vector<8x128xf32>
    %373 = math.tanh %372 : vector<8x128xf32>
    %cst_163 = arith.constant 5.000000e-01 : f32
    %374 = vector.broadcast %cst_163 : f32 to vector<8x128xf32>
    %375 = arith.mulf %374, %373 : vector<8x128xf32>
    %cst_164 = arith.constant 5.000000e-01 : f32
    %376 = vector.broadcast %cst_164 : f32 to vector<8x128xf32>
    %377 = arith.addf %375, %376 : vector<8x128xf32>
    %378 = vector.extract_strided_slice %361 {offsets = [0, 256], sizes = [8, 128], strides = [1, 1]} : vector<8x512xf32> to vector<8x128xf32>
    %379 = math.tanh %378 : vector<8x128xf32>
    %380 = vector.extract_strided_slice %361 {offsets = [0, 384], sizes = [8, 128], strides = [1, 1]} : vector<8x512xf32> to vector<8x128xf32>
    %cst_165 = arith.constant 5.000000e-01 : f32
    %381 = vector.broadcast %cst_165 : f32 to vector<8x128xf32>
    %382 = arith.mulf %381, %380 : vector<8x128xf32>
    %383 = math.tanh %382 : vector<8x128xf32>
    %cst_166 = arith.constant 5.000000e-01 : f32
    %384 = vector.broadcast %cst_166 : f32 to vector<8x128xf32>
    %385 = arith.mulf %384, %383 : vector<8x128xf32>
    %cst_167 = arith.constant 5.000000e-01 : f32
    %386 = vector.broadcast %cst_167 : f32 to vector<8x128xf32>
    %387 = arith.addf %385, %386 : vector<8x128xf32>
    %388 = arith.mulf %377, %356 : vector<8x128xf32>
    %389 = arith.mulf %369, %379 : vector<8x128xf32>
    %390 = arith.addf %388, %389 : vector<8x128xf32>
    %391 = math.tanh %390 : vector<8x128xf32>
    %392 = arith.mulf %387, %391 : vector<8x128xf32>
    %393 = arith.index_cast %c0_i32_155 : i32 to index
    %c0_168 = arith.constant 0 : index
    %c0_169 = arith.constant 0 : index
    %394 = vector.load %arg14[%393, %c0_168, %c0_169] : memref<8x8x128xf32, #tpu.memory_space<vmem>>, vector<1x8x128xf32>
    %395 = vector.shape_cast %394 : vector<1x8x128xf32> to vector<8x128xf32>
    %396 = vector.shape_cast %392 : vector<8x128xf32> to vector<1x8x128xf32>
    tpu.vector_store %arg14[%393, %c0_168, %c0_169], %396 {strides = array<i32>} : memref<8x8x128xf32, #tpu.memory_space<vmem>>, vector<1x8x128xf32>,
    %c1_i32_170 = arith.constant 1 : i32
    %397 = arith.index_cast %c1_i32_170 : i32 to index
    %c0_171 = arith.constant 0 : index
    %c0_172 = arith.constant 0 : index
    %398 = vector.load %arg15[%397, %c0_171, %c0_172] : memref<8x8x512xf32, #tpu.memory_space<vmem>>, vector<1x8x512xf32>
    %399 = vector.shape_cast %398 : vector<1x8x512xf32> to vector<8x512xf32>
    %cst_173 = arith.constant dense<0.000000e+00> : vector<8x512xf32>
    %400 = tpu.matmul %392, %344, %cst_173 {dimension_numbers = #tpu.dot_dimension_numbers<[1], [0], [0], [1], [0, 0, 1, 1], [], []>} : vector<8x128xf32>, vector<128x512xf32>, vector<8x512xf32> -> vector<8x512xf32>
    %401 = arith.addf %399, %400 : vector<8x512xf32>
    %402 = vector.extract_strided_slice %401 {offsets = [0, 0], sizes = [8, 128], strides = [1, 1]} : vector<8x512xf32> to vector<8x128xf32>
    %cst_174 = arith.constant 5.000000e-01 : f32
    %403 = vector.broadcast %cst_174 : f32 to vector<8x128xf32>
    %404 = arith.mulf %403, %402 : vector<8x128xf32>
    %405 = math.tanh %404 : vector<8x128xf32>
    %cst_175 = arith.constant 5.000000e-01 : f32
    %406 = vector.broadcast %cst_175 : f32 to vector<8x128xf32>
    %407 = arith.mulf %406, %405 : vector<8x128xf32>
    %cst_176 = arith.constant 5.000000e-01 : f32
    %408 = vector.broadcast %cst_176 : f32 to vector<8x128xf32>
    %409 = arith.addf %407, %408 : vector<8x128xf32>
    %410 = vector.extract_strided_slice %401 {offsets = [0, 128], sizes = [8, 128], strides = [1, 1]} : vector<8x512xf32> to vector<8x128xf32>
    %cst_177 = arith.constant 5.000000e-01 : f32
    %411 = vector.broadcast %cst_177 : f32 to vector<8x128xf32>
    %412 = arith.mulf %411, %410 : vector<8x128xf32>
    %413 = math.tanh %412 : vector<8x128xf32>
    %cst_178 = arith.constant 5.000000e-01 : f32
    %414 = vector.broadcast %cst_178 : f32 to vector<8x128xf32>
    %415 = arith.mulf %414, %413 : vector<8x128xf32>
    %cst_179 = arith.constant 5.000000e-01 : f32
    %416 = vector.broadcast %cst_179 : f32 to vector<8x128xf32>
    %417 = arith.addf %415, %416 : vector<8x128xf32>
    %418 = vector.extract_strided_slice %401 {offsets = [0, 256], sizes = [8, 128], strides = [1, 1]} : vector<8x512xf32> to vector<8x128xf32>
    %419 = math.tanh %418 : vector<8x128xf32>
    %420 = vector.extract_strided_slice %401 {offsets = [0, 384], sizes = [8, 128], strides = [1, 1]} : vector<8x512xf32> to vector<8x128xf32>
    %cst_180 = arith.constant 5.000000e-01 : f32
    %421 = vector.broadcast %cst_180 : f32 to vector<8x128xf32>
    %422 = arith.mulf %421, %420 : vector<8x128xf32>
    %423 = math.tanh %422 : vector<8x128xf32>
    %cst_181 = arith.constant 5.000000e-01 : f32
    %424 = vector.broadcast %cst_181 : f32 to vector<8x128xf32>
    %425 = arith.mulf %424, %423 : vector<8x128xf32>
    %cst_182 = arith.constant 5.000000e-01 : f32
    %426 = vector.broadcast %cst_182 : f32 to vector<8x128xf32>
    %427 = arith.addf %425, %426 : vector<8x128xf32>
    %428 = arith.mulf %417, %390 : vector<8x128xf32>
    %429 = arith.mulf %409, %419 : vector<8x128xf32>
    %430 = arith.addf %428, %429 : vector<8x128xf32>
    %431 = math.tanh %430 : vector<8x128xf32>
    %432 = arith.mulf %427, %431 : vector<8x128xf32>
    %433 = arith.index_cast %c1_i32_170 : i32 to index
    %c0_183 = arith.constant 0 : index
    %c0_184 = arith.constant 0 : index
    %434 = vector.load %arg14[%433, %c0_183, %c0_184] : memref<8x8x128xf32, #tpu.memory_space<vmem>>, vector<1x8x128xf32>
    %435 = vector.shape_cast %434 : vector<1x8x128xf32> to vector<8x128xf32>
    %436 = vector.shape_cast %432 : vector<8x128xf32> to vector<1x8x128xf32>
    tpu.vector_store %arg14[%433, %c0_183, %c0_184], %436 {strides = array<i32>} : memref<8x8x128xf32, #tpu.memory_space<vmem>>, vector<1x8x128xf32>,
    %c2_i32_185 = arith.constant 2 : i32
    %437 = arith.index_cast %c2_i32_185 : i32 to index
    %c0_186 = arith.constant 0 : index
    %c0_187 = arith.constant 0 : index
    %438 = vector.load %arg15[%437, %c0_186, %c0_187] : memref<8x8x512xf32, #tpu.memory_space<vmem>>, vector<1x8x512xf32>
    %439 = vector.shape_cast %438 : vector<1x8x512xf32> to vector<8x512xf32>
    %cst_188 = arith.constant dense<0.000000e+00> : vector<8x512xf32>
    %440 = tpu.matmul %432, %344, %cst_188 {dimension_numbers = #tpu.dot_dimension_numbers<[1], [0], [0], [1], [0, 0, 1, 1], [], []>} : vector<8x128xf32>, vector<128x512xf32>, vector<8x512xf32> -> vector<8x512xf32>
    %441 = arith.addf %439, %440 : vector<8x512xf32>
    %442 = vector.extract_strided_slice %441 {offsets = [0, 0], sizes = [8, 128], strides = [1, 1]} : vector<8x512xf32> to vector<8x128xf32>
    %cst_189 = arith.constant 5.000000e-01 : f32
    %443 = vector.broadcast %cst_189 : f32 to vector<8x128xf32>
    %444 = arith.mulf %443, %442 : vector<8x128xf32>
    %445 = math.tanh %444 : vector<8x128xf32>
    %cst_190 = arith.constant 5.000000e-01 : f32
    %446 = vector.broadcast %cst_190 : f32 to vector<8x128xf32>
    %447 = arith.mulf %446, %445 : vector<8x128xf32>
    %cst_191 = arith.constant 5.000000e-01 : f32
    %448 = vector.broadcast %cst_191 : f32 to vector<8x128xf32>
    %449 = arith.addf %447, %448 : vector<8x128xf32>
    %450 = vector.extract_strided_slice %441 {offsets = [0, 128], sizes = [8, 128], strides = [1, 1]} : vector<8x512xf32> to vector<8x128xf32>
    %cst_192 = arith.constant 5.000000e-01 : f32
    %451 = vector.broadcast %cst_192 : f32 to vector<8x128xf32>
    %452 = arith.mulf %451, %450 : vector<8x128xf32>
    %453 = math.tanh %452 : vector<8x128xf32>
    %cst_193 = arith.constant 5.000000e-01 : f32
    %454 = vector.broadcast %cst_193 : f32 to vector<8x128xf32>
    %455 = arith.mulf %454, %453 : vector<8x128xf32>
    %cst_194 = arith.constant 5.000000e-01 : f32
    %456 = vector.broadcast %cst_194 : f32 to vector<8x128xf32>
    %457 = arith.addf %455, %456 : vector<8x128xf32>
    %458 = vector.extract_strided_slice %441 {offsets = [0, 256], sizes = [8, 128], strides = [1, 1]} : vector<8x512xf32> to vector<8x128xf32>
    %459 = math.tanh %458 : vector<8x128xf32>
    %460 = vector.extract_strided_slice %441 {offsets = [0, 384], sizes = [8, 128], strides = [1, 1]} : vector<8x512xf32> to vector<8x128xf32>
    %cst_195 = arith.constant 5.000000e-01 : f32
    %461 = vector.broadcast %cst_195 : f32 to vector<8x128xf32>
    %462 = arith.mulf %461, %460 : vector<8x128xf32>
    %463 = math.tanh %462 : vector<8x128xf32>
    %cst_196 = arith.constant 5.000000e-01 : f32
    %464 = vector.broadcast %cst_196 : f32 to vector<8x128xf32>
    %465 = arith.mulf %464, %463 : vector<8x128xf32>
    %cst_197 = arith.constant 5.000000e-01 : f32
    %466 = vector.broadcast %cst_197 : f32 to vector<8x128xf32>
    %467 = arith.addf %465, %466 : vector<8x128xf32>
    %468 = arith.mulf %457, %430 : vector<8x128xf32>
    %469 = arith.mulf %449, %459 : vector<8x128xf32>
    %470 = arith.addf %468, %469 : vector<8x128xf32>
    %471 = math.tanh %470 : vector<8x128xf32>
    %472 = arith.mulf %467, %471 : vector<8x128xf32>
    %473 = arith.index_cast %c2_i32_185 : i32 to index
    %c0_198 = arith.constant 0 : index
    %c0_199 = arith.constant 0 : index
    %474 = vector.load %arg14[%473, %c0_198, %c0_199] : memref<8x8x128xf32, #tpu.memory_space<vmem>>, vector<1x8x128xf32>
    %475 = vector.shape_cast %474 : vector<1x8x128xf32> to vector<8x128xf32>
    %476 = vector.shape_cast %472 : vector<8x128xf32> to vector<1x8x128xf32>
    tpu.vector_store %arg14[%473, %c0_198, %c0_199], %476 {strides = array<i32>} : memref<8x8x128xf32, #tpu.memory_space<vmem>>, vector<1x8x128xf32>,
    %c3_i32_200 = arith.constant 3 : i32
    %477 = arith.index_cast %c3_i32_200 : i32 to index
    %c0_201 = arith.constant 0 : index
    %c0_202 = arith.constant 0 : index
    %478 = vector.load %arg15[%477, %c0_201, %c0_202] : memref<8x8x512xf32, #tpu.memory_space<vmem>>, vector<1x8x512xf32>
    %479 = vector.shape_cast %478 : vector<1x8x512xf32> to vector<8x512xf32>
    %cst_203 = arith.constant dense<0.000000e+00> : vector<8x512xf32>
    %480 = tpu.matmul %472, %344, %cst_203 {dimension_numbers = #tpu.dot_dimension_numbers<[1], [0], [0], [1], [0, 0, 1, 1], [], []>} : vector<8x128xf32>, vector<128x512xf32>, vector<8x512xf32> -> vector<8x512xf32>
    %481 = arith.addf %479, %480 : vector<8x512xf32>
    %482 = vector.extract_strided_slice %481 {offsets = [0, 0], sizes = [8, 128], strides = [1, 1]} : vector<8x512xf32> to vector<8x128xf32>
    %cst_204 = arith.constant 5.000000e-01 : f32
    %483 = vector.broadcast %cst_204 : f32 to vector<8x128xf32>
    %484 = arith.mulf %483, %482 : vector<8x128xf32>
    %485 = math.tanh %484 : vector<8x128xf32>
    %cst_205 = arith.constant 5.000000e-01 : f32
    %486 = vector.broadcast %cst_205 : f32 to vector<8x128xf32>
    %487 = arith.mulf %486, %485 : vector<8x128xf32>
    %cst_206 = arith.constant 5.000000e-01 : f32
    %488 = vector.broadcast %cst_206 : f32 to vector<8x128xf32>
    %489 = arith.addf %487, %488 : vector<8x128xf32>
    %490 = vector.extract_strided_slice %481 {offsets = [0, 128], sizes = [8, 128], strides = [1, 1]} : vector<8x512xf32> to vector<8x128xf32>
    %cst_207 = arith.constant 5.000000e-01 : f32
    %491 = vector.broadcast %cst_207 : f32 to vector<8x128xf32>
    %492 = arith.mulf %491, %490 : vector<8x128xf32>
    %493 = math.tanh %492 : vector<8x128xf32>
    %cst_208 = arith.constant 5.000000e-01 : f32
    %494 = vector.broadcast %cst_208 : f32 to vector<8x128xf32>
    %495 = arith.mulf %494, %493 : vector<8x128xf32>
    %cst_209 = arith.constant 5.000000e-01 : f32
    %496 = vector.broadcast %cst_209 : f32 to vector<8x128xf32>
    %497 = arith.addf %495, %496 : vector<8x128xf32>
    %498 = vector.extract_strided_slice %481 {offsets = [0, 256], sizes = [8, 128], strides = [1, 1]} : vector<8x512xf32> to vector<8x128xf32>
    %499 = math.tanh %498 : vector<8x128xf32>
    %500 = vector.extract_strided_slice %481 {offsets = [0, 384], sizes = [8, 128], strides = [1, 1]} : vector<8x512xf32> to vector<8x128xf32>
    %cst_210 = arith.constant 5.000000e-01 : f32
    %501 = vector.broadcast %cst_210 : f32 to vector<8x128xf32>
    %502 = arith.mulf %501, %500 : vector<8x128xf32>
    %503 = math.tanh %502 : vector<8x128xf32>
    %cst_211 = arith.constant 5.000000e-01 : f32
    %504 = vector.broadcast %cst_211 : f32 to vector<8x128xf32>
    %505 = arith.mulf %504, %503 : vector<8x128xf32>
    %cst_212 = arith.constant 5.000000e-01 : f32
    %506 = vector.broadcast %cst_212 : f32 to vector<8x128xf32>
    %507 = arith.addf %505, %506 : vector<8x128xf32>
    %508 = arith.mulf %497, %470 : vector<8x128xf32>
    %509 = arith.mulf %489, %499 : vector<8x128xf32>
    %510 = arith.addf %508, %509 : vector<8x128xf32>
    %511 = math.tanh %510 : vector<8x128xf32>
    %512 = arith.mulf %507, %511 : vector<8x128xf32>
    %513 = arith.index_cast %c3_i32_200 : i32 to index
    %c0_213 = arith.constant 0 : index
    %c0_214 = arith.constant 0 : index
    %514 = vector.load %arg14[%513, %c0_213, %c0_214] : memref<8x8x128xf32, #tpu.memory_space<vmem>>, vector<1x8x128xf32>
    %515 = vector.shape_cast %514 : vector<1x8x128xf32> to vector<8x128xf32>
    %516 = vector.shape_cast %512 : vector<8x128xf32> to vector<1x8x128xf32>
    tpu.vector_store %arg14[%513, %c0_213, %c0_214], %516 {strides = array<i32>} : memref<8x8x128xf32, #tpu.memory_space<vmem>>, vector<1x8x128xf32>,
    %c4_i32_215 = arith.constant 4 : i32
    %517 = arith.index_cast %c4_i32_215 : i32 to index
    %c0_216 = arith.constant 0 : index
    %c0_217 = arith.constant 0 : index
    %518 = vector.load %arg15[%517, %c0_216, %c0_217] : memref<8x8x512xf32, #tpu.memory_space<vmem>>, vector<1x8x512xf32>
    %519 = vector.shape_cast %518 : vector<1x8x512xf32> to vector<8x512xf32>
    %cst_218 = arith.constant dense<0.000000e+00> : vector<8x512xf32>
    %520 = tpu.matmul %512, %344, %cst_218 {dimension_numbers = #tpu.dot_dimension_numbers<[1], [0], [0], [1], [0, 0, 1, 1], [], []>} : vector<8x128xf32>, vector<128x512xf32>, vector<8x512xf32> -> vector<8x512xf32>
    %521 = arith.addf %519, %520 : vector<8x512xf32>
    %522 = vector.extract_strided_slice %521 {offsets = [0, 0], sizes = [8, 128], strides = [1, 1]} : vector<8x512xf32> to vector<8x128xf32>
    %cst_219 = arith.constant 5.000000e-01 : f32
    %523 = vector.broadcast %cst_219 : f32 to vector<8x128xf32>
    %524 = arith.mulf %523, %522 : vector<8x128xf32>
    %525 = math.tanh %524 : vector<8x128xf32>
    %cst_220 = arith.constant 5.000000e-01 : f32
    %526 = vector.broadcast %cst_220 : f32 to vector<8x128xf32>
    %527 = arith.mulf %526, %525 : vector<8x128xf32>
    %cst_221 = arith.constant 5.000000e-01 : f32
    %528 = vector.broadcast %cst_221 : f32 to vector<8x128xf32>
    %529 = arith.addf %527, %528 : vector<8x128xf32>
    %530 = vector.extract_strided_slice %521 {offsets = [0, 128], sizes = [8, 128], strides = [1, 1]} : vector<8x512xf32> to vector<8x128xf32>
    %cst_222 = arith.constant 5.000000e-01 : f32
    %531 = vector.broadcast %cst_222 : f32 to vector<8x128xf32>
    %532 = arith.mulf %531, %530 : vector<8x128xf32>
    %533 = math.tanh %532 : vector<8x128xf32>
    %cst_223 = arith.constant 5.000000e-01 : f32
    %534 = vector.broadcast %cst_223 : f32 to vector<8x128xf32>
    %535 = arith.mulf %534, %533 : vector<8x128xf32>
    %cst_224 = arith.constant 5.000000e-01 : f32
    %536 = vector.broadcast %cst_224 : f32 to vector<8x128xf32>
    %537 = arith.addf %535, %536 : vector<8x128xf32>
    %538 = vector.extract_strided_slice %521 {offsets = [0, 256], sizes = [8, 128], strides = [1, 1]} : vector<8x512xf32> to vector<8x128xf32>
    %539 = math.tanh %538 : vector<8x128xf32>
    %540 = vector.extract_strided_slice %521 {offsets = [0, 384], sizes = [8, 128], strides = [1, 1]} : vector<8x512xf32> to vector<8x128xf32>
    %cst_225 = arith.constant 5.000000e-01 : f32
    %541 = vector.broadcast %cst_225 : f32 to vector<8x128xf32>
    %542 = arith.mulf %541, %540 : vector<8x128xf32>
    %543 = math.tanh %542 : vector<8x128xf32>
    %cst_226 = arith.constant 5.000000e-01 : f32
    %544 = vector.broadcast %cst_226 : f32 to vector<8x128xf32>
    %545 = arith.mulf %544, %543 : vector<8x128xf32>
    %cst_227 = arith.constant 5.000000e-01 : f32
    %546 = vector.broadcast %cst_227 : f32 to vector<8x128xf32>
    %547 = arith.addf %545, %546 : vector<8x128xf32>
    %548 = arith.mulf %537, %510 : vector<8x128xf32>
    %549 = arith.mulf %529, %539 : vector<8x128xf32>
    %550 = arith.addf %548, %549 : vector<8x128xf32>
    %551 = math.tanh %550 : vector<8x128xf32>
    %552 = arith.mulf %547, %551 : vector<8x128xf32>
    %553 = arith.index_cast %c4_i32_215 : i32 to index
    %c0_228 = arith.constant 0 : index
    %c0_229 = arith.constant 0 : index
    %554 = vector.load %arg14[%553, %c0_228, %c0_229] : memref<8x8x128xf32, #tpu.memory_space<vmem>>, vector<1x8x128xf32>
    %555 = vector.shape_cast %554 : vector<1x8x128xf32> to vector<8x128xf32>
    %556 = vector.shape_cast %552 : vector<8x128xf32> to vector<1x8x128xf32>
    tpu.vector_store %arg14[%553, %c0_228, %c0_229], %556 {strides = array<i32>} : memref<8x8x128xf32, #tpu.memory_space<vmem>>, vector<1x8x128xf32>,
    %c5_i32_230 = arith.constant 5 : i32
    %557 = arith.index_cast %c5_i32_230 : i32 to index
    %c0_231 = arith.constant 0 : index
    %c0_232 = arith.constant 0 : index
    %558 = vector.load %arg15[%557, %c0_231, %c0_232] : memref<8x8x512xf32, #tpu.memory_space<vmem>>, vector<1x8x512xf32>
    %559 = vector.shape_cast %558 : vector<1x8x512xf32> to vector<8x512xf32>
    %cst_233 = arith.constant dense<0.000000e+00> : vector<8x512xf32>
    %560 = tpu.matmul %552, %344, %cst_233 {dimension_numbers = #tpu.dot_dimension_numbers<[1], [0], [0], [1], [0, 0, 1, 1], [], []>} : vector<8x128xf32>, vector<128x512xf32>, vector<8x512xf32> -> vector<8x512xf32>
    %561 = arith.addf %559, %560 : vector<8x512xf32>
    %562 = vector.extract_strided_slice %561 {offsets = [0, 0], sizes = [8, 128], strides = [1, 1]} : vector<8x512xf32> to vector<8x128xf32>
    %cst_234 = arith.constant 5.000000e-01 : f32
    %563 = vector.broadcast %cst_234 : f32 to vector<8x128xf32>
    %564 = arith.mulf %563, %562 : vector<8x128xf32>
    %565 = math.tanh %564 : vector<8x128xf32>
    %cst_235 = arith.constant 5.000000e-01 : f32
    %566 = vector.broadcast %cst_235 : f32 to vector<8x128xf32>
    %567 = arith.mulf %566, %565 : vector<8x128xf32>
    %cst_236 = arith.constant 5.000000e-01 : f32
    %568 = vector.broadcast %cst_236 : f32 to vector<8x128xf32>
    %569 = arith.addf %567, %568 : vector<8x128xf32>
    %570 = vector.extract_strided_slice %561 {offsets = [0, 128], sizes = [8, 128], strides = [1, 1]} : vector<8x512xf32> to vector<8x128xf32>
    %cst_237 = arith.constant 5.000000e-01 : f32
    %571 = vector.broadcast %cst_237 : f32 to vector<8x128xf32>
    %572 = arith.mulf %571, %570 : vector<8x128xf32>
    %573 = math.tanh %572 : vector<8x128xf32>
    %cst_238 = arith.constant 5.000000e-01 : f32
    %574 = vector.broadcast %cst_238 : f32 to vector<8x128xf32>
    %575 = arith.mulf %574, %573 : vector<8x128xf32>
    %cst_239 = arith.constant 5.000000e-01 : f32
    %576 = vector.broadcast %cst_239 : f32 to vector<8x128xf32>
    %577 = arith.addf %575, %576 : vector<8x128xf32>
    %578 = vector.extract_strided_slice %561 {offsets = [0, 256], sizes = [8, 128], strides = [1, 1]} : vector<8x512xf32> to vector<8x128xf32>
    %579 = math.tanh %578 : vector<8x128xf32>
    %580 = vector.extract_strided_slice %561 {offsets = [0, 384], sizes = [8, 128], strides = [1, 1]} : vector<8x512xf32> to vector<8x128xf32>
    %cst_240 = arith.constant 5.000000e-01 : f32
    %581 = vector.broadcast %cst_240 : f32 to vector<8x128xf32>
    %582 = arith.mulf %581, %580 : vector<8x128xf32>
    %583 = math.tanh %582 : vector<8x128xf32>
    %cst_241 = arith.constant 5.000000e-01 : f32
    %584 = vector.broadcast %cst_241 : f32 to vector<8x128xf32>
    %585 = arith.mulf %584, %583 : vector<8x128xf32>
    %cst_242 = arith.constant 5.000000e-01 : f32
    %586 = vector.broadcast %cst_242 : f32 to vector<8x128xf32>
    %587 = arith.addf %585, %586 : vector<8x128xf32>
    %588 = arith.mulf %577, %550 : vector<8x128xf32>
    %589 = arith.mulf %569, %579 : vector<8x128xf32>
    %590 = arith.addf %588, %589 : vector<8x128xf32>
    %591 = math.tanh %590 : vector<8x128xf32>
    %592 = arith.mulf %587, %591 : vector<8x128xf32>
    %593 = arith.index_cast %c5_i32_230 : i32 to index
    %c0_243 = arith.constant 0 : index
    %c0_244 = arith.constant 0 : index
    %594 = vector.load %arg14[%593, %c0_243, %c0_244] : memref<8x8x128xf32, #tpu.memory_space<vmem>>, vector<1x8x128xf32>
    %595 = vector.shape_cast %594 : vector<1x8x128xf32> to vector<8x128xf32>
    %596 = vector.shape_cast %592 : vector<8x128xf32> to vector<1x8x128xf32>
    tpu.vector_store %arg14[%593, %c0_243, %c0_244], %596 {strides = array<i32>} : memref<8x8x128xf32, #tpu.memory_space<vmem>>, vector<1x8x128xf32>,
    %c6_i32_245 = arith.constant 6 : i32
    %597 = arith.index_cast %c6_i32_245 : i32 to index
    %c0_246 = arith.constant 0 : index
    %c0_247 = arith.constant 0 : index
    %598 = vector.load %arg15[%597, %c0_246, %c0_247] : memref<8x8x512xf32, #tpu.memory_space<vmem>>, vector<1x8x512xf32>
    %599 = vector.shape_cast %598 : vector<1x8x512xf32> to vector<8x512xf32>
    %cst_248 = arith.constant dense<0.000000e+00> : vector<8x512xf32>
    %600 = tpu.matmul %592, %344, %cst_248 {dimension_numbers = #tpu.dot_dimension_numbers<[1], [0], [0], [1], [0, 0, 1, 1], [], []>} : vector<8x128xf32>, vector<128x512xf32>, vector<8x512xf32> -> vector<8x512xf32>
    %601 = arith.addf %599, %600 : vector<8x512xf32>
    %602 = vector.extract_strided_slice %601 {offsets = [0, 0], sizes = [8, 128], strides = [1, 1]} : vector<8x512xf32> to vector<8x128xf32>
    %cst_249 = arith.constant 5.000000e-01 : f32
    %603 = vector.broadcast %cst_249 : f32 to vector<8x128xf32>
    %604 = arith.mulf %603, %602 : vector<8x128xf32>
    %605 = math.tanh %604 : vector<8x128xf32>
    %cst_250 = arith.constant 5.000000e-01 : f32
    %606 = vector.broadcast %cst_250 : f32 to vector<8x128xf32>
    %607 = arith.mulf %606, %605 : vector<8x128xf32>
    %cst_251 = arith.constant 5.000000e-01 : f32
    %608 = vector.broadcast %cst_251 : f32 to vector<8x128xf32>
    %609 = arith.addf %607, %608 : vector<8x128xf32>
    %610 = vector.extract_strided_slice %601 {offsets = [0, 128], sizes = [8, 128], strides = [1, 1]} : vector<8x512xf32> to vector<8x128xf32>
    %cst_252 = arith.constant 5.000000e-01 : f32
    %611 = vector.broadcast %cst_252 : f32 to vector<8x128xf32>
    %612 = arith.mulf %611, %610 : vector<8x128xf32>
    %613 = math.tanh %612 : vector<8x128xf32>
    %cst_253 = arith.constant 5.000000e-01 : f32
    %614 = vector.broadcast %cst_253 : f32 to vector<8x128xf32>
    %615 = arith.mulf %614, %613 : vector<8x128xf32>
    %cst_254 = arith.constant 5.000000e-01 : f32
    %616 = vector.broadcast %cst_254 : f32 to vector<8x128xf32>
    %617 = arith.addf %615, %616 : vector<8x128xf32>
    %618 = vector.extract_strided_slice %601 {offsets = [0, 256], sizes = [8, 128], strides = [1, 1]} : vector<8x512xf32> to vector<8x128xf32>
    %619 = math.tanh %618 : vector<8x128xf32>
    %620 = vector.extract_strided_slice %601 {offsets = [0, 384], sizes = [8, 128], strides = [1, 1]} : vector<8x512xf32> to vector<8x128xf32>
    %cst_255 = arith.constant 5.000000e-01 : f32
    %621 = vector.broadcast %cst_255 : f32 to vector<8x128xf32>
    %622 = arith.mulf %621, %620 : vector<8x128xf32>
    %623 = math.tanh %622 : vector<8x128xf32>
    %cst_256 = arith.constant 5.000000e-01 : f32
    %624 = vector.broadcast %cst_256 : f32 to vector<8x128xf32>
    %625 = arith.mulf %624, %623 : vector<8x128xf32>
    %cst_257 = arith.constant 5.000000e-01 : f32
    %626 = vector.broadcast %cst_257 : f32 to vector<8x128xf32>
    %627 = arith.addf %625, %626 : vector<8x128xf32>
    %628 = arith.mulf %617, %590 : vector<8x128xf32>
    %629 = arith.mulf %609, %619 : vector<8x128xf32>
    %630 = arith.addf %628, %629 : vector<8x128xf32>
    %631 = math.tanh %630 : vector<8x128xf32>
    %632 = arith.mulf %627, %631 : vector<8x128xf32>
    %633 = arith.index_cast %c6_i32_245 : i32 to index
    %c0_258 = arith.constant 0 : index
    %c0_259 = arith.constant 0 : index
    %634 = vector.load %arg14[%633, %c0_258, %c0_259] : memref<8x8x128xf32, #tpu.memory_space<vmem>>, vector<1x8x128xf32>
    %635 = vector.shape_cast %634 : vector<1x8x128xf32> to vector<8x128xf32>
    %636 = vector.shape_cast %632 : vector<8x128xf32> to vector<1x8x128xf32>
    tpu.vector_store %arg14[%633, %c0_258, %c0_259], %636 {strides = array<i32>} : memref<8x8x128xf32, #tpu.memory_space<vmem>>, vector<1x8x128xf32>,
    %c7_i32_260 = arith.constant 7 : i32
    %637 = arith.index_cast %c7_i32_260 : i32 to index
    %c0_261 = arith.constant 0 : index
    %c0_262 = arith.constant 0 : index
    %638 = vector.load %arg15[%637, %c0_261, %c0_262] : memref<8x8x512xf32, #tpu.memory_space<vmem>>, vector<1x8x512xf32>
    %639 = vector.shape_cast %638 : vector<1x8x512xf32> to vector<8x512xf32>
    %cst_263 = arith.constant dense<0.000000e+00> : vector<8x512xf32>
    %640 = tpu.matmul %632, %344, %cst_263 {dimension_numbers = #tpu.dot_dimension_numbers<[1], [0], [0], [1], [0, 0, 1, 1], [], []>} : vector<8x128xf32>, vector<128x512xf32>, vector<8x512xf32> -> vector<8x512xf32>
    %641 = arith.addf %639, %640 : vector<8x512xf32>
    %642 = vector.extract_strided_slice %641 {offsets = [0, 0], sizes = [8, 128], strides = [1, 1]} : vector<8x512xf32> to vector<8x128xf32>
    %cst_264 = arith.constant 5.000000e-01 : f32
    %643 = vector.broadcast %cst_264 : f32 to vector<8x128xf32>
    %644 = arith.mulf %643, %642 : vector<8x128xf32>
    %645 = math.tanh %644 : vector<8x128xf32>
    %cst_265 = arith.constant 5.000000e-01 : f32
    %646 = vector.broadcast %cst_265 : f32 to vector<8x128xf32>
    %647 = arith.mulf %646, %645 : vector<8x128xf32>
    %cst_266 = arith.constant 5.000000e-01 : f32
    %648 = vector.broadcast %cst_266 : f32 to vector<8x128xf32>
    %649 = arith.addf %647, %648 : vector<8x128xf32>
    %650 = vector.extract_strided_slice %641 {offsets = [0, 128], sizes = [8, 128], strides = [1, 1]} : vector<8x512xf32> to vector<8x128xf32>
    %cst_267 = arith.constant 5.000000e-01 : f32
    %651 = vector.broadcast %cst_267 : f32 to vector<8x128xf32>
    %652 = arith.mulf %651, %650 : vector<8x128xf32>
    %653 = math.tanh %652 : vector<8x128xf32>
    %cst_268 = arith.constant 5.000000e-01 : f32
    %654 = vector.broadcast %cst_268 : f32 to vector<8x128xf32>
    %655 = arith.mulf %654, %653 : vector<8x128xf32>
    %cst_269 = arith.constant 5.000000e-01 : f32
    %656 = vector.broadcast %cst_269 : f32 to vector<8x128xf32>
    %657 = arith.addf %655, %656 : vector<8x128xf32>
    %658 = vector.extract_strided_slice %641 {offsets = [0, 256], sizes = [8, 128], strides = [1, 1]} : vector<8x512xf32> to vector<8x128xf32>
    %659 = math.tanh %658 : vector<8x128xf32>
    %660 = vector.extract_strided_slice %641 {offsets = [0, 384], sizes = [8, 128], strides = [1, 1]} : vector<8x512xf32> to vector<8x128xf32>
    %cst_270 = arith.constant 5.000000e-01 : f32
    %661 = vector.broadcast %cst_270 : f32 to vector<8x128xf32>
    %662 = arith.mulf %661, %660 : vector<8x128xf32>
    %663 = math.tanh %662 : vector<8x128xf32>
    %cst_271 = arith.constant 5.000000e-01 : f32
    %664 = vector.broadcast %cst_271 : f32 to vector<8x128xf32>
    %665 = arith.mulf %664, %663 : vector<8x128xf32>
    %cst_272 = arith.constant 5.000000e-01 : f32
    %666 = vector.broadcast %cst_272 : f32 to vector<8x128xf32>
    %667 = arith.addf %665, %666 : vector<8x128xf32>
    %668 = arith.mulf %657, %630 : vector<8x128xf32>
    %669 = arith.mulf %649, %659 : vector<8x128xf32>
    %670 = arith.addf %668, %669 : vector<8x128xf32>
    %671 = math.tanh %670 : vector<8x128xf32>
    %672 = arith.mulf %667, %671 : vector<8x128xf32>
    %673 = arith.index_cast %c7_i32_260 : i32 to index
    %c0_273 = arith.constant 0 : index
    %c0_274 = arith.constant 0 : index
    %674 = vector.load %arg14[%673, %c0_273, %c0_274] : memref<8x8x128xf32, #tpu.memory_space<vmem>>, vector<1x8x128xf32>
    %675 = vector.shape_cast %674 : vector<1x8x128xf32> to vector<8x128xf32>
    %676 = vector.shape_cast %672 : vector<8x128xf32> to vector<1x8x128xf32>
    tpu.vector_store %arg14[%673, %c0_273, %c0_274], %676 {strides = array<i32>} : memref<8x8x128xf32, #tpu.memory_space<vmem>>, vector<1x8x128xf32>,
    %c8_i32_275 = arith.constant 8 : i32
    %c1_276 = arith.constant 1 : index
    %c0_277 = arith.constant 0 : index
    %c0_278 = arith.constant 0 : index
    %677 = vector.load %arg12[%c1_276, %c0_277, %c0_278] : memref<2x8x128xf32, #tpu.memory_space<vmem>>, vector<1x8x128xf32>
    %678 = vector.shape_cast %677 : vector<1x8x128xf32> to vector<8x128xf32>
    %679 = vector.shape_cast %672 : vector<8x128xf32> to vector<1x8x128xf32>
    tpu.vector_store %arg12[%c1_276, %c0_277, %c0_278], %679 {strides = array<i32>} : memref<2x8x128xf32, #tpu.memory_space<vmem>>, vector<1x8x128xf32>,
    %c1_279 = arith.constant 1 : index
    %c0_280 = arith.constant 0 : index
    %c0_281 = arith.constant 0 : index
    %680 = vector.load %arg13[%c1_279, %c0_280, %c0_281] : memref<2x8x128xf32, #tpu.memory_space<vmem>>, vector<1x8x128xf32>
    %681 = vector.shape_cast %680 : vector<1x8x128xf32> to vector<8x128xf32>
    %682 = vector.shape_cast %670 : vector<8x128xf32> to vector<1x8x128xf32>
    tpu.vector_store %arg13[%c1_279, %c0_280, %c0_281], %682 {strides = array<i32>} : memref<2x8x128xf32, #tpu.memory_space<vmem>>, vector<1x8x128xf32>,
    %c0_282 = arith.constant 0 : index
    %c0_283 = arith.constant 0 : index
    %683 = vector.load %arg9[%c0_282, %c0_283] : memref<128x128xf32, #tpu.memory_space<vmem>>, vector<128x128xf32>
    %c0_284 = arith.constant 0 : index
    %c0_285 = arith.constant 0 : index
    %684 = vector.load %arg10[%c0_284, %c0_285] : memref<1x128xf32, #tpu.memory_space<vmem>>, vector<1x128xf32>
    %c0_286 = arith.constant 0 : index
    %c0_287 = arith.constant 0 : index
    %c0_288 = arith.constant 0 : index
    %685 = vector.load %arg14[%c0_286, %c0_287, %c0_288] : memref<8x8x128xf32, #tpu.memory_space<vmem>>, vector<8x8x128xf32>
    %686 = vector.shape_cast %685 : vector<8x8x128xf32> to vector<64x128xf32>
    %cst_289 = arith.constant dense<0.000000e+00> : vector<64x128xf32>
    %687 = tpu.matmul %686, %683, %cst_289 {dimension_numbers = #tpu.dot_dimension_numbers<[1], [0], [0], [1], [0, 0, 1, 1], [], []>} : vector<64x128xf32>, vector<128x128xf32>, vector<64x128xf32> -> vector<64x128xf32>
    %688 = vector.broadcast %684 : vector<1x128xf32> to vector<64x128xf32>
    %689 = arith.addf %687, %688 : vector<64x128xf32>
    %690 = vector.shape_cast %689 : vector<64x128xf32> to vector<8x8x128xf32>
    %c0_290 = arith.constant 0 : index
    %c0_291 = arith.constant 0 : index
    %c0_292 = arith.constant 0 : index
    %691 = vector.load %arg11[%c0_290, %c0_291, %c0_292] : memref<8x8x128xf32, #tpu.memory_space<vmem>>, vector<8x8x128xf32>
    tpu.vector_store %arg11[%c0_290, %c0_291, %c0_292], %690 {strides = array<i32>} : memref<8x8x128xf32, #tpu.memory_space<vmem>>, vector<8x8x128xf32>,
    return
  }
  func.func @transform_0(%arg0: i32, %arg1: i32) -> (i32, i32, i32) {
    %c0_i32 = arith.constant 0 : i32
    %c0_i32_0 = arith.constant 0 : i32
    return %arg1, %arg0, %c0_i32 : i32, i32, i32
  }
  func.func @transform_1(%arg0: i32, %arg1: i32) -> (i32, i32) {
    %c0_i32 = arith.constant 0 : i32
    %c0_i32_0 = arith.constant 0 : i32
    %c0_i32_1 = arith.constant 0 : i32
    return %c0_i32, %c0_i32_0 : i32, i32
  }
  func.func @transform_2(%arg0: i32, %arg1: i32) -> (i32, i32) {
    %c0_i32 = arith.constant 0 : i32
    %c0_i32_0 = arith.constant 0 : i32
    %c0_i32_1 = arith.constant 0 : i32
    return %c0_i32, %c0_i32_0 : i32, i32
  }
  func.func @transform_3(%arg0: i32, %arg1: i32) -> (i32, i32) {
    %c0_i32 = arith.constant 0 : i32
    %c0_i32_0 = arith.constant 0 : i32
    %c0_i32_1 = arith.constant 0 : i32
    return %c0_i32, %c0_i32_0 : i32, i32
  }
  func.func @transform_4(%arg0: i32, %arg1: i32) -> (i32, i32) {
    %c0_i32 = arith.constant 0 : i32
    %c0_i32_0 = arith.constant 0 : i32
    %c0_i32_1 = arith.constant 0 : i32
    return %c0_i32, %c0_i32_0 : i32, i32
  }
  func.func @transform_5(%arg0: i32, %arg1: i32) -> (i32, i32) {
    %c0_i32 = arith.constant 0 : i32
    %c0_i32_0 = arith.constant 0 : i32
    %c0_i32_1 = arith.constant 0 : i32
    return %c0_i32, %c0_i32_0 : i32, i32
  }
  func.func @transform_6(%arg0: i32, %arg1: i32) -> (i32, i32) {
    %c0_i32 = arith.constant 0 : i32
    %c0_i32_0 = arith.constant 0 : i32
    %c0_i32_1 = arith.constant 0 : i32
    return %c0_i32, %c0_i32_0 : i32, i32
  }
  func.func @transform_7(%arg0: i32, %arg1: i32) -> (i32, i32) {
    %c0_i32 = arith.constant 0 : i32
    %c0_i32_0 = arith.constant 0 : i32
    %c0_i32_1 = arith.constant 0 : i32
    return %c0_i32, %c0_i32_0 : i32, i32
  }
  func.func @transform_8(%arg0: i32, %arg1: i32) -> (i32, i32) {
    %c0_i32 = arith.constant 0 : i32
    %c0_i32_0 = arith.constant 0 : i32
    %c0_i32_1 = arith.constant 0 : i32
    return %c0_i32, %c0_i32_0 : i32, i32
  }
  func.func @transform_9(%arg0: i32, %arg1: i32) -> (i32, i32, i32) {
    %c0_i32 = arith.constant 0 : i32
    %c0_i32_0 = arith.constant 0 : i32
    return %arg1, %arg0, %c0_i32 : i32, i32, i32
  }
}

</mosaic_0001>

<llo_original>
// kernel: tpu_custom_call.1
$region0: #{tpu_custom_call.1}
  #allocation0 [shape = 'u32[]', space=smem, size = 0x4, offset = 0x4, fixed_abs, tag = 'smem constant byte address 0x4 - core index']
  #allocation1 [shape = 'u32[144,128]{1,0:T(1,128)}', space=vmem, size = 0x12000, scoped, tag = 'internal scratch']
  #allocation2 [shape = 'f32[2,8,128]{2,1,0:T(8,128)}', space=vmem, size = 0x2000, scoped, tag = 'scratch operand']
  #allocation3 [shape = 'f32[2,8,128]{2,1,0:T(8,128)}', space=vmem, size = 0x2000, scoped, tag = 'scratch operand']
  #allocation4 [shape = 'f32[8,8,128]{2,1,0:T(8,128)}', space=vmem, size = 0x8000, scoped, tag = 'scratch operand']
  #allocation5 [shape = 'f32[8,8,512]{2,1,0:T(8,128)}', space=vmem, size = 0x20000, scoped, tag = 'scratch operand']
  %s0 = inlined_call_operand.hbm [shape: f32[8,8,128], index: 0, kind: input, shape index: {}]
  %s1 = inlined_call_operand.hbm [shape: f32[128,512], index: 1, kind: input, shape index: {}]
  %s2 = inlined_call_operand.hbm [shape: f32[128,512], index: 2, kind: input, shape index: {}]
  %s3 = inlined_call_operand.vmem [shape: f32[1,512], index: 3, kind: input, shape index: {}]
  %s4 = inlined_call_operand.hbm [shape: f32[128,512], index: 4, kind: input, shape index: {}]
  %s5 = inlined_call_operand.hbm [shape: f32[128,512], index: 5, kind: input, shape index: {}]
  %s6 = inlined_call_operand.vmem [shape: f32[1,512], index: 6, kind: input, shape index: {}]
  %s7 = inlined_call_operand.hbm [shape: f32[128,128], index: 7, kind: input, shape index: {}]
  %s8 = inlined_call_operand.vmem [shape: f32[1,128], index: 8, kind: input, shape index: {}]
  %s9 = inlined_call_operand.hbm [shape: f32[8,8,128], index: 9, kind: output, shape index: {}]
  %s10 = sld [smem:[#allocation0]]
  $region74: #{tpu_custom_call.1} parent=0
    _
  %s12 = ssub.s32 1, %s10
  %s13 = scalar_select 0, %s12, %s10
  $region1: #{tpu_custom_call.1} parent=0
    #allocation6 [shape = 'u8[32768]{0}', space=vmem, size = 0x8000, scoped, tag = 'input window, operand 0, single buffered']
    #allocation7 [shape = 's32[1]{0}', space=sflag, size = 0x4, scoped, tag = 'scoped memory for tpu_custom_call.1']
    #allocation8 [shape = 's32[1]{0}', space=sflag, size = 0x4, scoped, tag = 'scoped memory for tpu_custom_call.1']
    #allocation9 [shape = 'u8[262144]{0}', space=vmem, size = 0x40000, scoped, tag = 'input window, operand 1, single buffered']
    #allocation10 [shape = 's32[1]{0}', space=sflag, size = 0x4, scoped, tag = 'scoped memory for tpu_custom_call.1']
    #allocation11 [shape = 'u8[262144]{0}', space=vmem, size = 0x40000, scoped, tag = 'input window, operand 2, single buffered']
    #allocation12 [shape = 'u8[262144]{0}', space=vmem, size = 0x40000, scoped, tag = 'input window, operand 4, single buffered']
    #allocation13 [shape = 's32[1]{0}', space=sflag, size = 0x4, scoped, tag = 'scoped memory for tpu_custom_call.1']
    #allocation14 [shape = 'u8[262144]{0}', space=vmem, size = 0x40000, scoped, tag = 'input window, operand 5, single buffered']
    #allocation15 [shape = 'u8[65536]{0}', space=vmem, size = 0x10000, scoped, tag = 'input window, operand 7, single buffered']
    #allocation16 [shape = 's32[1]{0}', space=sflag, size = 0x4, scoped, tag = 'scoped memory for tpu_custom_call.1']
    #allocation17 [shape = 'u8[32768]{0}', space=vmem, size = 0x8000, scoped, tag = 'output window, operand 0, single buffered']
    %14 = vsyncpa [#allocation7], 0
    %15 = vsyncpa [#allocation10], 0
    %16 = vsyncpa [#allocation13], 0
    %17 = vsyncpa [#allocation16], 0
    %18 = vsyncpa [#allocation8], 0
    // Predicated region
    $region2: #{tpu_custom_call.1} parent=1 // pred_check
      _
    $region3: #{tpu_custom_call.1} parent=1 // pred_check_branch
      %20 = sbr.rel (0) target = $region5
    $region4: #{tpu_custom_call.1} parent=1 // pred_region
      %s22 = ssub.s32 1024, 1024
      %23 = vsyncadd [#allocation7], %s22
      %s24 = sshll.u32 [#allocation6], 4
      %s25 = int_to_ptr.vmem [resolvable:$true] %s24
      %30 = dma.hbm_to_vmem [thread:$0]  %s0, 1024, %s25, [#allocation7], 128, 128, 8
    $region5: #{tpu_custom_call.1} parent=1 // pred_fallthru
      _
    // Predicated region
    $region6: #{tpu_custom_call.1} parent=1 // pred_check
      _
    $region7: #{tpu_custom_call.1} parent=1 // pred_check_branch
      %32 = sbr.rel (0) target = $region9
    $region8: #{tpu_custom_call.1} parent=1 // pred_region
      %s34 = ssub.s32 8192, 8192
      %35 = vsyncadd [#allocation10], %s34
      %s36 = sshll.u32 [#allocation9], 4
      %s37 = int_to_ptr.vmem [resolvable:$true] %s36
      %42 = dma.hbm_to_vmem [thread:$0]  %s1, 8192, %s37, [#allocation10], 512, 512, 32
    $region9: #{tpu_custom_call.1} parent=1 // pred_fallthru
      _
    // Predicated region
    $region10: #{tpu_custom_call.1} parent=1 // pred_check
      _
    $region11: #{tpu_custom_call.1} parent=1 // pred_check_branch
      %44 = sbr.rel (0) target = $region13
    $region12: #{tpu_custom_call.1} parent=1 // pred_region
      %s46 = ssub.s32 8192, 8192
      %47 = vsyncadd [#allocation10], %s46
      %s48 = sshll.u32 [#allocation11], 4
      %s49 = int_to_ptr.vmem [resolvable:$true] %s48
      %54 = dma.hbm_to_vmem [thread:$0]  %s2, 8192, %s49, [#allocation10], 512, 512, 32
    $region13: #{tpu_custom_call.1} parent=1 // pred_fallthru
      _
    // Predicated region
    $region14: #{tpu_custom_call.1} parent=1 // pred_check
      _
    $region15: #{tpu_custom_call.1} parent=1 // pred_check_branch
      %56 = sbr.rel (0) target = $region17
    $region16: #{tpu_custom_call.1} parent=1 // pred_region
      _
    $region17: #{tpu_custom_call.1} parent=1 // pred_fallthru
      _
    // Predicated region
    $region18: #{tpu_custom_call.1} parent=1 // pred_check
      _
    $region19: #{tpu_custom_call.1} parent=1 // pred_check_branch
      %58 = sbr.rel (0) target = $region21
    $region20: #{tpu_custom_call.1} parent=1 // pred_region
      %s60 = ssub.s32 8192, 8192
      %61 = vsyncadd [#allocation13], %s60
      %s62 = sshll.u32 [#allocation12], 4
      %s63 = int_to_ptr.vmem [resolvable:$true] %s62
      %68 = dma.hbm_to_vmem [thread:$0]  %s4, 8192, %s63, [#allocation13], 512, 512, 32
    $region21: #{tpu_custom_call.1} parent=1 // pred_fallthru
      _
    // Predicated region
    $region22: #{tpu_custom_call.1} parent=1 // pred_check
      _
    $region23: #{tpu_custom_call.1} parent=1 // pred_check_branch
      %70 = sbr.rel (0) target = $region25
    $region24: #{tpu_custom_call.1} parent=1 // pred_region
      %s72 = ssub.s32 8192, 8192
      %73 = vsyncadd [#allocation13], %s72
      %s74 = sshll.u32 [#allocation14], 4
      %s75 = int_to_ptr.vmem [resolvable:$true] %s74
      %80 = dma.hbm_to_vmem [thread:$0]  %s5, 8192, %s75, [#allocation13], 512, 512, 32
    $region25: #{tpu_custom_call.1} parent=1 // pred_fallthru
      _
    // Predicated region
    $region26: #{tpu_custom_call.1} parent=1 // pred_check
      _
    $region27: #{tpu_custom_call.1} parent=1 // pred_check_branch
      %82 = sbr.rel (0) target = $region29
    $region28: #{tpu_custom_call.1} parent=1 // pred_region
      _
    $region29: #{tpu_custom_call.1} parent=1 // pred_fallthru
      _
    // Predicated region
    $region30: #{tpu_custom_call.1} parent=1 // pred_check
      _
    $region31: #{tpu_custom_call.1} parent=1 // pred_check_branch
      %84 = sbr.rel (0) target = $region33
    $region32: #{tpu_custom_call.1} parent=1 // pred_region
      %s86 = ssub.s32 2048, 2048
      %87 = vsyncadd [#allocation16], %s86
      %s88 = sshll.u32 [#allocation15], 4
      %s89 = int_to_ptr.vmem [resolvable:$true] %s88
      %94 = dma.hbm_to_vmem [thread:$0]  %s7, 2048, %s89, [#allocation16], 128, 128, 8
    $region33: #{tpu_custom_call.1} parent=1 // pred_fallthru
      _
    // Predicated region
    $region34: #{tpu_custom_call.1} parent=1 // pred_check
      _
    $region35: #{tpu_custom_call.1} parent=1 // pred_check_branch
      %96 = sbr.rel (0) target = $region37
    $region36: #{tpu_custom_call.1} parent=1 // pred_region
      _
    $region37: #{tpu_custom_call.1} parent=1 // pred_fallthru
      _
    // Predicated region
    $region38: #{tpu_custom_call.1} parent=1 // pred_check
      _
    $region39: #{tpu_custom_call.1} parent=1 // pred_check_branch
      %98 = sbr.rel (0) target = $region41
    $region40: #{tpu_custom_call.1} parent=1 // pred_region
      %99 = dma.done [#allocation7], 1024
    $region41: #{tpu_custom_call.1} parent=1 // pred_fallthru
      _
    // Predicated region
    $region42: #{tpu_custom_call.1} parent=1 // pred_check
      _
    $region43: #{tpu_custom_call.1} parent=1 // pred_check_branch
      %101 = sbr.rel (0) target = $region45
    $region44: #{tpu_custom_call.1} parent=1 // pred_region
      %102 = dma.done [#allocation10], 8192
    $region45: #{tpu_custom_call.1} parent=1 // pred_fallthru
      _
    // Predicated region
    $region46: #{tpu_custom_call.1} parent=1 // pred_check
      _
    $region47: #{tpu_custom_call.1} parent=1 // pred_check_branch
      %104 = sbr.rel (0) target = $region49
    $region48: #{tpu_custom_call.1} parent=1 // pred_region
      %105 = dma.done [#allocation10], 8192
    $region49: #{tpu_custom_call.1} parent=1 // pred_fallthru
      _
    // Predicated region
    $region50: #{tpu_custom_call.1} parent=1 // pred_check
      _
    $region51: #{tpu_custom_call.1} parent=1 // pred_check_branch
      %107 = sbr.rel (0) target = $region53
    $region52: #{tpu_custom_call.1} parent=1 // pred_region
      %108 = dma.done [#allocation13], 8192
    $region53: #{tpu_custom_call.1} parent=1 // pred_fallthru
      _
    // Predicated region
    $region54: #{tpu_custom_call.1} parent=1 // pred_check
      _
    $region55: #{tpu_custom_call.1} parent=1 // pred_check_branch
      %110 = sbr.rel (0) target = $region57
    $region56: #{tpu_custom_call.1} parent=1 // pred_region
      %111 = dma.done [#allocation13], 8192
    $region57: #{tpu_custom_call.1} parent=1 // pred_fallthru
      _
    // Predicated region
    $region58: #{tpu_custom_call.1} parent=1 // pred_check
      _
    $region59: #{tpu_custom_call.1} parent=1 // pred_check_branch
      %113 = sbr.rel (0) target = $region61
    $region60: #{tpu_custom_call.1} parent=1 // pred_region
      %114 = dma.done [#allocation16], 2048
    $region61: #{tpu_custom_call.1} parent=1 // pred_fallthru
      _
    %p115 = scmp.eq.s32.totalorder 0, 0
    // Predicated region
    $region62: #{tpu_custom_call.1} parent=1 // pred_check
      %p116 = pneg %p115
    $region63: #{tpu_custom_call.1} parent=1 // pred_check_branch
      %118 = sbr.rel (%p116) target = $region65
    $region64: #{tpu_custom_call.1} parent=1 // pred_region
      %119 = vst [vmem:[#allocation2] sm:$0xff] 0.0
      %120 = vst [vmem:[#allocation2 + $0x8] sm:$0xff] 0.0
      %121 = vst [vmem:[#allocation3] sm:$0xff] 0.0
      %122 = vst [vmem:[#allocation3 + $0x8] sm:$0xff] 0.0
    $region65: #{tpu_custom_call.1} parent=1 // pred_fallthru
      _
    %v123 = vld [vmem:[#allocation9] sm:$0xff]
    %v124 = vld [vmem:[#allocation9 + $0x8] sm:$0xff]
    %v125 = vld [vmem:[#allocation9 + $0x10] sm:$0xff]
    %v126 = vld [vmem:[#allocation9 + $0x18] sm:$0xff]
    %v127 = vld [vmem:[#allocation9 + $0x20] sm:$0xff]
    %v128 = vld [vmem:[#allocation9 + $0x28] sm:$0xff]
    %v129 = vld [vmem:[#allocation9 + $0x30] sm:$0xff]
    %v130 = vld [vmem:[#allocation9 + $0x38] sm:$0xff]
    %v131 = vld [vmem:[#allocation9 + $0x40] sm:$0xff]
    %v132 = vld [vmem:[#allocation9 + $0x48] sm:$0xff]
    %v133 = vld [vmem:[#allocation9 + $0x50] sm:$0xff]
    %v134 = vld [vmem:[#allocation9 + $0x58] sm:$0xff]
    %v135 = vld [vmem:[#allocation9 + $0x60] sm:$0xff]
    %v136 = vld [vmem:[#allocation9 + $0x68] sm:$0xff]
    %v137 = vld [vmem:[#allocation9 + $0x70] sm:$0xff]
    %v138 = vld [vmem:[#allocation9 + $0x78] sm:$0xff]
    %v139 = vld [vmem:[#allocation9 + $0x80] sm:$0xff]
    %v140 = vld [vmem:[#allocation9 + $0x88] sm:$0xff]
    %v141 = vld [vmem:[#allocation9 + $0x90] sm:$0xff]
    %v142 = vld [vmem:[#allocation9 + $0x98] sm:$0xff]
    %v143 = vld [vmem:[#allocation9 + $0xa0] sm:$0xff]
    %v144 = vld [vmem:[#allocation9 + $0xa8] sm:$0xff]
    %v145 = vld [vmem:[#allocation9 + $0xb0] sm:$0xff]
    %v146 = vld [vmem:[#allocation9 + $0xb8] sm:$0xff]
    %v147 = vld [vmem:[#allocation9 + $0xc0] sm:$0xff]
    %v148 = vld [vmem:[#allocation9 + $0xc8] sm:$0xff]
    %v149 = vld [vmem:[#allocation9 + $0xd0] sm:$0xff]
    %v150 = vld [vmem:[#allocation9 + $0xd8] sm:$0xff]
    %v151 = vld [vmem:[#allocation9 + $0xe0] sm:$0xff]
    %v152 = vld [vmem:[#allocation9 + $0xe8] sm:$0xff]
    %v153 = vld [vmem:[#allocation9 + $0xf0] sm:$0xff]
    %v154 = vld [vmem:[#allocation9 + $0xf8] sm:$0xff]
    %v155 = vld [vmem:[#allocation9 + $0x100] sm:$0xff]
    %v156 = vld [vmem:[#allocation9 + $0x108] sm:$0xff]
    %v157 = vld [vmem:[#allocation9 + $0x110] sm:$0xff]
    %v158 = vld [vmem:[#allocation9 + $0x118] sm:$0xff]
    %v159 = vld [vmem:[#allocation9 + $0x120] sm:$0xff]
    %v160 = vld [vmem:[#allocation9 + $0x128] sm:$0xff]
    %v161 = vld [vmem:[#allocation9 + $0x130] sm:$0xff]
    %v162 = vld [vmem:[#allocation9 + $0x138] sm:$0xff]
    %v163 = vld [vmem:[#allocation9 + $0x140] sm:$0xff]
    %v164 = vld [vmem:[#allocation9 + $0x148] sm:$0xff]
    %v165 = vld [vmem:[#allocation9 + $0x150] sm:$0xff]
    %v166 = vld [vmem:[#allocation9 + $0x158] sm:$0xff]
    %v167 = vld [vmem:[#allocation9 + $0x160] sm:$0xff]
    %v168 = vld [vmem:[#allocation9 + $0x168] sm:$0xff]
    %v169 = vld [vmem:[#allocation9 + $0x170] sm:$0xff]
    %v170 = vld [vmem:[#allocation9 + $0x178] sm:$0xff]
    %v171 = vld [vmem:[#allocation9 + $0x180] sm:$0xff]
    %v172 = vld [vmem:[#allocation9 + $0x188] sm:$0xff]
    %v173 = vld [vmem:[#allocation9 + $0x190] sm:$0xff]
    %v174 = vld [vmem:[#allocation9 + $0x198] sm:$0xff]
    %v175 = vld [vmem:[#allocation9 + $0x1a0] sm:$0xff]
    %v176 = vld [vmem:[#allocation9 + $0x1a8] sm:$0xff]
    %v177 = vld [vmem:[#allocation9 + $0x1b0] sm:$0xff]
    %v178 = vld [vmem:[#allocation9 + $0x1b8] sm:$0xff]
    %v179 = vld [vmem:[#allocation9 + $0x1c0] sm:$0xff]
    %v180 = vld [vmem:[#allocation9 + $0x1c8] sm:$0xff]
    %v181 = vld [vmem:[#allocation9 + $0x1d0] sm:$0xff]
    %v182 = vld [vmem:[#allocation9 + $0x1d8] sm:$0xff]
    %v183 = vld [vmem:[#allocation9 + $0x1e0] sm:$0xff]
    %v184 = vld [vmem:[#allocation9 + $0x1e8] sm:$0xff]
    %v185 = vld [vmem:[#allocation9 + $0x1f0] sm:$0xff]
    %v186 = vld [vmem:[#allocation9 + $0x1f8] sm:$0xff]
    %v187 = vld [vmem:[#allocation11] sm:$0xff]
    %v188 = vld [vmem:[#allocation11 + $0x8] sm:$0xff]
    %v189 = vld [vmem:[#allocation11 + $0x10] sm:$0xff]
    %v190 = vld [vmem:[#allocation11 + $0x18] sm:$0xff]
    %v191 = vld [vmem:[#allocation11 + $0x20] sm:$0xff]
    %v192 = vld [vmem:[#allocation11 + $0x28] sm:$0xff]
    %v193 = vld [vmem:[#allocation11 + $0x30] sm:$0xff]
    %v194 = vld [vmem:[#allocation11 + $0x38] sm:$0xff]
    %v195 = vld [vmem:[#allocation11 + $0x40] sm:$0xff]
    %v196 = vld [vmem:[#allocation11 + $0x48] sm:$0xff]
    %v197 = vld [vmem:[#allocation11 + $0x50] sm:$0xff]
    %v198 = vld [vmem:[#allocation11 + $0x58] sm:$0xff]
    %v199 = vld [vmem:[#allocation11 + $0x60] sm:$0xff]
    %v200 = vld [vmem:[#allocation11 + $0x68] sm:$0xff]
    %v201 = vld [vmem:[#allocation11 + $0x70] sm:$0xff]
    %v202 = vld [vmem:[#allocation11 + $0x78] sm:$0xff]
    %v203 = vld [vmem:[#allocation11 + $0x80] sm:$0xff]
    %v204 = vld [vmem:[#allocation11 + $0x88] sm:$0xff]
    %v205 = vld [vmem:[#allocation11 + $0x90] sm:$0xff]
    %v206 = vld [vmem:[#allocation11 + $0x98] sm:$0xff]
    %v207 = vld [vmem:[#allocation11 + $0xa0] sm:$0xff]
    %v208 = vld [vmem:[#allocation11 + $0xa8] sm:$0xff]
    %v209 = vld [vmem:[#allocation11 + $0xb0] sm:$0xff]
    %v210 = vld [vmem:[#allocation11 + $0xb8] sm:$0xff]
    %v211 = vld [vmem:[#allocation11 + $0xc0] sm:$0xff]
    %v212 = vld [vmem:[#allocation11 + $0xc8] sm:$0xff]
    %v213 = vld [vmem:[#allocation11 + $0xd0] sm:$0xff]
    %v214 = vld [vmem:[#allocation11 + $0xd8] sm:$0xff]
    %v215 = vld [vmem:[#allocation11 + $0xe0] sm:$0xff]
    %v216 = vld [vmem:[#allocation11 + $0xe8] sm:$0xff]
    %v217 = vld [vmem:[#allocation11 + $0xf0] sm:$0xff]
    %v218 = vld [vmem:[#allocation11 + $0xf8] sm:$0xff]
    %v219 = vld [vmem:[#allocation11 + $0x100] sm:$0xff]
    %v220 = vld [vmem:[#allocation11 + $0x108] sm:$0xff]
    %v221 = vld [vmem:[#allocation11 + $0x110] sm:$0xff]
    %v222 = vld [vmem:[#allocation11 + $0x118] sm:$0xff]
    %v223 = vld [vmem:[#allocation11 + $0x120] sm:$0xff]
    %v224 = vld [vmem:[#allocation11 + $0x128] sm:$0xff]
    %v225 = vld [vmem:[#allocation11 + $0x130] sm:$0xff]
    %v226 = vld [vmem:[#allocation11 + $0x138] sm:$0xff]
    %v227 = vld [vmem:[#allocation11 + $0x140] sm:$0xff]
    %v228 = vld [vmem:[#allocation11 + $0x148] sm:$0xff]
    %v229 = vld [vmem:[#allocation11 + $0x150] sm:$0xff]
    %v230 = vld [vmem:[#allocation11 + $0x158] sm:$0xff]
    %v231 = vld [vmem:[#allocation11 + $0x160] sm:$0xff]
    %v232 = vld [vmem:[#allocation11 + $0x168] sm:$0xff]
    %v233 = vld [vmem:[#allocation11 + $0x170] sm:$0xff]
    %v234 = vld [vmem:[#allocation11 + $0x178] sm:$0xff]
    %v235 = vld [vmem:[#allocation11 + $0x180] sm:$0xff]
    %v236 = vld [vmem:[#allocation11 + $0x188] sm:$0xff]
    %v237 = vld [vmem:[#allocation11 + $0x190] sm:$0xff]
    %v238 = vld [vmem:[#allocation11 + $0x198] sm:$0xff]
    %v239 = vld [vmem:[#allocation11 + $0x1a0] sm:$0xff]
    %v240 = vld [vmem:[#allocation11 + $0x1a8] sm:$0xff]
    %v241 = vld [vmem:[#allocation11 + $0x1b0] sm:$0xff]
    %v242 = vld [vmem:[#allocation11 + $0x1b8] sm:$0xff]
    %v243 = vld [vmem:[#allocation11 + $0x1c0] sm:$0xff]
    %v244 = vld [vmem:[#allocation11 + $0x1c8] sm:$0xff]
    %v245 = vld [vmem:[#allocation11 + $0x1d0] sm:$0xff]
    %v246 = vld [vmem:[#allocation11 + $0x1d8] sm:$0xff]
    %v247 = vld [vmem:[#allocation11 + $0x1e0] sm:$0xff]
    %v248 = vld [vmem:[#allocation11 + $0x1e8] sm:$0xff]
    %v249 = vld [vmem:[#allocation11 + $0x1f0] sm:$0xff]
    %v250 = vld [vmem:[#allocation11 + $0x1f8] sm:$0xff]
    %v251 = vld [vmem:[%s3] sm:$0xf]
    %v252 = vld [vmem:[#allocation6] sm:$0xff]
    %v253 = vld [vmem:[#allocation6 + $0x8] sm:$0xff]
    %v254 = vld [vmem:[#allocation6 + $0x10] sm:$0xff]
    %v255 = vld [vmem:[#allocation6 + $0x18] sm:$0xff]
    %v256 = vld [vmem:[#allocation6 + $0x20] sm:$0xff]
    %v257 = vld [vmem:[#allocation6 + $0x28] sm:$0xff]
    %v258 = vld [vmem:[#allocation6 + $0x30] sm:$0xff]
    %v259 = vld [vmem:[#allocation6 + $0x38] sm:$0xff]
    %v261 = vlaneseq
    %v262 = vshrl.u32 %v261, 7
    %v263 = vsub.s32 0, %v262
    %v264 = vrot.slane %v251, %v263
    %v265 = vlaneseq
    %v266 = vshrl.u32 %v265, 7
    %v267 = vsub.s32 1, %v266
    %v268 = vrot.slane %v251, %v267
    %v269 = vlaneseq
    %v270 = vshrl.u32 %v269, 7
    %v271 = vsub.s32 2, %v270
    %v272 = vrot.slane %v251, %v271
    %v273 = vlaneseq
    %v274 = vshrl.u32 %v273, 7
    %v275 = vsub.s32 3, %v274
    %v276 = vrot.slane %v251, %v275
    %281 = vmatprep.subr.mxu0 %v124
    %282 = vmatpush1.msra.mxu0 %v123
    %283 = vmatprep.subr.mxu0 %v128
    %284 = vmatpush1.msra.mxu0 %v127
    %285 = vmatprep.subr.mxu0 %v132
    %286 = vmatpush1.msra.mxu0 %v131
    %287 = vmatprep.subr.mxu0 %v136
    %288 = vmatpush1.msra.mxu0 %v135
    %289 = vmatprep.subr.mxu0 %v140
    %290 = vmatpush1.msra.mxu0 %v139
    %291 = vmatprep.subr.mxu0 %v144
    %292 = vmatpush1.msra.mxu0 %v143
    %293 = vmatprep.subr.mxu0 %v148
    %294 = vmatpush1.msra.mxu0 %v147
    %295 = vmatprep.subr.mxu0 %v152
    %296 = vmatpush1.msra.mxu0 %v151
    %297 = vmatprep.subr.mxu0 %v156
    %298 = vmatpush1.msra.mxu0 %v155
    %299 = vmatprep.subr.mxu0 %v160
    %300 = vmatpush1.msra.mxu0 %v159
    %301 = vmatprep.subr.mxu0 %v164
    %302 = vmatpush1.msra.mxu0 %v163
    %303 = vmatprep.subr.mxu0 %v168
    %304 = vmatpush1.msra.mxu0 %v167
    %305 = vmatprep.subr.mxu0 %v172
    %306 = vmatpush1.msra.mxu0 %v171
    %307 = vmatprep.subr.mxu0 %v176
    %308 = vmatpush1.msra.mxu0 %v175
    %309 = vmatprep.subr.mxu0 %v180
    %310 = vmatpush1.msra.mxu0 %v179
    %311 = vmatprep.subr.mxu0 %v184
    %312 = vmatpush1.msra.mxu0 %v183
    %313 = vmatprep.subr.mxu0 0.0
    %314 = vmatpush1.msra.mxu0 0.0
    %315 = vmatprep.subr.mxu0 0.0
    %316 = vmatpush1.msra.mxu0 0.0
    %317 = vmatprep.subr.mxu0 0.0
    %318 = vmatpush1.msra.mxu0 0.0
    %319 = vmatprep.subr.mxu0 0.0
    %320 = vmatpush1.msra.mxu0 0.0
    %321 = vmatprep.subr.mxu0 0.0
    %322 = vmatpush1.msra.mxu0 0.0
    %323 = vmatprep.subr.mxu0 0.0
    %324 = vmatpush1.msra.mxu0 0.0
    %325 = vmatprep.subr.mxu0 0.0
    %326 = vmatpush1.msra.mxu0 0.0
    %327 = vmatprep.subr.mxu0 0.0
    %328 = vmatpush1.msra.mxu0 0.0
    %329 = vmatprep.subr.mxu0 0.0
    %330 = vmatpush1.msra.mxu0 0.0
    %331 = vmatprep.subr.mxu0 0.0
    %332 = vmatpush1.msra.mxu0 0.0
    %333 = vmatprep.subr.mxu0 0.0
    %334 = vmatpush1.msra.mxu0 0.0
    %335 = vmatprep.subr.mxu0 0.0
    %336 = vmatpush1.msra.mxu0 0.0
    %337 = vmatprep.subr.mxu0 0.0
    %338 = vmatpush1.msra.mxu0 0.0
    %339 = vmatprep.subr.mxu0 0.0
    %340 = vmatpush1.msra.mxu0 0.0
    %341 = vmatprep.subr.mxu0 0.0
    %342 = vmatpush1.msra.mxu0 0.0
    %343 = vmatprep.subr.mxu0 0.0
    %344 = vmatpush1.msra.mxu0 0.0
    %345 = vmatprep.mubr.f32.mxu0 0.0
    %346 = vmatmul.mubr.f32.gmra.mrb[0].mxu0 %v252
    %v347 = vpop.f32.mrb[0].mxu0
    %v348 = vadd.f32 %v264, %v347
    %v349 = vpop.f32.mrb[0].mxu0
    %v350 = vadd.f32 %v268, %v349
    %351 = vmatprep.mubr.f32.mxu0 0.0
    %352 = vmatmul.mubr.f32.gmra.mrb[0].mxu0 %v253
    %v353 = vpop.f32.mrb[0].mxu0
    %v354 = vadd.f32 %v264, %v353
    %v355 = vpop.f32.mrb[0].mxu0
    %v356 = vadd.f32 %v268, %v355
    %357 = vmatprep.mubr.f32.mxu0 0.0
    %358 = vmatmul.mubr.f32.gmra.mrb[0].mxu0 %v254
    %v359 = vpop.f32.mrb[0].mxu0
    %v360 = vadd.f32 %v264, %v359
    %v361 = vpop.f32.mrb[0].mxu0
    %v362 = vadd.f32 %v268, %v361
    %363 = vmatprep.mubr.f32.mxu0 0.0
    %364 = vmatmul.mubr.f32.gmra.mrb[0].mxu0 %v255
    %v365 = vpop.f32.mrb[0].mxu0
    %v366 = vadd.f32 %v264, %v365
    %v367 = vpop.f32.mrb[0].mxu0
    %v368 = vadd.f32 %v268, %v367
    %369 = vmatprep.mubr.f32.mxu0 0.0
    %370 = vmatmul.mubr.f32.gmra.mrb[0].mxu0 %v256
    %v371 = vpop.f32.mrb[0].mxu0
    %v372 = vadd.f32 %v264, %v371
    %v373 = vpop.f32.mrb[0].mxu0
    %v374 = vadd.f32 %v268, %v373
    %375 = vmatprep.mubr.f32.mxu0 0.0
    %376 = vmatmul.mubr.f32.gmra.mrb[0].mxu0 %v257
    %v377 = vpop.f32.mrb[0].mxu0
    %v378 = vadd.f32 %v264, %v377
    %v379 = vpop.f32.mrb[0].mxu0
    %v380 = vadd.f32 %v268, %v379
    %381 = vmatprep.mubr.f32.mxu0 0.0
    %382 = vmatmul.mubr.f32.gmra.mrb[0].mxu0 %v258
    %v383 = vpop.f32.mrb[0].mxu0
    %v384 = vadd.f32 %v264, %v383
    %v385 = vpop.f32.mrb[0].mxu0
    %v386 = vadd.f32 %v268, %v385
    %387 = vmatprep.mubr.f32.mxu0 0.0
    %388 = vmatmul.mubr.f32.gmra.mrb[0].mxu0 %v259
    %v389 = vpop.f32.mrb[0].mxu0
    %v390 = vadd.f32 %v264, %v389
    %v391 = vpop.f32.mrb[0].mxu0
    %v392 = vadd.f32 %v268, %v391
    %393 = vdwg.mxu0
    %394 = vmatprep.subr.mxu0 %v126
    %395 = vmatpush1.msra.mxu0 %v125
    %396 = vmatprep.subr.mxu0 %v130
    %397 = vmatpush1.msra.mxu0 %v129
    %398 = vmatprep.subr.mxu0 %v134
    %399 = vmatpush1.msra.mxu0 %v133
    %400 = vmatprep.subr.mxu0 %v138
    %401 = vmatpush1.msra.mxu0 %v137
    %402 = vmatprep.subr.mxu0 %v142
    %403 = vmatpush1.msra.mxu0 %v141
    %404 = vmatprep.subr.mxu0 %v146
    %405 = vmatpush1.msra.mxu0 %v145
    %406 = vmatprep.subr.mxu0 %v150
    %407 = vmatpush1.msra.mxu0 %v149
    %408 = vmatprep.subr.mxu0 %v154
    %409 = vmatpush1.msra.mxu0 %v153
    %410 = vmatprep.subr.mxu0 %v158
    %411 = vmatpush1.msra.mxu0 %v157
    %412 = vmatprep.subr.mxu0 %v162
    %413 = vmatpush1.msra.mxu0 %v161
    %414 = vmatprep.subr.mxu0 %v166
    %415 = vmatpush1.msra.mxu0 %v165
    %416 = vmatprep.subr.mxu0 %v170
    %417 = vmatpush1.msra.mxu0 %v169
    %418 = vmatprep.subr.mxu0 %v174
    %419 = vmatpush1.msra.mxu0 %v173
    %420 = vmatprep.subr.mxu0 %v178
    %421 = vmatpush1.msra.mxu0 %v177
    %422 = vmatprep.subr.mxu0 %v182
    %423 = vmatpush1.msra.mxu0 %v181
    %424 = vmatprep.subr.mxu0 %v186
    %425 = vmatpush1.msra.mxu0 %v185
    %426 = vmatprep.subr.mxu0 0.0
    %427 = vmatpush1.msra.mxu0 0.0
    %428 = vmatprep.subr.mxu0 0.0
    %429 = vmatpush1.msra.mxu0 0.0
    %430 = vmatprep.subr.mxu0 0.0
    %431 = vmatpush1.msra.mxu0 0.0
    %432 = vmatprep.subr.mxu0 0.0
    %433 = vmatpush1.msra.mxu0 0.0
    %434 = vmatprep.subr.mxu0 0.0
    %435 = vmatpush1.msra.mxu0 0.0
    %436 = vmatprep.subr.mxu0 0.0
    %437 = vmatpush1.msra.mxu0 0.0
    %438 = vmatprep.subr.mxu0 0.0
    %439 = vmatpush1.msra.mxu0 0.0
    %440 = vmatprep.subr.mxu0 0.0
    %441 = vmatpush1.msra.mxu0 0.0
    %442 = vmatprep.subr.mxu0 0.0
    %443 = vmatpush1.msra.mxu0 0.0
    %444 = vmatprep.subr.mxu0 0.0
    %445 = vmatpush1.msra.mxu0 0.0
    %446 = vmatprep.subr.mxu0 0.0
    %447 = vmatpush1.msra.mxu0 0.0
    %448 = vmatprep.subr.mxu0 0.0
    %449 = vmatpush1.msra.mxu0 0.0
    %450 = vmatprep.subr.mxu0 0.0
    %451 = vmatpush1.msra.mxu0 0.0
    %452 = vmatprep.subr.mxu0 0.0
    %453 = vmatpush1.msra.mxu0 0.0
    %454 = vmatprep.subr.mxu0 0.0
    %455 = vmatpush1.msra.mxu0 0.0
    %456 = vmatprep.subr.mxu0 0.0
    %457 = vmatpush1.msra.mxu0 0.0
    %458 = vmatprep.mubr.f32.mxu0 0.0
    %459 = vmatmul.mubr.f32.gmra.mrb[0].mxu0 %v252
    %v460 = vpop.f32.mrb[0].mxu0
    %v461 = vadd.f32 %v272, %v460
    %v462 = vpop.f32.mrb[0].mxu0
    %v463 = vadd.f32 %v276, %v462
    %464 = vmatprep.mubr.f32.mxu0 0.0
    %465 = vmatmul.mubr.f32.gmra.mrb[0].mxu0 %v253
    %v466 = vpop.f32.mrb[0].mxu0
    %v467 = vadd.f32 %v272, %v466
    %v468 = vpop.f32.mrb[0].mxu0
    %v469 = vadd.f32 %v276, %v468
    %470 = vmatprep.mubr.f32.mxu0 0.0
    %471 = vmatmul.mubr.f32.gmra.mrb[0].mxu0 %v254
    %v472 = vpop.f32.mrb[0].mxu0
    %v473 = vadd.f32 %v272, %v472
    %v474 = vpop.f32.mrb[0].mxu0
    %v475 = vadd.f32 %v276, %v474
    %476 = vmatprep.mubr.f32.mxu0 0.0
    %477 = vmatmul.mubr.f32.gmra.mrb[0].mxu0 %v255
    %v478 = vpop.f32.mrb[0].mxu0
    %v479 = vadd.f32 %v272, %v478
    %v480 = vpop.f32.mrb[0].mxu0
    %v481 = vadd.f32 %v276, %v480
    %482 = vmatprep.mubr.f32.mxu0 0.0
    %483 = vmatmul.mubr.f32.gmra.mrb[0].mxu0 %v256
    %v484 = vpop.f32.mrb[0].mxu0
    %v485 = vadd.f32 %v272, %v484
    %v486 = vpop.f32.mrb[0].mxu0
    %v487 = vadd.f32 %v276, %v486
    %488 = vmatprep.mubr.f32.mxu0 0.0
    %489 = vmatmul.mubr.f32.gmra.mrb[0].mxu0 %v257
    %v490 = vpop.f32.mrb[0].mxu0
    %v491 = vadd.f32 %v272, %v490
    %v492 = vpop.f32.mrb[0].mxu0
    %v493 = vadd.f32 %v276, %v492
    %494 = vmatprep.mubr.f32.mxu0 0.0
    %495 = vmatmul.mubr.f32.gmra.mrb[0].mxu0 %v258
    %v496 = vpop.f32.mrb[0].mxu0
    %v497 = vadd.f32 %v272, %v496
    %v498 = vpop.f32.mrb[0].mxu0
    %v499 = vadd.f32 %v276, %v498
    %500 = vmatprep.mubr.f32.mxu0 0.0
    %501 = vmatmul.mubr.f32.gmra.mrb[0].mxu0 %v259
    %v502 = vpop.f32.mrb[0].mxu0
    %v503 = vadd.f32 %v272, %v502
    %v504 = vpop.f32.mrb[0].mxu0
    %v505 = vadd.f32 %v276, %v504
    %506 = vdwg.mxu0
    %507 = vst [vmem:[#allocation5] sm:$0xff] %v348
    %508 = vst [vmem:[#allocation5 + $0x8] sm:$0xff] %v350
    %509 = vst [vmem:[#allocation5 + $0x10] sm:$0xff] %v461
    %510 = vst [vmem:[#allocation5 + $0x18] sm:$0xff] %v463
    %511 = vst [vmem:[#allocation5 + $0x20] sm:$0xff] %v354
    %512 = vst [vmem:[#allocation5 + $0x28] sm:$0xff] %v356
    %513 = vst [vmem:[#allocation5 + $0x30] sm:$0xff] %v467
    %514 = vst [vmem:[#allocation5 + $0x38] sm:$0xff] %v469
    %515 = vst [vmem:[#allocation5 + $0x40] sm:$0xff] %v360
    %516 = vst [vmem:[#allocation5 + $0x48] sm:$0xff] %v362
    %517 = vst [vmem:[#allocation5 + $0x50] sm:$0xff] %v473
    %518 = vst [vmem:[#allocation5 + $0x58] sm:$0xff] %v475
    %519 = vst [vmem:[#allocation5 + $0x60] sm:$0xff] %v366
    %520 = vst [vmem:[#allocation5 + $0x68] sm:$0xff] %v368
    %521 = vst [vmem:[#allocation5 + $0x70] sm:$0xff] %v479
    %522 = vst [vmem:[#allocation5 + $0x78] sm:$0xff] %v481
    %523 = vst [vmem:[#allocation5 + $0x80] sm:$0xff] %v372
    %524 = vst [vmem:[#allocation5 + $0x88] sm:$0xff] %v374
    %525 = vst [vmem:[#allocation5 + $0x90] sm:$0xff] %v485
    %526 = vst [vmem:[#allocation5 + $0x98] sm:$0xff] %v487
    %527 = vst [vmem:[#allocation5 + $0xa0] sm:$0xff] %v378
    %528 = vst [vmem:[#allocation5 + $0xa8] sm:$0xff] %v380
    %529 = vst [vmem:[#allocation5 + $0xb0] sm:$0xff] %v491
    %530 = vst [vmem:[#allocation5 + $0xb8] sm:$0xff] %v493
    %531 = vst [vmem:[#allocation5 + $0xc0] sm:$0xff] %v384
    %532 = vst [vmem:[#allocation5 + $0xc8] sm:$0xff] %v386
    %533 = vst [vmem:[#allocation5 + $0xd0] sm:$0xff] %v497
    %534 = vst [vmem:[#allocation5 + $0xd8] sm:$0xff] %v499
    %535 = vst [vmem:[#allocation5 + $0xe0] sm:$0xff] %v390
    %536 = vst [vmem:[#allocation5 + $0xe8] sm:$0xff] %v392
    %537 = vst [vmem:[#allocation5 + $0xf0] sm:$0xff] %v503
    %538 = vst [vmem:[#allocation5 + $0xf8] sm:$0xff] %v505
    %v539 = vld [vmem:[#allocation2] sm:$0xff]
    %v540 = vld [vmem:[#allocation3] sm:$0xff]
    %v541 = vld [vmem:[#allocation5] sm:$0xff]
    %v542 = vld [vmem:[#allocation5 + $0x8] sm:$0xff]
    %v543 = vld [vmem:[#allocation5 + $0x10] sm:$0xff]
    %v544 = vld [vmem:[#allocation5 + $0x18] sm:$0xff]
    %545 = vmatprep.subr.mxu0 %v188
    %546 = vmatpush1.msra.mxu0 %v187
    %547 = vmatprep.subr.mxu0 %v192
    %548 = vmatpush1.msra.mxu0 %v191
    %549 = vmatprep.subr.mxu0 %v196
    %550 = vmatpush1.msra.mxu0 %v195
    %551 = vmatprep.subr.mxu0 %v200
    %552 = vmatpush1.msra.mxu0 %v199
    %553 = vmatprep.subr.mxu0 %v204
    %554 = vmatpush1.msra.mxu0 %v203
    %555 = vmatprep.subr.mxu0 %v208
    %556 = vmatpush1.msra.mxu0 %v207
    %557 = vmatprep.subr.mxu0 %v212
    %558 = vmatpush1.msra.mxu0 %v211
    %559 = vmatprep.subr.mxu0 %v216
    %560 = vmatpush1.msra.mxu0 %v215
    %561 = vmatprep.subr.mxu0 %v220
    %562 = vmatpush1.msra.mxu0 %v219
    %563 = vmatprep.subr.mxu0 %v224
    %564 = vmatpush1.msra.mxu0 %v223
    %565 = vmatprep.subr.mxu0 %v228
    %566 = vmatpush1.msra.mxu0 %v227
    %567 = vmatprep.subr.mxu0 %v232
    %568 = vmatpush1.msra.mxu0 %v231
    %569 = vmatprep.subr.mxu0 %v236
    %570 = vmatpush1.msra.mxu0 %v235
    %571 = vmatprep.subr.mxu0 %v240
    %572 = vmatpush1.msra.mxu0 %v239
    %573 = vmatprep.subr.mxu0 %v244
    %574 = vmatpush1.msra.mxu0 %v243
    %575 = vmatprep.subr.mxu0 %v248
    %576 = vmatpush1.msra.mxu0 %v247
    %577 = vmatprep.subr.mxu0 0.0
    %578 = vmatpush1.msra.mxu0 0.0
    %579 = vmatprep.subr.mxu0 0.0
    %580 = vmatpush1.msra.mxu0 0.0
    %581 = vmatprep.subr.mxu0 0.0
    %582 = vmatpush1.msra.mxu0 0.0
    %583 = vmatprep.subr.mxu0 0.0
    %584 = vmatpush1.msra.mxu0 0.0
    %585 = vmatprep.subr.mxu0 0.0
    %586 = vmatpush1.msra.mxu0 0.0
    %587 = vmatprep.subr.mxu0 0.0
    %588 = vmatpush1.msra.mxu0 0.0
    %589 = vmatprep.subr.mxu0 0.0
    %590 = vmatpush1.msra.mxu0 0.0
    %591 = vmatprep.subr.mxu0 0.0
    %592 = vmatpush1.msra.mxu0 0.0
    %593 = vmatprep.subr.mxu0 0.0
    %594 = vmatpush1.msra.mxu0 0.0
    %595 = vmatprep.subr.mxu0 0.0
    %596 = vmatpush1.msra.mxu0 0.0
    %597 = vmatprep.subr.mxu0 0.0
    %598 = vmatpush1.msra.mxu0 0.0
    %599 = vmatprep.subr.mxu0 0.0
    %600 = vmatpush1.msra.mxu0 0.0
    %601 = vmatprep.subr.mxu0 0.0
    %602 = vmatpush1.msra.mxu0 0.0
    %603 = vmatprep.subr.mxu0 0.0
    %604 = vmatpush1.msra.mxu0 0.0
    %605 = vmatprep.subr.mxu0 0.0
    %606 = vmatpush1.msra.mxu0 0.0
    %607 = vmatprep.subr.mxu0 0.0
    %608 = vmatpush1.msra.mxu0 0.0
    %609 = vmatprep.mubr.f32.mxu0 0.0
    %610 = vmatmul.mubr.f32.gmra.mrb[0].mxu0 %v539
    %v611 = vpop.f32.mrb[0].mxu0
    %v612 = vadd.f32 0.0, %v611
    %v613 = vpop.f32.mrb[0].mxu0
    %v614 = vadd.f32 0.0, %v613
    %615 = vdwg.mxu0
    %616 = vmatprep.subr.mxu0 %v190
    %617 = vmatpush1.msra.mxu0 %v189
    %618 = vmatprep.subr.mxu0 %v194
    %619 = vmatpush1.msra.mxu0 %v193
    %620 = vmatprep.subr.mxu0 %v198
    %621 = vmatpush1.msra.mxu0 %v197
    %622 = vmatprep.subr.mxu0 %v202
    %623 = vmatpush1.msra.mxu0 %v201
    %624 = vmatprep.subr.mxu0 %v206
    %625 = vmatpush1.msra.mxu0 %v205
    %626 = vmatprep.subr.mxu0 %v210
    %627 = vmatpush1.msra.mxu0 %v209
    %628 = vmatprep.subr.mxu0 %v214
    %629 = vmatpush1.msra.mxu0 %v213
    %630 = vmatprep.subr.mxu0 %v218
    %631 = vmatpush1.msra.mxu0 %v217
    %632 = vmatprep.subr.mxu0 %v222
    %633 = vmatpush1.msra.mxu0 %v221
    %634 = vmatprep.subr.mxu0 %v226
    %635 = vmatpush1.msra.mxu0 %v225
    %636 = vmatprep.subr.mxu0 %v230
    %637 = vmatpush1.msra.mxu0 %v229
    %638 = vmatprep.subr.mxu0 %v234
    %639 = vmatpush1.msra.mxu0 %v233
    %640 = vmatprep.subr.mxu0 %v238
    %641 = vmatpush1.msra.mxu0 %v237
    %642 = vmatprep.subr.mxu0 %v242
    %643 = vmatpush1.msra.mxu0 %v241
    %644 = vmatprep.subr.mxu0 %v246
    %645 = vmatpush1.msra.mxu0 %v245
    %646 = vmatprep.subr.mxu0 %v250
    %647 = vmatpush1.msra.mxu0 %v249
    %648 = vmatprep.subr.mxu0 0.0
    %649 = vmatpush1.msra.mxu0 0.0
    %650 = vmatprep.subr.mxu0 0.0
    %651 = vmatpush1.msra.mxu0 0.0
    %652 = vmatprep.subr.mxu0 0.0
    %653 = vmatpush1.msra.mxu0 0.0
    %654 = vmatprep.subr.mxu0 0.0
    %655 = vmatpush1.msra.mxu0 0.0
    %656 = vmatprep.subr.mxu0 0.0
    %657 = vmatpush1.msra.mxu0 0.0
    %658 = vmatprep.subr.mxu0 0.0
    %659 = vmatpush1.msra.mxu0 0.0
    %660 = vmatprep.subr.mxu0 0.0
    %661 = vmatpush1.msra.mxu0 0.0
    %662 = vmatprep.subr.mxu0 0.0
    %663 = vmatpush1.msra.mxu0 0.0
    %664 = vmatprep.subr.mxu0 0.0
    %665 = vmatpush1.msra.mxu0 0.0
    %666 = vmatprep.subr.mxu0 0.0
    %667 = vmatpush1.msra.mxu0 0.0
    %668 = vmatprep.subr.mxu0 0.0
    %669 = vmatpush1.msra.mxu0 0.0
    %670 = vmatprep.subr.mxu0 0.0
    %671 = vmatpush1.msra.mxu0 0.0
    %672 = vmatprep.subr.mxu0 0.0
    %673 = vmatpush1.msra.mxu0 0.0
    %674 = vmatprep.subr.mxu0 0.0
    %675 = vmatpush1.msra.mxu0 0.0
    %676 = vmatprep.subr.mxu0 0.0
    %677 = vmatpush1.msra.mxu0 0.0
    %678 = vmatprep.subr.mxu0 0.0
    %679 = vmatpush1.msra.mxu0 0.0
    %680 = vmatprep.mubr.f32.mxu0 0.0
    %681 = vmatmul.mubr.f32.gmra.mrb[0].mxu0 %v539
    %v682 = vpop.f32.mrb[0].mxu0
    %v683 = vadd.f32 0.0, %v682
    %v684 = vpop.f32.mrb[0].mxu0
    %v685 = vadd.f32 0.0, %v684
    %686 = vdwg.mxu0
    %v687 = vadd.f32 %v541, %v612
    %v688 = vadd.f32 %v542, %v614
    %v689 = vadd.f32 %v543, %v683
    %v690 = vadd.f32 %v544, %v685
    %v691 = vmul.f32 %v687, 0.5
    %v692 = vtanh.pop %v691
    %v693 = vmul.f32 %v692, 0.5
    %v694 = vadd.f32 %v693, 0.5
    %v695 = vmul.f32 %v688, 0.5
    %v696 = vtanh.pop %v695
    %v697 = vmul.f32 %v696, 0.5
    %v698 = vadd.f32 %v697, 0.5
    %v699 = vtanh.pop %v689
    %v700 = vmul.f32 %v690, 0.5
    %v701 = vtanh.pop %v700
    %v702 = vmul.f32 %v701, 0.5
    %v703 = vadd.f32 %v702, 0.5
    %v704 = vmul.f32 %v698, %v540
    %v705 = vmul.f32 %v694, %v699
    %v706 = vadd.f32 %v704, %v705
    %v707 = vtanh.pop %v706
    %v708 = vmul.f32 %v703, %v707
    %709 = vst [vmem:[#allocation4] sm:$0xff] %v708
    %s710 = scalar_lea.vmem [#allocation5], 32
    %v711 = vld [vmem:[%s710] sm:$0xff]
    %v712 = vld [vmem:[%s710 + $0x8] sm:$0xff]
    %v713 = vld [vmem:[%s710 + $0x10] sm:$0xff]
    %v714 = vld [vmem:[%s710 + $0x18] sm:$0xff]
    %715 = vmatprep.subr.mxu0 %v188
    %716 = vmatpush1.msra.mxu0 %v187
    %717 = vmatprep.subr.mxu0 %v192
    %718 = vmatpush1.msra.mxu0 %v191
    %719 = vmatprep.subr.mxu0 %v196
    %720 = vmatpush1.msra.mxu0 %v195
    %721 = vmatprep.subr.mxu0 %v200
    %722 = vmatpush1.msra.mxu0 %v199
    %723 = vmatprep.subr.mxu0 %v204
    %724 = vmatpush1.msra.mxu0 %v203
    %725 = vmatprep.subr.mxu0 %v208
    %726 = vmatpush1.msra.mxu0 %v207
    %727 = vmatprep.subr.mxu0 %v212
    %728 = vmatpush1.msra.mxu0 %v211
    %729 = vmatprep.subr.mxu0 %v216
    %730 = vmatpush1.msra.mxu0 %v215
    %731 = vmatprep.subr.mxu0 %v220
    %732 = vmatpush1.msra.mxu0 %v219
    %733 = vmatprep.subr.mxu0 %v224
    %734 = vmatpush1.msra.mxu0 %v223
    %735 = vmatprep.subr.mxu0 %v228
    %736 = vmatpush1.msra.mxu0 %v227
    %737 = vmatprep.subr.mxu0 %v232
    %738 = vmatpush1.msra.mxu0 %v231
    %739 = vmatprep.subr.mxu0 %v236
    %740 = vmatpush1.msra.mxu0 %v235
    %741 = vmatprep.subr.mxu0 %v240
    %742 = vmatpush1.msra.mxu0 %v239
    %743 = vmatprep.subr.mxu0 %v244
    %744 = vmatpush1.msra.mxu0 %v243
    %745 = vmatprep.subr.mxu0 %v248
    %746 = vmatpush1.msra.mxu0 %v247
    %747 = vmatprep.subr.mxu0 0.0
    %748 = vmatpush1.msra.mxu0 0.0
    %749 = vmatprep.subr.mxu0 0.0
    %750 = vmatpush1.msra.mxu0 0.0
    %751 = vmatprep.subr.mxu0 0.0
    %752 = vmatpush1.msra.mxu0 0.0
    %753 = vmatprep.subr.mxu0 0.0
    %754 = vmatpush1.msra.mxu0 0.0
    %755 = vmatprep.subr.mxu0 0.0
    %756 = vmatpush1.msra.mxu0 0.0
    %757 = vmatprep.subr.mxu0 0.0
    %758 = vmatpush1.msra.mxu0 0.0
    %759 = vmatprep.subr.mxu0 0.0
    %760 = vmatpush1.msra.mxu0 0.0
    %761 = vmatprep.subr.mxu0 0.0
    %762 = vmatpush1.msra.mxu0 0.0
    %763 = vmatprep.subr.mxu0 0.0
    %764 = vmatpush1.msra.mxu0 0.0
    %765 = vmatprep.subr.mxu0 0.0
    %766 = vmatpush1.msra.mxu0 0.0
    %767 = vmatprep.subr.mxu0 0.0
    %768 = vmatpush1.msra.mxu0 0.0
    %769 = vmatprep.subr.mxu0 0.0
    %770 = vmatpush1.msra.mxu0 0.0
    %771 = vmatprep.subr.mxu0 0.0
    %772 = vmatpush1.msra.mxu0 0.0
    %773 = vmatprep.subr.mxu0 0.0
    %774 = vmatpush1.msra.mxu0 0.0
    %775 = vmatprep.subr.mxu0 0.0
    %776 = vmatpush1.msra.mxu0 0.0
    %777 = vmatprep.subr.mxu0 0.0
    %778 = vmatpush1.msra.mxu0 0.0
    %779 = vmatprep.mubr.f32.mxu0 0.0
    %780 = vmatmul.mubr.f32.gmra.mrb[0].mxu0 %v708
    %v781 = vpop.f32.mrb[0].mxu0
    %v782 = vadd.f32 0.0, %v781
    %v783 = vpop.f32.mrb[0].mxu0
    %v784 = vadd.f32 0.0, %v783
    %785 = vdwg.mxu0
    %786 = vmatprep.subr.mxu0 %v190
    %787 = vmatpush1.msra.mxu0 %v189
    %788 = vmatprep.subr.mxu0 %v194
    %789 = vmatpush1.msra.mxu0 %v193
    %790 = vmatprep.subr.mxu0 %v198
    %791 = vmatpush1.msra.mxu0 %v197
    %792 = vmatprep.subr.mxu0 %v202
    %793 = vmatpush1.msra.mxu0 %v201
    %794 = vmatprep.subr.mxu0 %v206
    %795 = vmatpush1.msra.mxu0 %v205
    %796 = vmatprep.subr.mxu0 %v210
    %797 = vmatpush1.msra.mxu0 %v209
    %798 = vmatprep.subr.mxu0 %v214
    %799 = vmatpush1.msra.mxu0 %v213
    %800 = vmatprep.subr.mxu0 %v218
    %801 = vmatpush1.msra.mxu0 %v217
    %802 = vmatprep.subr.mxu0 %v222
    %803 = vmatpush1.msra.mxu0 %v221
    %804 = vmatprep.subr.mxu0 %v226
    %805 = vmatpush1.msra.mxu0 %v225
    %806 = vmatprep.subr.mxu0 %v230
    %807 = vmatpush1.msra.mxu0 %v229
    %808 = vmatprep.subr.mxu0 %v234
    %809 = vmatpush1.msra.mxu0 %v233
    %810 = vmatprep.subr.mxu0 %v238
    %811 = vmatpush1.msra.mxu0 %v237
    %812 = vmatprep.subr.mxu0 %v242
    %813 = vmatpush1.msra.mxu0 %v241
    %814 = vmatprep.subr.mxu0 %v246
    %815 = vmatpush1.msra.mxu0 %v245
    %816 = vmatprep.subr.mxu0 %v250
    %817 = vmatpush1.msra.mxu0 %v249
    %818 = vmatprep.subr.mxu0 0.0
    %819 = vmatpush1.msra.mxu0 0.0
    %820 = vmatprep.subr.mxu0 0.0
    %821 = vmatpush1.msra.mxu0 0.0
    %822 = vmatprep.subr.mxu0 0.0
    %823 = vmatpush1.msra.mxu0 0.0
    %824 = vmatprep.subr.mxu0 0.0
    %825 = vmatpush1.msra.mxu0 0.0
    %826 = vmatprep.subr.mxu0 0.0
    %827 = vmatpush1.msra.mxu0 0.0
    %828 = vmatprep.subr.mxu0 0.0
    %829 = vmatpush1.msra.mxu0 0.0
    %830 = vmatprep.subr.mxu0 0.0
    %831 = vmatpush1.msra.mxu0 0.0
    %832 = vmatprep.subr.mxu0 0.0
    %833 = vmatpush1.msra.mxu0 0.0
    %834 = vmatprep.subr.mxu0 0.0
    %835 = vmatpush1.msra.mxu0 0.0
    %836 = vmatprep.subr.mxu0 0.0
    %837 = vmatpush1.msra.mxu0 0.0
    %838 = vmatprep.subr.mxu0 0.0
    %839 = vmatpush1.msra.mxu0 0.0
    %840 = vmatprep.subr.mxu0 0.0
    %841 = vmatpush1.msra.mxu0 0.0
    %842 = vmatprep.subr.mxu0 0.0
    %843 = vmatpush1.msra.mxu0 0.0
    %844 = vmatprep.subr.mxu0 0.0
    %845 = vmatpush1.msra.mxu0 0.0
    %846 = vmatprep.subr.mxu0 0.0
    %847 = vmatpush1.msra.mxu0 0.0
    %848 = vmatprep.subr.mxu0 0.0
    %849 = vmatpush1.msra.mxu0 0.0
    %850 = vmatprep.mubr.f32.mxu0 0.0
    %851 = vmatmul.mubr.f32.gmra.mrb[0].mxu0 %v708
    %v852 = vpop.f32.mrb[0].mxu0
    %v853 = vadd.f32 0.0, %v852
    %v854 = vpop.f32.mrb[0].mxu0
    %v855 = vadd.f32 0.0, %v854
    %856 = vdwg.mxu0
    %v857 = vadd.f32 %v711, %v782
    %v858 = vadd.f32 %v712, %v784
    %v859 = vadd.f32 %v713, %v853
    %v860 = vadd.f32 %v714, %v855
    %v861 = vmul.f32 %v857, 0.5
    %v862 = vtanh.pop %v861
    %v863 = vmul.f32 %v862, 0.5
    %v864 = vadd.f32 %v863, 0.5
    %v865 = vmul.f32 %v858, 0.5
    %v866 = vtanh.pop %v865
    %v867 = vmul.f32 %v866, 0.5
    %v868 = vadd.f32 %v867, 0.5
    %v869 = vtanh.pop %v859
    %v870 = vmul.f32 %v860, 0.5
    %v871 = vtanh.pop %v870
    %v872 = vmul.f32 %v871, 0.5
    %v873 = vadd.f32 %v872, 0.5
    %v874 = vmul.f32 %v868, %v706
    %v875 = vmul.f32 %v864, %v869
    %v876 = vadd.f32 %v874, %v875
    %v877 = vtanh.pop %v876
    %v878 = vmul.f32 %v873, %v877
    %s879 = scalar_lea.vmem [#allocation4], 8
    %880 = vst [vmem:[%s879] sm:$0xff] %v878
    %s881 = scalar_lea.vmem [#allocation5], 64
    %v882 = vld [vmem:[%s881] sm:$0xff]
    %v883 = vld [vmem:[%s881 + $0x8] sm:$0xff]
    %v884 = vld [vmem:[%s881 + $0x10] sm:$0xff]
    %v885 = vld [vmem:[%s881 + $0x18] sm:$0xff]
    %886 = vmatprep.subr.mxu0 %v188
    %887 = vmatpush1.msra.mxu0 %v187
    %888 = vmatprep.subr.mxu0 %v192
    %889 = vmatpush1.msra.mxu0 %v191
    %890 = vmatprep.subr.mxu0 %v196
    %891 = vmatpush1.msra.mxu0 %v195
    %892 = vmatprep.subr.mxu0 %v200
    %893 = vmatpush1.msra.mxu0 %v199
    %894 = vmatprep.subr.mxu0 %v204
    %895 = vmatpush1.msra.mxu0 %v203
    %896 = vmatprep.subr.mxu0 %v208
    %897 = vmatpush1.msra.mxu0 %v207
    %898 = vmatprep.subr.mxu0 %v212
    %899 = vmatpush1.msra.mxu0 %v211
    %900 = vmatprep.subr.mxu0 %v216
    %901 = vmatpush1.msra.mxu0 %v215
    %902 = vmatprep.subr.mxu0 %v220
    %903 = vmatpush1.msra.mxu0 %v219
    %904 = vmatprep.subr.mxu0 %v224
    %905 = vmatpush1.msra.mxu0 %v223
    %906 = vmatprep.subr.mxu0 %v228
    %907 = vmatpush1.msra.mxu0 %v227
    %908 = vmatprep.subr.mxu0 %v232
    %909 = vmatpush1.msra.mxu0 %v231
    %910 = vmatprep.subr.mxu0 %v236
    %911 = vmatpush1.msra.mxu0 %v235
    %912 = vmatprep.subr.mxu0 %v240
    %913 = vmatpush1.msra.mxu0 %v239
    %914 = vmatprep.subr.mxu0 %v244
    %915 = vmatpush1.msra.mxu0 %v243
    %916 = vmatprep.subr.mxu0 %v248
    %917 = vmatpush1.msra.mxu0 %v247
    %918 = vmatprep.subr.mxu0 0.0
    %919 = vmatpush1.msra.mxu0 0.0
    %920 = vmatprep.subr.mxu0 0.0
    %921 = vmatpush1.msra.mxu0 0.0
    %922 = vmatprep.subr.mxu0 0.0
    %923 = vmatpush1.msra.mxu0 0.0
    %924 = vmatprep.subr.mxu0 0.0
    %925 = vmatpush1.msra.mxu0 0.0
    %926 = vmatprep.subr.mxu0 0.0
    %927 = vmatpush1.msra.mxu0 0.0
    %928 = vmatprep.subr.mxu0 0.0
    %929 = vmatpush1.msra.mxu0 0.0
    %930 = vmatprep.subr.mxu0 0.0
    %931 = vmatpush1.msra.mxu0 0.0
    %932 = vmatprep.subr.mxu0 0.0
    %933 = vmatpush1.msra.mxu0 0.0
    %934 = vmatprep.subr.mxu0 0.0
    %935 = vmatpush1.msra.mxu0 0.0
    %936 = vmatprep.subr.mxu0 0.0
    %937 = vmatpush1.msra.mxu0 0.0
    %938 = vmatprep.subr.mxu0 0.0
    %939 = vmatpush1.msra.mxu0 0.0
    %940 = vmatprep.subr.mxu0 0.0
    %941 = vmatpush1.msra.mxu0 0.0
    %942 = vmatprep.subr.mxu0 0.0
    %943 = vmatpush1.msra.mxu0 0.0
    %944 = vmatprep.subr.mxu0 0.0
    %945 = vmatpush1.msra.mxu0 0.0
    %946 = vmatprep.subr.mxu0 0.0
    %947 = vmatpush1.msra.mxu0 0.0
    %948 = vmatprep.subr.mxu0 0.0
    %949 = vmatpush1.msra.mxu0 0.0
    %950 = vmatprep.mubr.f32.mxu0 0.0
    %951 = vmatmul.mubr.f32.gmra.mrb[0].mxu0 %v878
    %v952 = vpop.f32.mrb[0].mxu0
    %v953 = vadd.f32 0.0, %v952
    %v954 = vpop.f32.mrb[0].mxu0
    %v955 = vadd.f32 0.0, %v954
    %956 = vdwg.mxu0
    %957 = vmatprep.subr.mxu0 %v190
    %958 = vmatpush1.msra.mxu0 %v189
    %959 = vmatprep.subr.mxu0 %v194
    %960 = vmatpush1.msra.mxu0 %v193
    %961 = vmatprep.subr.mxu0 %v198
    %962 = vmatpush1.msra.mxu0 %v197
    %963 = vmatprep.subr.mxu0 %v202
    %964 = vmatpush1.msra.mxu0 %v201
    %965 = vmatprep.subr.mxu0 %v206
    %966 = vmatpush1.msra.mxu0 %v205
    %967 = vmatprep.subr.mxu0 %v210
    %968 = vmatpush1.msra.mxu0 %v209
    %969 = vmatprep.subr.mxu0 %v214
    %970 = vmatpush1.msra.mxu0 %v213
    %971 = vmatprep.subr.mxu0 %v218
    %972 = vmatpush1.msra.mxu0 %v217
    %973 = vmatprep.subr.mxu0 %v222
    %974 = vmatpush1.msra.mxu0 %v221
    %975 = vmatprep.subr.mxu0 %v226
    %976 = vmatpush1.msra.mxu0 %v225
    %977 = vmatprep.subr.mxu0 %v230
    %978 = vmatpush1.msra.mxu0 %v229
    %979 = vmatprep.subr.mxu0 %v234
    %980 = vmatpush1.msra.mxu0 %v233
    %981 = vmatprep.subr.mxu0 %v238
    %982 = vmatpush1.msra.mxu0 %v237
    %983 = vmatprep.subr.mxu0 %v242
    %984 = vmatpush1.msra.mxu0 %v241
    %985 = vmatprep.subr.mxu0 %v246
    %986 = vmatpush1.msra.mxu0 %v245
    %987 = vmatprep.subr.mxu0 %v250
    %988 = vmatpush1.msra.mxu0 %v249
    %989 = vmatprep.subr.mxu0 0.0
    %990 = vmatpush1.msra.mxu0 0.0
    %991 = vmatprep.subr.mxu0 0.0
    %992 = vmatpush1.msra.mxu0 0.0
    %993 = vmatprep.subr.mxu0 0.0
    %994 = vmatpush1.msra.mxu0 0.0
    %995 = vmatprep.subr.mxu0 0.0
    %996 = vmatpush1.msra.mxu0 0.0
    %997 = vmatprep.subr.mxu0 0.0
    %998 = vmatpush1.msra.mxu0 0.0
    %999 = vmatprep.subr.mxu0 0.0
    %1000 = vmatpush1.msra.mxu0 0.0
    %1001 = vmatprep.subr.mxu0 0.0
    %1002 = vmatpush1.msra.mxu0 0.0
    %1003 = vmatprep.subr.mxu0 0.0
    %1004 = vmatpush1.msra.mxu0 0.0
    %1005 = vmatprep.subr.mxu0 0.0
    %1006 = vmatpush1.msra.mxu0 0.0
    %1007 = vmatprep.subr.mxu0 0.0
    %1008 = vmatpush1.msra.mxu0 0.0
    %1009 = vmatprep.subr.mxu0 0.0
    %1010 = vmatpush1.msra.mxu0 0.0
    %1011 = vmatprep.subr.mxu0 0.0
    %1012 = vmatpush1.msra.mxu0 0.0
    %1013 = vmatprep.subr.mxu0 0.0
    %1014 = vmatpush1.msra.mxu0 0.0
    %1015 = vmatprep.subr.mxu0 0.0
    %1016 = vmatpush1.msra.mxu0 0.0
    %1017 = vmatprep.subr.mxu0 0.0
    %1018 = vmatpush1.msra.mxu0 0.0
    %1019 = vmatprep.subr.mxu0 0.0
    %1020 = vmatpush1.msra.mxu0 0.0
    %1021 = vmatprep.mubr.f32.mxu0 0.0
    %1022 = vmatmul.mubr.f32.gmra.mrb[0].mxu0 %v878
    %v1023 = vpop.f32.mrb[0].mxu0
    %v1024 = vadd.f32 0.0, %v1023
    %v1025 = vpop.f32.mrb[0].mxu0
    %v1026 = vadd.f32 0.0, %v1025
    %1027 = vdwg.mxu0
    %v1028 = vadd.f32 %v882, %v953
    %v1029 = vadd.f32 %v883, %v955
    %v1030 = vadd.f32 %v884, %v1024
    %v1031 = vadd.f32 %v885, %v1026
    %v1032 = vmul.f32 %v1028, 0.5
    %v1033 = vtanh.pop %v1032
    %v1034 = vmul.f32 %v1033, 0.5
    %v1035 = vadd.f32 %v1034, 0.5
    %v1036 = vmul.f32 %v1029, 0.5
    %v1037 = vtanh.pop %v1036
    %v1038 = vmul.f32 %v1037, 0.5
    %v1039 = vadd.f32 %v1038, 0.5
    %v1040 = vtanh.pop %v1030
    %v1041 = vmul.f32 %v1031, 0.5
    %v1042 = vtanh.pop %v1041
    %v1043 = vmul.f32 %v1042, 0.5
    %v1044 = vadd.f32 %v1043, 0.5
    %v1045 = vmul.f32 %v1039, %v876
    %v1046 = vmul.f32 %v1035, %v1040
    %v1047 = vadd.f32 %v1045, %v1046
    %v1048 = vtanh.pop %v1047
    %v1049 = vmul.f32 %v1044, %v1048
    %s1050 = scalar_lea.vmem [#allocation4], 16
    %1051 = vst [vmem:[%s1050] sm:$0xff] %v1049
    %s1052 = scalar_lea.vmem [#allocation5], 96
    %v1053 = vld [vmem:[%s1052] sm:$0xff]
    %v1054 = vld [vmem:[%s1052 + $0x8] sm:$0xff]
    %v1055 = vld [vmem:[%s1052 + $0x10] sm:$0xff]
    %v1056 = vld [vmem:[%s1052 + $0x18] sm:$0xff]
    %1057 = vmatprep.subr.mxu0 %v188
    %1058 = vmatpush1.msra.mxu0 %v187
    %1059 = vmatprep.subr.mxu0 %v192
    %1060 = vmatpush1.msra.mxu0 %v191
    %1061 = vmatprep.subr.mxu0 %v196
    %1062 = vmatpush1.msra.mxu0 %v195
    %1063 = vmatprep.subr.mxu0 %v200
    %1064 = vmatpush1.msra.mxu0 %v199
    %1065 = vmatprep.subr.mxu0 %v204
    %1066 = vmatpush1.msra.mxu0 %v203
    %1067 = vmatprep.subr.mxu0 %v208
    %1068 = vmatpush1.msra.mxu0 %v207
    %1069 = vmatprep.subr.mxu0 %v212
    %1070 = vmatpush1.msra.mxu0 %v211
    %1071 = vmatprep.subr.mxu0 %v216
    %1072 = vmatpush1.msra.mxu0 %v215
    %1073 = vmatprep.subr.mxu0 %v220
    %1074 = vmatpush1.msra.mxu0 %v219
    %1075 = vmatprep.subr.mxu0 %v224
    %1076 = vmatpush1.msra.mxu0 %v223
    %1077 = vmatprep.subr.mxu0 %v228
    %1078 = vmatpush1.msra.mxu0 %v227
    %1079 = vmatprep.subr.mxu0 %v232
    %1080 = vmatpush1.msra.mxu0 %v231
    %1081 = vmatprep.subr.mxu0 %v236
    %1082 = vmatpush1.msra.mxu0 %v235
    %1083 = vmatprep.subr.mxu0 %v240
    %1084 = vmatpush1.msra.mxu0 %v239
    %1085 = vmatprep.subr.mxu0 %v244
    %1086 = vmatpush1.msra.mxu0 %v243
    %1087 = vmatprep.subr.mxu0 %v248
    %1088 = vmatpush1.msra.mxu0 %v247
    %1089 = vmatprep.subr.mxu0 0.0
    %1090 = vmatpush1.msra.mxu0 0.0
    %1091 = vmatprep.subr.mxu0 0.0
    %1092 = vmatpush1.msra.mxu0 0.0
    %1093 = vmatprep.subr.mxu0 0.0
    %1094 = vmatpush1.msra.mxu0 0.0
    %1095 = vmatprep.subr.mxu0 0.0
    %1096 = vmatpush1.msra.mxu0 0.0
    %1097 = vmatprep.subr.mxu0 0.0
    %1098 = vmatpush1.msra.mxu0 0.0
    %1099 = vmatprep.subr.mxu0 0.0
    %1100 = vmatpush1.msra.mxu0 0.0
    %1101 = vmatprep.subr.mxu0 0.0
    %1102 = vmatpush1.msra.mxu0 0.0
    %1103 = vmatprep.subr.mxu0 0.0
    %1104 = vmatpush1.msra.mxu0 0.0
    %1105 = vmatprep.subr.mxu0 0.0
    %1106 = vmatpush1.msra.mxu0 0.0
    %1107 = vmatprep.subr.mxu0 0.0
    %1108 = vmatpush1.msra.mxu0 0.0
    %1109 = vmatprep.subr.mxu0 0.0
    %1110 = vmatpush1.msra.mxu0 0.0
    %1111 = vmatprep.subr.mxu0 0.0
    %1112 = vmatpush1.msra.mxu0 0.0
    %1113 = vmatprep.subr.mxu0 0.0
    %1114 = vmatpush1.msra.mxu0 0.0
    %1115 = vmatprep.subr.mxu0 0.0
    %1116 = vmatpush1.msra.mxu0 0.0
    %1117 = vmatprep.subr.mxu0 0.0
    %1118 = vmatpush1.msra.mxu0 0.0
    %1119 = vmatprep.subr.mxu0 0.0
    %1120 = vmatpush1.msra.mxu0 0.0
    %1121 = vmatprep.mubr.f32.mxu0 0.0
    %1122 = vmatmul.mubr.f32.gmra.mrb[0].mxu0 %v1049
    %v1123 = vpop.f32.mrb[0].mxu0
    %v1124 = vadd.f32 0.0, %v1123
    %v1125 = vpop.f32.mrb[0].mxu0
    %v1126 = vadd.f32 0.0, %v1125
    %1127 = vdwg.mxu0
    %1128 = vmatprep.subr.mxu0 %v190
    %1129 = vmatpush1.msra.mxu0 %v189
    %1130 = vmatprep.subr.mxu0 %v194
    %1131 = vmatpush1.msra.mxu0 %v193
    %1132 = vmatprep.subr.mxu0 %v198
    %1133 = vmatpush1.msra.mxu0 %v197
    %1134 = vmatprep.subr.mxu0 %v202
    %1135 = vmatpush1.msra.mxu0 %v201
    %1136 = vmatprep.subr.mxu0 %v206
    %1137 = vmatpush1.msra.mxu0 %v205
    %1138 = vmatprep.subr.mxu0 %v210
    %1139 = vmatpush1.msra.mxu0 %v209
    %1140 = vmatprep.subr.mxu0 %v214
    %1141 = vmatpush1.msra.mxu0 %v213
    %1142 = vmatprep.subr.mxu0 %v218
    %1143 = vmatpush1.msra.mxu0 %v217
    %1144 = vmatprep.subr.mxu0 %v222
    %1145 = vmatpush1.msra.mxu0 %v221
    %1146 = vmatprep.subr.mxu0 %v226
    %1147 = vmatpush1.msra.mxu0 %v225
    %1148 = vmatprep.subr.mxu0 %v230
    %1149 = vmatpush1.msra.mxu0 %v229
    %1150 = vmatprep.subr.mxu0 %v234
    %1151 = vmatpush1.msra.mxu0 %v233
    %1152 = vmatprep.subr.mxu0 %v238
    %1153 = vmatpush1.msra.mxu0 %v237
    %1154 = vmatprep.subr.mxu0 %v242
    %1155 = vmatpush1.msra.mxu0 %v241
    %1156 = vmatprep.subr.mxu0 %v246
    %1157 = vmatpush1.msra.mxu0 %v245
    %1158 = vmatprep.subr.mxu0 %v250
    %1159 = vmatpush1.msra.mxu0 %v249
    %1160 = vmatprep.subr.mxu0 0.0
    %1161 = vmatpush1.msra.mxu0 0.0
    %1162 = vmatprep.subr.mxu0 0.0
    %1163 = vmatpush1.msra.mxu0 0.0
    %1164 = vmatprep.subr.mxu0 0.0
    %1165 = vmatpush1.msra.mxu0 0.0
    %1166 = vmatprep.subr.mxu0 0.0
    %1167 = vmatpush1.msra.mxu0 0.0
    %1168 = vmatprep.subr.mxu0 0.0
    %1169 = vmatpush1.msra.mxu0 0.0
    %1170 = vmatprep.subr.mxu0 0.0
    %1171 = vmatpush1.msra.mxu0 0.0
    %1172 = vmatprep.subr.mxu0 0.0
    %1173 = vmatpush1.msra.mxu0 0.0
    %1174 = vmatprep.subr.mxu0 0.0
    %1175 = vmatpush1.msra.mxu0 0.0
    %1176 = vmatprep.subr.mxu0 0.0
    %1177 = vmatpush1.msra.mxu0 0.0
    %1178 = vmatprep.subr.mxu0 0.0
    %1179 = vmatpush1.msra.mxu0 0.0
    %1180 = vmatprep.subr.mxu0 0.0
    %1181 = vmatpush1.msra.mxu0 0.0
    %1182 = vmatprep.subr.mxu0 0.0
    %1183 = vmatpush1.msra.mxu0 0.0
    %1184 = vmatprep.subr.mxu0 0.0
    %1185 = vmatpush1.msra.mxu0 0.0
    %1186 = vmatprep.subr.mxu0 0.0
    %1187 = vmatpush1.msra.mxu0 0.0
    %1188 = vmatprep.subr.mxu0 0.0
    %1189 = vmatpush1.msra.mxu0 0.0
    %1190 = vmatprep.subr.mxu0 0.0
    %1191 = vmatpush1.msra.mxu0 0.0
    %1192 = vmatprep.mubr.f32.mxu0 0.0
    %1193 = vmatmul.mubr.f32.gmra.mrb[0].mxu0 %v1049
    %v1194 = vpop.f32.mrb[0].mxu0
    %v1195 = vadd.f32 0.0, %v1194
    %v1196 = vpop.f32.mrb[0].mxu0
    %v1197 = vadd.f32 0.0, %v1196
    %1198 = vdwg.mxu0
    %v1199 = vadd.f32 %v1053, %v1124
    %v1200 = vadd.f32 %v1054, %v1126
    %v1201 = vadd.f32 %v1055, %v1195
    %v1202 = vadd.f32 %v1056, %v1197
    %v1203 = vmul.f32 %v1199, 0.5
    %v1204 = vtanh.pop %v1203
    %v1205 = vmul.f32 %v1204, 0.5
    %v1206 = vadd.f32 %v1205, 0.5
    %v1207 = vmul.f32 %v1200, 0.5
    %v1208 = vtanh.pop %v1207
    %v1209 = vmul.f32 %v1208, 0.5
    %v1210 = vadd.f32 %v1209, 0.5
    %v1211 = vtanh.pop %v1201
    %v1212 = vmul.f32 %v1202, 0.5
    %v1213 = vtanh.pop %v1212
    %v1214 = vmul.f32 %v1213, 0.5
    %v1215 = vadd.f32 %v1214, 0.5
    %v1216 = vmul.f32 %v1210, %v1047
    %v1217 = vmul.f32 %v1206, %v1211
    %v1218 = vadd.f32 %v1216, %v1217
    %v1219 = vtanh.pop %v1218
    %v1220 = vmul.f32 %v1215, %v1219
    %s1221 = scalar_lea.vmem [#allocation4], 24
    %1222 = vst [vmem:[%s1221] sm:$0xff] %v1220
    %s1223 = scalar_lea.vmem [#allocation5], 128
    %v1224 = vld [vmem:[%s1223] sm:$0xff]
    %v1225 = vld [vmem:[%s1223 + $0x8] sm:$0xff]
    %v1226 = vld [vmem:[%s1223 + $0x10] sm:$0xff]
    %v1227 = vld [vmem:[%s1223 + $0x18] sm:$0xff]
    %1228 = vmatprep.subr.mxu0 %v188
    %1229 = vmatpush1.msra.mxu0 %v187
    %1230 = vmatprep.subr.mxu0 %v192
    %1231 = vmatpush1.msra.mxu0 %v191
    %1232 = vmatprep.subr.mxu0 %v196
    %1233 = vmatpush1.msra.mxu0 %v195
    %1234 = vmatprep.subr.mxu0 %v200
    %1235 = vmatpush1.msra.mxu0 %v199
    %1236 = vmatprep.subr.mxu0 %v204
    %1237 = vmatpush1.msra.mxu0 %v203
    %1238 = vmatprep.subr.mxu0 %v208
    %1239 = vmatpush1.msra.mxu0 %v207
    %1240 = vmatprep.subr.mxu0 %v212
    %1241 = vmatpush1.msra.mxu0 %v211
    %1242 = vmatprep.subr.mxu0 %v216
    %1243 = vmatpush1.msra.mxu0 %v215
    %1244 = vmatprep.subr.mxu0 %v220
    %1245 = vmatpush1.msra.mxu0 %v219
    %1246 = vmatprep.subr.mxu0 %v224
    %1247 = vmatpush1.msra.mxu0 %v223
    %1248 = vmatprep.subr.mxu0 %v228
    %1249 = vmatpush1.msra.mxu0 %v227
    %1250 = vmatprep.subr.mxu0 %v232
    %1251 = vmatpush1.msra.mxu0 %v231
    %1252 = vmatprep.subr.mxu0 %v236
    %1253 = vmatpush1.msra.mxu0 %v235
    %1254 = vmatprep.subr.mxu0 %v240
    %1255 = vmatpush1.msra.mxu0 %v239
    %1256 = vmatprep.subr.mxu0 %v244
    %1257 = vmatpush1.msra.mxu0 %v243
    %1258 = vmatprep.subr.mxu0 %v248
    %1259 = vmatpush1.msra.mxu0 %v247
    %1260 = vmatprep.subr.mxu0 0.0
    %1261 = vmatpush1.msra.mxu0 0.0
    %1262 = vmatprep.subr.mxu0 0.0
    %1263 = vmatpush1.msra.mxu0 0.0
    %1264 = vmatprep.subr.mxu0 0.0
    %1265 = vmatpush1.msra.mxu0 0.0
    %1266 = vmatprep.subr.mxu0 0.0
    %1267 = vmatpush1.msra.mxu0 0.0
    %1268 = vmatprep.subr.mxu0 0.0
    %1269 = vmatpush1.msra.mxu0 0.0
    %1270 = vmatprep.subr.mxu0 0.0
    %1271 = vmatpush1.msra.mxu0 0.0
    %1272 = vmatprep.subr.mxu0 0.0
    %1273 = vmatpush1.msra.mxu0 0.0
    %1274 = vmatprep.subr.mxu0 0.0
    %1275 = vmatpush1.msra.mxu0 0.0
    %1276 = vmatprep.subr.mxu0 0.0
    %1277 = vmatpush1.msra.mxu0 0.0
    %1278 = vmatprep.subr.mxu0 0.0
    %1279 = vmatpush1.msra.mxu0 0.0
    %1280 = vmatprep.subr.mxu0 0.0
    %1281 = vmatpush1.msra.mxu0 0.0
    %1282 = vmatprep.subr.mxu0 0.0
    %1283 = vmatpush1.msra.mxu0 0.0
    %1284 = vmatprep.subr.mxu0 0.0
    %1285 = vmatpush1.msra.mxu0 0.0
    %1286 = vmatprep.subr.mxu0 0.0
    %1287 = vmatpush1.msra.mxu0 0.0
    %1288 = vmatprep.subr.mxu0 0.0
    %1289 = vmatpush1.msra.mxu0 0.0
    %1290 = vmatprep.subr.mxu0 0.0
    %1291 = vmatpush1.msra.mxu0 0.0
    %1292 = vmatprep.mubr.f32.mxu0 0.0
    %1293 = vmatmul.mubr.f32.gmra.mrb[0].mxu0 %v1220
    %v1294 = vpop.f32.mrb[0].mxu0
    %v1295 = vadd.f32 0.0, %v1294
    %v1296 = vpop.f32.mrb[0].mxu0
    %v1297 = vadd.f32 0.0, %v1296
    %1298 = vdwg.mxu0
    %1299 = vmatprep.subr.mxu0 %v190
    %1300 = vmatpush1.msra.mxu0 %v189
    %1301 = vmatprep.subr.mxu0 %v194
    %1302 = vmatpush1.msra.mxu0 %v193
    %1303 = vmatprep.subr.mxu0 %v198
    %1304 = vmatpush1.msra.mxu0 %v197
    %1305 = vmatprep.subr.mxu0 %v202
    %1306 = vmatpush1.msra.mxu0 %v201
    %1307 = vmatprep.subr.mxu0 %v206
    %1308 = vmatpush1.msra.mxu0 %v205
    %1309 = vmatprep.subr.mxu0 %v210
    %1310 = vmatpush1.msra.mxu0 %v209
    %1311 = vmatprep.subr.mxu0 %v214
    %1312 = vmatpush1.msra.mxu0 %v213
    %1313 = vmatprep.subr.mxu0 %v218
    %1314 = vmatpush1.msra.mxu0 %v217
    %1315 = vmatprep.subr.mxu0 %v222
    %1316 = vmatpush1.msra.mxu0 %v221
    %1317 = vmatprep.subr.mxu0 %v226
    %1318 = vmatpush1.msra.mxu0 %v225
    %1319 = vmatprep.subr.mxu0 %v230
    %1320 = vmatpush1.msra.mxu0 %v229
    %1321 = vmatprep.subr.mxu0 %v234
    %1322 = vmatpush1.msra.mxu0 %v233
    %1323 = vmatprep.subr.mxu0 %v238
    %1324 = vmatpush1.msra.mxu0 %v237
    %1325 = vmatprep.subr.mxu0 %v242
    %1326 = vmatpush1.msra.mxu0 %v241
    %1327 = vmatprep.subr.mxu0 %v246
    %1328 = vmatpush1.msra.mxu0 %v245
    %1329 = vmatprep.subr.mxu0 %v250
    %1330 = vmatpush1.msra.mxu0 %v249
    %1331 = vmatprep.subr.mxu0 0.0
    %1332 = vmatpush1.msra.mxu0 0.0
    %1333 = vmatprep.subr.mxu0 0.0
    %1334 = vmatpush1.msra.mxu0 0.0
    %1335 = vmatprep.subr.mxu0 0.0
    %1336 = vmatpush1.msra.mxu0 0.0
    %1337 = vmatprep.subr.mxu0 0.0
    %1338 = vmatpush1.msra.mxu0 0.0
    %1339 = vmatprep.subr.mxu0 0.0
    %1340 = vmatpush1.msra.mxu0 0.0
    %1341 = vmatprep.subr.mxu0 0.0
    %1342 = vmatpush1.msra.mxu0 0.0
    %1343 = vmatprep.subr.mxu0 0.0
    %1344 = vmatpush1.msra.mxu0 0.0
    %1345 = vmatprep.subr.mxu0 0.0
    %1346 = vmatpush1.msra.mxu0 0.0
    %1347 = vmatprep.subr.mxu0 0.0
    %1348 = vmatpush1.msra.mxu0 0.0
    %1349 = vmatprep.subr.mxu0 0.0
    %1350 = vmatpush1.msra.mxu0 0.0
    %1351 = vmatprep.subr.mxu0 0.0
    %1352 = vmatpush1.msra.mxu0 0.0
    %1353 = vmatprep.subr.mxu0 0.0
    %1354 = vmatpush1.msra.mxu0 0.0
    %1355 = vmatprep.subr.mxu0 0.0
    %1356 = vmatpush1.msra.mxu0 0.0
    %1357 = vmatprep.subr.mxu0 0.0
    %1358 = vmatpush1.msra.mxu0 0.0
    %1359 = vmatprep.subr.mxu0 0.0
    %1360 = vmatpush1.msra.mxu0 0.0
    %1361 = vmatprep.subr.mxu0 0.0
    %1362 = vmatpush1.msra.mxu0 0.0
    %1363 = vmatprep.mubr.f32.mxu0 0.0
    %1364 = vmatmul.mubr.f32.gmra.mrb[0].mxu0 %v1220
    %v1365 = vpop.f32.mrb[0].mxu0
    %v1366 = vadd.f32 0.0, %v1365
    %v1367 = vpop.f32.mrb[0].mxu0
    %v1368 = vadd.f32 0.0, %v1367
    %1369 = vdwg.mxu0
    %v1370 = vadd.f32 %v1224, %v1295
    %v1371 = vadd.f32 %v1225, %v1297
    %v1372 = vadd.f32 %v1226, %v1366
    %v1373 = vadd.f32 %v1227, %v1368
    %v1374 = vmul.f32 %v1370, 0.5
    %v1375 = vtanh.pop %v1374
    %v1376 = vmul.f32 %v1375, 0.5
    %v1377 = vadd.f32 %v1376, 0.5
    %v1378 = vmul.f32 %v1371, 0.5
    %v1379 = vtanh.pop %v1378
    %v1380 = vmul.f32 %v1379, 0.5
    %v1381 = vadd.f32 %v1380, 0.5
    %v1382 = vtanh.pop %v1372
    %v1383 = vmul.f32 %v1373, 0.5
    %v1384 = vtanh.pop %v1383
    %v1385 = vmul.f32 %v1384, 0.5
    %v1386 = vadd.f32 %v1385, 0.5
    %v1387 = vmul.f32 %v1381, %v1218
    %v1388 = vmul.f32 %v1377, %v1382
    %v1389 = vadd.f32 %v1387, %v1388
    %v1390 = vtanh.pop %v1389
    %v1391 = vmul.f32 %v1386, %v1390
    %s1392 = scalar_lea.vmem [#allocation4], 32
    %1393 = vst [vmem:[%s1392] sm:$0xff] %v1391
    %s1394 = scalar_lea.vmem [#allocation5], 160
    %v1395 = vld [vmem:[%s1394] sm:$0xff]
    %v1396 = vld [vmem:[%s1394 + $0x8] sm:$0xff]
    %v1397 = vld [vmem:[%s1394 + $0x10] sm:$0xff]
    %v1398 = vld [vmem:[%s1394 + $0x18] sm:$0xff]
    %1399 = vmatprep.subr.mxu0 %v188
    %1400 = vmatpush1.msra.mxu0 %v187
    %1401 = vmatprep.subr.mxu0 %v192
    %1402 = vmatpush1.msra.mxu0 %v191
    %1403 = vmatprep.subr.mxu0 %v196
    %1404 = vmatpush1.msra.mxu0 %v195
    %1405 = vmatprep.subr.mxu0 %v200
    %1406 = vmatpush1.msra.mxu0 %v199
    %1407 = vmatprep.subr.mxu0 %v204
    %1408 = vmatpush1.msra.mxu0 %v203
    %1409 = vmatprep.subr.mxu0 %v208
    %1410 = vmatpush1.msra.mxu0 %v207
    %1411 = vmatprep.subr.mxu0 %v212
    %1412 = vmatpush1.msra.mxu0 %v211
    %1413 = vmatprep.subr.mxu0 %v216
    %1414 = vmatpush1.msra.mxu0 %v215
    %1415 = vmatprep.subr.mxu0 %v220
    %1416 = vmatpush1.msra.mxu0 %v219
    %1417 = vmatprep.subr.mxu0 %v224
    %1418 = vmatpush1.msra.mxu0 %v223
    %1419 = vmatprep.subr.mxu0 %v228
    %1420 = vmatpush1.msra.mxu0 %v227
    %1421 = vmatprep.subr.mxu0 %v232
    %1422 = vmatpush1.msra.mxu0 %v231
    %1423 = vmatprep.subr.mxu0 %v236
    %1424 = vmatpush1.msra.mxu0 %v235
    %1425 = vmatprep.subr.mxu0 %v240
    %1426 = vmatpush1.msra.mxu0 %v239
    %1427 = vmatprep.subr.mxu0 %v244
    %1428 = vmatpush1.msra.mxu0 %v243
    %1429 = vmatprep.subr.mxu0 %v248
    %1430 = vmatpush1.msra.mxu0 %v247
    %1431 = vmatprep.subr.mxu0 0.0
    %1432 = vmatpush1.msra.mxu0 0.0
    %1433 = vmatprep.subr.mxu0 0.0
    %1434 = vmatpush1.msra.mxu0 0.0
    %1435 = vmatprep.subr.mxu0 0.0
    %1436 = vmatpush1.msra.mxu0 0.0
    %1437 = vmatprep.subr.mxu0 0.0
    %1438 = vmatpush1.msra.mxu0 0.0
    %1439 = vmatprep.subr.mxu0 0.0
    %1440 = vmatpush1.msra.mxu0 0.0
    %1441 = vmatprep.subr.mxu0 0.0
    %1442 = vmatpush1.msra.mxu0 0.0
    %1443 = vmatprep.subr.mxu0 0.0
    %1444 = vmatpush1.msra.mxu0 0.0
    %1445 = vmatprep.subr.mxu0 0.0
    %1446 = vmatpush1.msra.mxu0 0.0
    %1447 = vmatprep.subr.mxu0 0.0
    %1448 = vmatpush1.msra.mxu0 0.0
    %1449 = vmatprep.subr.mxu0 0.0
    %1450 = vmatpush1.msra.mxu0 0.0
    %1451 = vmatprep.subr.mxu0 0.0
    %1452 = vmatpush1.msra.mxu0 0.0
    %1453 = vmatprep.subr.mxu0 0.0
    %1454 = vmatpush1.msra.mxu0 0.0
    %1455 = vmatprep.subr.mxu0 0.0
    %1456 = vmatpush1.msra.mxu0 0.0
    %1457 = vmatprep.subr.mxu0 0.0
    %1458 = vmatpush1.msra.mxu0 0.0
    %1459 = vmatprep.subr.mxu0 0.0
    %1460 = vmatpush1.msra.mxu0 0.0
    %1461 = vmatprep.subr.mxu0 0.0
    %1462 = vmatpush1.msra.mxu0 0.0
    %1463 = vmatprep.mubr.f32.mxu0 0.0
    %1464 = vmatmul.mubr.f32.gmra.mrb[0].mxu0 %v1391
    %v1465 = vpop.f32.mrb[0].mxu0
    %v1466 = vadd.f32 0.0, %v1465
    %v1467 = vpop.f32.mrb[0].mxu0
    %v1468 = vadd.f32 0.0, %v1467
    %1469 = vdwg.mxu0
    %1470 = vmatprep.subr.mxu0 %v190
    %1471 = vmatpush1.msra.mxu0 %v189
    %1472 = vmatprep.subr.mxu0 %v194
    %1473 = vmatpush1.msra.mxu0 %v193
    %1474 = vmatprep.subr.mxu0 %v198
    %1475 = vmatpush1.msra.mxu0 %v197
    %1476 = vmatprep.subr.mxu0 %v202
    %1477 = vmatpush1.msra.mxu0 %v201
    %1478 = vmatprep.subr.mxu0 %v206
    %1479 = vmatpush1.msra.mxu0 %v205
    %1480 = vmatprep.subr.mxu0 %v210
    %1481 = vmatpush1.msra.mxu0 %v209
    %1482 = vmatprep.subr.mxu0 %v214
    %1483 = vmatpush1.msra.mxu0 %v213
    %1484 = vmatprep.subr.mxu0 %v218
    %1485 = vmatpush1.msra.mxu0 %v217
    %1486 = vmatprep.subr.mxu0 %v222
    %1487 = vmatpush1.msra.mxu0 %v221
    %1488 = vmatprep.subr.mxu0 %v226
    %1489 = vmatpush1.msra.mxu0 %v225
    %1490 = vmatprep.subr.mxu0 %v230
    %1491 = vmatpush1.msra.mxu0 %v229
    %1492 = vmatprep.subr.mxu0 %v234
    %1493 = vmatpush1.msra.mxu0 %v233
    %1494 = vmatprep.subr.mxu0 %v238
    %1495 = vmatpush1.msra.mxu0 %v237
    %1496 = vmatprep.subr.mxu0 %v242
    %1497 = vmatpush1.msra.mxu0 %v241
    %1498 = vmatprep.subr.mxu0 %v246
    %1499 = vmatpush1.msra.mxu0 %v245
    %1500 = vmatprep.subr.mxu0 %v250
    %1501 = vmatpush1.msra.mxu0 %v249
    %1502 = vmatprep.subr.mxu0 0.0
    %1503 = vmatpush1.msra.mxu0 0.0
    %1504 = vmatprep.subr.mxu0 0.0
    %1505 = vmatpush1.msra.mxu0 0.0
    %1506 = vmatprep.subr.mxu0 0.0
    %1507 = vmatpush1.msra.mxu0 0.0
    %1508 = vmatprep.subr.mxu0 0.0
    %1509 = vmatpush1.msra.mxu0 0.0
    %1510 = vmatprep.subr.mxu0 0.0
    %1511 = vmatpush1.msra.mxu0 0.0
    %1512 = vmatprep.subr.mxu0 0.0
    %1513 = vmatpush1.msra.mxu0 0.0
    %1514 = vmatprep.subr.mxu0 0.0
    %1515 = vmatpush1.msra.mxu0 0.0
    %1516 = vmatprep.subr.mxu0 0.0
    %1517 = vmatpush1.msra.mxu0 0.0
    %1518 = vmatprep.subr.mxu0 0.0
    %1519 = vmatpush1.msra.mxu0 0.0
    %1520 = vmatprep.subr.mxu0 0.0
    %1521 = vmatpush1.msra.mxu0 0.0
    %1522 = vmatprep.subr.mxu0 0.0
    %1523 = vmatpush1.msra.mxu0 0.0
    %1524 = vmatprep.subr.mxu0 0.0
    %1525 = vmatpush1.msra.mxu0 0.0
    %1526 = vmatprep.subr.mxu0 0.0
    %1527 = vmatpush1.msra.mxu0 0.0
    %1528 = vmatprep.subr.mxu0 0.0
    %1529 = vmatpush1.msra.mxu0 0.0
    %1530 = vmatprep.subr.mxu0 0.0
    %1531 = vmatpush1.msra.mxu0 0.0
    %1532 = vmatprep.subr.mxu0 0.0
    %1533 = vmatpush1.msra.mxu0 0.0
    %1534 = vmatprep.mubr.f32.mxu0 0.0
    %1535 = vmatmul.mubr.f32.gmra.mrb[0].mxu0 %v1391
    %v1536 = vpop.f32.mrb[0].mxu0
    %v1537 = vadd.f32 0.0, %v1536
    %v1538 = vpop.f32.mrb[0].mxu0
    %v1539 = vadd.f32 0.0, %v1538
    %1540 = vdwg.mxu0
    %v1541 = vadd.f32 %v1395, %v1466
    %v1542 = vadd.f32 %v1396, %v1468
    %v1543 = vadd.f32 %v1397, %v1537
    %v1544 = vadd.f32 %v1398, %v1539
    %v1545 = vmul.f32 %v1541, 0.5
    %v1546 = vtanh.pop %v1545
    %v1547 = vmul.f32 %v1546, 0.5
    %v1548 = vadd.f32 %v1547, 0.5
    %v1549 = vmul.f32 %v1542, 0.5
    %v1550 = vtanh.pop %v1549
    %v1551 = vmul.f32 %v1550, 0.5
    %v1552 = vadd.f32 %v1551, 0.5
    %v1553 = vtanh.pop %v1543
    %v1554 = vmul.f32 %v1544, 0.5
    %v1555 = vtanh.pop %v1554
    %v1556 = vmul.f32 %v1555, 0.5
    %v1557 = vadd.f32 %v1556, 0.5
    %v1558 = vmul.f32 %v1552, %v1389
    %v1559 = vmul.f32 %v1548, %v1553
    %v1560 = vadd.f32 %v1558, %v1559
    %v1561 = vtanh.pop %v1560
    %v1562 = vmul.f32 %v1557, %v1561
    %s1563 = scalar_lea.vmem [#allocation4], 40
    %1564 = vst [vmem:[%s1563] sm:$0xff] %v1562
    %s1565 = scalar_lea.vmem [#allocation5], 192
    %v1566 = vld [vmem:[%s1565] sm:$0xff]
    %v1567 = vld [vmem:[%s1565 + $0x8] sm:$0xff]
    %v1568 = vld [vmem:[%s1565 + $0x10] sm:$0xff]
    %v1569 = vld [vmem:[%s1565 + $0x18] sm:$0xff]
    %1570 = vmatprep.subr.mxu0 %v188
    %1571 = vmatpush1.msra.mxu0 %v187
    %1572 = vmatprep.subr.mxu0 %v192
    %1573 = vmatpush1.msra.mxu0 %v191
    %1574 = vmatprep.subr.mxu0 %v196
    %1575 = vmatpush1.msra.mxu0 %v195
    %1576 = vmatprep.subr.mxu0 %v200
    %1577 = vmatpush1.msra.mxu0 %v199
    %1578 = vmatprep.subr.mxu0 %v204
    %1579 = vmatpush1.msra.mxu0 %v203
    %1580 = vmatprep.subr.mxu0 %v208
    %1581 = vmatpush1.msra.mxu0 %v207
    %1582 = vmatprep.subr.mxu0 %v212
    %1583 = vmatpush1.msra.mxu0 %v211
    %1584 = vmatprep.subr.mxu0 %v216
    %1585 = vmatpush1.msra.mxu0 %v215
    %1586 = vmatprep.subr.mxu0 %v220
    %1587 = vmatpush1.msra.mxu0 %v219
    %1588 = vmatprep.subr.mxu0 %v224
    %1589 = vmatpush1.msra.mxu0 %v223
    %1590 = vmatprep.subr.mxu0 %v228
    %1591 = vmatpush1.msra.mxu0 %v227
    %1592 = vmatprep.subr.mxu0 %v232
    %1593 = vmatpush1.msra.mxu0 %v231
    %1594 = vmatprep.subr.mxu0 %v236
    %1595 = vmatpush1.msra.mxu0 %v235
    %1596 = vmatprep.subr.mxu0 %v240
    %1597 = vmatpush1.msra.mxu0 %v239
    %1598 = vmatprep.subr.mxu0 %v244
    %1599 = vmatpush1.msra.mxu0 %v243
    %1600 = vmatprep.subr.mxu0 %v248
    %1601 = vmatpush1.msra.mxu0 %v247
    %1602 = vmatprep.subr.mxu0 0.0
    %1603 = vmatpush1.msra.mxu0 0.0
    %1604 = vmatprep.subr.mxu0 0.0
    %1605 = vmatpush1.msra.mxu0 0.0
    %1606 = vmatprep.subr.mxu0 0.0
    %1607 = vmatpush1.msra.mxu0 0.0
    %1608 = vmatprep.subr.mxu0 0.0
    %1609 = vmatpush1.msra.mxu0 0.0
    %1610 = vmatprep.subr.mxu0 0.0
    %1611 = vmatpush1.msra.mxu0 0.0
    %1612 = vmatprep.subr.mxu0 0.0
    %1613 = vmatpush1.msra.mxu0 0.0
    %1614 = vmatprep.subr.mxu0 0.0
    %1615 = vmatpush1.msra.mxu0 0.0
    %1616 = vmatprep.subr.mxu0 0.0
    %1617 = vmatpush1.msra.mxu0 0.0
    %1618 = vmatprep.subr.mxu0 0.0
    %1619 = vmatpush1.msra.mxu0 0.0
    %1620 = vmatprep.subr.mxu0 0.0
    %1621 = vmatpush1.msra.mxu0 0.0
    %1622 = vmatprep.subr.mxu0 0.0
    %1623 = vmatpush1.msra.mxu0 0.0
    %1624 = vmatprep.subr.mxu0 0.0
    %1625 = vmatpush1.msra.mxu0 0.0
    %1626 = vmatprep.subr.mxu0 0.0
    %1627 = vmatpush1.msra.mxu0 0.0
    %1628 = vmatprep.subr.mxu0 0.0
    %1629 = vmatpush1.msra.mxu0 0.0
    %1630 = vmatprep.subr.mxu0 0.0
    %1631 = vmatpush1.msra.mxu0 0.0
    %1632 = vmatprep.subr.mxu0 0.0
    %1633 = vmatpush1.msra.mxu0 0.0
    %1634 = vmatprep.mubr.f32.mxu0 0.0
    %1635 = vmatmul.mubr.f32.gmra.mrb[0].mxu0 %v1562
    %v1636 = vpop.f32.mrb[0].mxu0
    %v1637 = vadd.f32 0.0, %v1636
    %v1638 = vpop.f32.mrb[0].mxu0
    %v1639 = vadd.f32 0.0, %v1638
    %1640 = vdwg.mxu0
    %1641 = vmatprep.subr.mxu0 %v190
    %1642 = vmatpush1.msra.mxu0 %v189
    %1643 = vmatprep.subr.mxu0 %v194
    %1644 = vmatpush1.msra.mxu0 %v193
    %1645 = vmatprep.subr.mxu0 %v198
    %1646 = vmatpush1.msra.mxu0 %v197
    %1647 = vmatprep.subr.mxu0 %v202
    %1648 = vmatpush1.msra.mxu0 %v201
    %1649 = vmatprep.subr.mxu0 %v206
    %1650 = vmatpush1.msra.mxu0 %v205
    %1651 = vmatprep.subr.mxu0 %v210
    %1652 = vmatpush1.msra.mxu0 %v209
    %1653 = vmatprep.subr.mxu0 %v214
    %1654 = vmatpush1.msra.mxu0 %v213
    %1655 = vmatprep.subr.mxu0 %v218
    %1656 = vmatpush1.msra.mxu0 %v217
    %1657 = vmatprep.subr.mxu0 %v222
    %1658 = vmatpush1.msra.mxu0 %v221
    %1659 = vmatprep.subr.mxu0 %v226
    %1660 = vmatpush1.msra.mxu0 %v225
    %1661 = vmatprep.subr.mxu0 %v230
    %1662 = vmatpush1.msra.mxu0 %v229
    %1663 = vmatprep.subr.mxu0 %v234
    %1664 = vmatpush1.msra.mxu0 %v233
    %1665 = vmatprep.subr.mxu0 %v238
    %1666 = vmatpush1.msra.mxu0 %v237
    %1667 = vmatprep.subr.mxu0 %v242
    %1668 = vmatpush1.msra.mxu0 %v241
    %1669 = vmatprep.subr.mxu0 %v246
    %1670 = vmatpush1.msra.mxu0 %v245
    %1671 = vmatprep.subr.mxu0 %v250
    %1672 = vmatpush1.msra.mxu0 %v249
    %1673 = vmatprep.subr.mxu0 0.0
    %1674 = vmatpush1.msra.mxu0 0.0
    %1675 = vmatprep.subr.mxu0 0.0
    %1676 = vmatpush1.msra.mxu0 0.0
    %1677 = vmatprep.subr.mxu0 0.0
    %1678 = vmatpush1.msra.mxu0 0.0
    %1679 = vmatprep.subr.mxu0 0.0
    %1680 = vmatpush1.msra.mxu0 0.0
    %1681 = vmatprep.subr.mxu0 0.0
    %1682 = vmatpush1.msra.mxu0 0.0
    %1683 = vmatprep.subr.mxu0 0.0
    %1684 = vmatpush1.msra.mxu0 0.0
    %1685 = vmatprep.subr.mxu0 0.0
    %1686 = vmatpush1.msra.mxu0 0.0
    %1687 = vmatprep.subr.mxu0 0.0
    %1688 = vmatpush1.msra.mxu0 0.0
    %1689 = vmatprep.subr.mxu0 0.0
    %1690 = vmatpush1.msra.mxu0 0.0
    %1691 = vmatprep.subr.mxu0 0.0
    %1692 = vmatpush1.msra.mxu0 0.0
    %1693 = vmatprep.subr.mxu0 0.0
    %1694 = vmatpush1.msra.mxu0 0.0
    %1695 = vmatprep.subr.mxu0 0.0
    %1696 = vmatpush1.msra.mxu0 0.0
    %1697 = vmatprep.subr.mxu0 0.0
    %1698 = vmatpush1.msra.mxu0 0.0
    %1699 = vmatprep.subr.mxu0 0.0
    %1700 = vmatpush1.msra.mxu0 0.0
    %1701 = vmatprep.subr.mxu0 0.0
    %1702 = vmatpush1.msra.mxu0 0.0
    %1703 = vmatprep.subr.mxu0 0.0
    %1704 = vmatpush1.msra.mxu0 0.0
    %1705 = vmatprep.mubr.f32.mxu0 0.0
    %1706 = vmatmul.mubr.f32.gmra.mrb[0].mxu0 %v1562
    %v1707 = vpop.f32.mrb[0].mxu0
    %v1708 = vadd.f32 0.0, %v1707
    %v1709 = vpop.f32.mrb[0].mxu0
    %v1710 = vadd.f32 0.0, %v1709
    %1711 = vdwg.mxu0
    %v1712 = vadd.f32 %v1566, %v1637
    %v1713 = vadd.f32 %v1567, %v1639
    %v1714 = vadd.f32 %v1568, %v1708
    %v1715 = vadd.f32 %v1569, %v1710
    %v1716 = vmul.f32 %v1712, 0.5
    %v1717 = vtanh.pop %v1716
    %v1718 = vmul.f32 %v1717, 0.5
    %v1719 = vadd.f32 %v1718, 0.5
    %v1720 = vmul.f32 %v1713, 0.5
    %v1721 = vtanh.pop %v1720
    %v1722 = vmul.f32 %v1721, 0.5
    %v1723 = vadd.f32 %v1722, 0.5
    %v1724 = vtanh.pop %v1714
    %v1725 = vmul.f32 %v1715, 0.5
    %v1726 = vtanh.pop %v1725
    %v1727 = vmul.f32 %v1726, 0.5
    %v1728 = vadd.f32 %v1727, 0.5
    %v1729 = vmul.f32 %v1723, %v1560
    %v1730 = vmul.f32 %v1719, %v1724
    %v1731 = vadd.f32 %v1729, %v1730
    %v1732 = vtanh.pop %v1731
    %v1733 = vmul.f32 %v1728, %v1732
    %s1734 = scalar_lea.vmem [#allocation4], 48
    %1735 = vst [vmem:[%s1734] sm:$0xff] %v1733
    %s1736 = scalar_lea.vmem [#allocation5], 224
    %v1737 = vld [vmem:[%s1736] sm:$0xff]
    %v1738 = vld [vmem:[%s1736 + $0x8] sm:$0xff]
    %v1739 = vld [vmem:[%s1736 + $0x10] sm:$0xff]
    %v1740 = vld [vmem:[%s1736 + $0x18] sm:$0xff]
    %1741 = vmatprep.subr.mxu0 %v188
    %1742 = vmatpush1.msra.mxu0 %v187
    %1743 = vmatprep.subr.mxu0 %v192
    %1744 = vmatpush1.msra.mxu0 %v191
    %1745 = vmatprep.subr.mxu0 %v196
    %1746 = vmatpush1.msra.mxu0 %v195
    %1747 = vmatprep.subr.mxu0 %v200
    %1748 = vmatpush1.msra.mxu0 %v199
    %1749 = vmatprep.subr.mxu0 %v204
    %1750 = vmatpush1.msra.mxu0 %v203
    %1751 = vmatprep.subr.mxu0 %v208
    %1752 = vmatpush1.msra.mxu0 %v207
    %1753 = vmatprep.subr.mxu0 %v212
    %1754 = vmatpush1.msra.mxu0 %v211
    %1755 = vmatprep.subr.mxu0 %v216
    %1756 = vmatpush1.msra.mxu0 %v215
    %1757 = vmatprep.subr.mxu0 %v220
    %1758 = vmatpush1.msra.mxu0 %v219
    %1759 = vmatprep.subr.mxu0 %v224
    %1760 = vmatpush1.msra.mxu0 %v223
    %1761 = vmatprep.subr.mxu0 %v228
    %1762 = vmatpush1.msra.mxu0 %v227
    %1763 = vmatprep.subr.mxu0 %v232
    %1764 = vmatpush1.msra.mxu0 %v231
    %1765 = vmatprep.subr.mxu0 %v236
    %1766 = vmatpush1.msra.mxu0 %v235
    %1767 = vmatprep.subr.mxu0 %v240
    %1768 = vmatpush1.msra.mxu0 %v239
    %1769 = vmatprep.subr.mxu0 %v244
    %1770 = vmatpush1.msra.mxu0 %v243
    %1771 = vmatprep.subr.mxu0 %v248
    %1772 = vmatpush1.msra.mxu0 %v247
    %1773 = vmatprep.subr.mxu0 0.0
    %1774 = vmatpush1.msra.mxu0 0.0
    %1775 = vmatprep.subr.mxu0 0.0
    %1776 = vmatpush1.msra.mxu0 0.0
    %1777 = vmatprep.subr.mxu0 0.0
    %1778 = vmatpush1.msra.mxu0 0.0
    %1779 = vmatprep.subr.mxu0 0.0
    %1780 = vmatpush1.msra.mxu0 0.0
    %1781 = vmatprep.subr.mxu0 0.0
    %1782 = vmatpush1.msra.mxu0 0.0
    %1783 = vmatprep.subr.mxu0 0.0
    %1784 = vmatpush1.msra.mxu0 0.0
    %1785 = vmatprep.subr.mxu0 0.0
    %1786 = vmatpush1.msra.mxu0 0.0
    %1787 = vmatprep.subr.mxu0 0.0
    %1788 = vmatpush1.msra.mxu0 0.0
    %1789 = vmatprep.subr.mxu0 0.0
    %1790 = vmatpush1.msra.mxu0 0.0
    %1791 = vmatprep.subr.mxu0 0.0
    %1792 = vmatpush1.msra.mxu0 0.0
    %1793 = vmatprep.subr.mxu0 0.0
    %1794 = vmatpush1.msra.mxu0 0.0
    %1795 = vmatprep.subr.mxu0 0.0
    %1796 = vmatpush1.msra.mxu0 0.0
    %1797 = vmatprep.subr.mxu0 0.0
    %1798 = vmatpush1.msra.mxu0 0.0
    %1799 = vmatprep.subr.mxu0 0.0
    %1800 = vmatpush1.msra.mxu0 0.0
    %1801 = vmatprep.subr.mxu0 0.0
    %1802 = vmatpush1.msra.mxu0 0.0
    %1803 = vmatprep.subr.mxu0 0.0
    %1804 = vmatpush1.msra.mxu0 0.0
    %1805 = vmatprep.mubr.f32.mxu0 0.0
    %1806 = vmatmul.mubr.f32.gmra.mrb[0].mxu0 %v1733
    %v1807 = vpop.f32.mrb[0].mxu0
    %v1808 = vadd.f32 0.0, %v1807
    %v1809 = vpop.f32.mrb[0].mxu0
    %v1810 = vadd.f32 0.0, %v1809
    %1811 = vdwg.mxu0
    %1812 = vmatprep.subr.mxu0 %v190
    %1813 = vmatpush1.msra.mxu0 %v189
    %1814 = vmatprep.subr.mxu0 %v194
    %1815 = vmatpush1.msra.mxu0 %v193
    %1816 = vmatprep.subr.mxu0 %v198
    %1817 = vmatpush1.msra.mxu0 %v197
    %1818 = vmatprep.subr.mxu0 %v202
    %1819 = vmatpush1.msra.mxu0 %v201
    %1820 = vmatprep.subr.mxu0 %v206
    %1821 = vmatpush1.msra.mxu0 %v205
    %1822 = vmatprep.subr.mxu0 %v210
    %1823 = vmatpush1.msra.mxu0 %v209
    %1824 = vmatprep.subr.mxu0 %v214
    %1825 = vmatpush1.msra.mxu0 %v213
    %1826 = vmatprep.subr.mxu0 %v218
    %1827 = vmatpush1.msra.mxu0 %v217
    %1828 = vmatprep.subr.mxu0 %v222
    %1829 = vmatpush1.msra.mxu0 %v221
    %1830 = vmatprep.subr.mxu0 %v226
    %1831 = vmatpush1.msra.mxu0 %v225
    %1832 = vmatprep.subr.mxu0 %v230
    %1833 = vmatpush1.msra.mxu0 %v229
    %1834 = vmatprep.subr.mxu0 %v234
    %1835 = vmatpush1.msra.mxu0 %v233
    %1836 = vmatprep.subr.mxu0 %v238
    %1837 = vmatpush1.msra.mxu0 %v237
    %1838 = vmatprep.subr.mxu0 %v242
    %1839 = vmatpush1.msra.mxu0 %v241
    %1840 = vmatprep.subr.mxu0 %v246
    %1841 = vmatpush1.msra.mxu0 %v245
    %1842 = vmatprep.subr.mxu0 %v250
    %1843 = vmatpush1.msra.mxu0 %v249
    %1844 = vmatprep.subr.mxu0 0.0
    %1845 = vmatpush1.msra.mxu0 0.0
    %1846 = vmatprep.subr.mxu0 0.0
    %1847 = vmatpush1.msra.mxu0 0.0
    %1848 = vmatprep.subr.mxu0 0.0
    %1849 = vmatpush1.msra.mxu0 0.0
    %1850 = vmatprep.subr.mxu0 0.0
    %1851 = vmatpush1.msra.mxu0 0.0
    %1852 = vmatprep.subr.mxu0 0.0
    %1853 = vmatpush1.msra.mxu0 0.0
    %1854 = vmatprep.subr.mxu0 0.0
    %1855 = vmatpush1.msra.mxu0 0.0
    %1856 = vmatprep.subr.mxu0 0.0
    %1857 = vmatpush1.msra.mxu0 0.0
    %1858 = vmatprep.subr.mxu0 0.0
    %1859 = vmatpush1.msra.mxu0 0.0
    %1860 = vmatprep.subr.mxu0 0.0
    %1861 = vmatpush1.msra.mxu0 0.0
    %1862 = vmatprep.subr.mxu0 0.0
    %1863 = vmatpush1.msra.mxu0 0.0
    %1864 = vmatprep.subr.mxu0 0.0
    %1865 = vmatpush1.msra.mxu0 0.0
    %1866 = vmatprep.subr.mxu0 0.0
    %1867 = vmatpush1.msra.mxu0 0.0
    %1868 = vmatprep.subr.mxu0 0.0
    %1869 = vmatpush1.msra.mxu0 0.0
    %1870 = vmatprep.subr.mxu0 0.0
    %1871 = vmatpush1.msra.mxu0 0.0
    %1872 = vmatprep.subr.mxu0 0.0
    %1873 = vmatpush1.msra.mxu0 0.0
    %1874 = vmatprep.subr.mxu0 0.0
    %1875 = vmatpush1.msra.mxu0 0.0
    %1876 = vmatprep.mubr.f32.mxu0 0.0
    %1877 = vmatmul.mubr.f32.gmra.mrb[0].mxu0 %v1733
    %v1878 = vpop.f32.mrb[0].mxu0
    %v1879 = vadd.f32 0.0, %v1878
    %v1880 = vpop.f32.mrb[0].mxu0
    %v1881 = vadd.f32 0.0, %v1880
    %1882 = vdwg.mxu0
    %v1883 = vadd.f32 %v1737, %v1808
    %v1884 = vadd.f32 %v1738, %v1810
    %v1885 = vadd.f32 %v1739, %v1879
    %v1886 = vadd.f32 %v1740, %v1881
    %v1887 = vmul.f32 %v1883, 0.5
    %v1888 = vtanh.pop %v1887
    %v1889 = vmul.f32 %v1888, 0.5
    %v1890 = vadd.f32 %v1889, 0.5
    %v1891 = vmul.f32 %v1884, 0.5
    %v1892 = vtanh.pop %v1891
    %v1893 = vmul.f32 %v1892, 0.5
    %v1894 = vadd.f32 %v1893, 0.5
    %v1895 = vtanh.pop %v1885
    %v1896 = vmul.f32 %v1886, 0.5
    %v1897 = vtanh.pop %v1896
    %v1898 = vmul.f32 %v1897, 0.5
    %v1899 = vadd.f32 %v1898, 0.5
    %v1900 = vmul.f32 %v1894, %v1731
    %v1901 = vmul.f32 %v1890, %v1895
    %v1902 = vadd.f32 %v1900, %v1901
    %v1903 = vtanh.pop %v1902
    %v1904 = vmul.f32 %v1899, %v1903
    %s1905 = scalar_lea.vmem [#allocation4], 56
    %1906 = vst [vmem:[%s1905] sm:$0xff] %v1904
    %1907 = vst [vmem:[#allocation2] sm:$0xff] %v1904
    %1908 = vst [vmem:[#allocation3] sm:$0xff] %v1902
    %v1909 = vld [vmem:[#allocation12] sm:$0xff]
    %v1910 = vld [vmem:[#allocation12 + $0x8] sm:$0xff]
    %v1911 = vld [vmem:[#allocation12 + $0x10] sm:$0xff]
    %v1912 = vld [vmem:[#allocation12 + $0x18] sm:$0xff]
    %v1913 = vld [vmem:[#allocation12 + $0x20] sm:$0xff]
    %v1914 = vld [vmem:[#allocation12 + $0x28] sm:$0xff]
    %v1915 = vld [vmem:[#allocation12 + $0x30] sm:$0xff]
    %v1916 = vld [vmem:[#allocation12 + $0x38] sm:$0xff]
    %v1917 = vld [vmem:[#allocation12 + $0x40] sm:$0xff]
    %v1918 = vld [vmem:[#allocation12 + $0x48] sm:$0xff]
    %v1919 = vld [vmem:[#allocation12 + $0x50] sm:$0xff]
    %v1920 = vld [vmem:[#allocation12 + $0x58] sm:$0xff]
    %v1921 = vld [vmem:[#allocation12 + $0x60] sm:$0xff]
    %v1922 = vld [vmem:[#allocation12 + $0x68] sm:$0xff]
    %v1923 = vld [vmem:[#allocation12 + $0x70] sm:$0xff]
    %v1924 = vld [vmem:[#allocation12 + $0x78] sm:$0xff]
    %v1925 = vld [vmem:[#allocation12 + $0x80] sm:$0xff]
    %v1926 = vld [vmem:[#allocation12 + $0x88] sm:$0xff]
    %v1927 = vld [vmem:[#allocation12 + $0x90] sm:$0xff]
    %v1928 = vld [vmem:[#allocation12 + $0x98] sm:$0xff]
    %v1929 = vld [vmem:[#allocation12 + $0xa0] sm:$0xff]
    %v1930 = vld [vmem:[#allocation12 + $0xa8] sm:$0xff]
    %v1931 = vld [vmem:[#allocation12 + $0xb0] sm:$0xff]
    %v1932 = vld [vmem:[#allocation12 + $0xb8] sm:$0xff]
    %v1933 = vld [vmem:[#allocation12 + $0xc0] sm:$0xff]
    %v1934 = vld [vmem:[#allocation12 + $0xc8] sm:$0xff]
    %v1935 = vld [vmem:[#allocation12 + $0xd0] sm:$0xff]
    %v1936 = vld [vmem:[#allocation12 + $0xd8] sm:$0xff]
    %v1937 = vld [vmem:[#allocation12 + $0xe0] sm:$0xff]
    %v1938 = vld [vmem:[#allocation12 + $0xe8] sm:$0xff]
    %v1939 = vld [vmem:[#allocation12 + $0xf0] sm:$0xff]
    %v1940 = vld [vmem:[#allocation12 + $0xf8] sm:$0xff]
    %v1941 = vld [vmem:[#allocation12 + $0x100] sm:$0xff]
    %v1942 = vld [vmem:[#allocation12 + $0x108] sm:$0xff]
    %v1943 = vld [vmem:[#allocation12 + $0x110] sm:$0xff]
    %v1944 = vld [vmem:[#allocation12 + $0x118] sm:$0xff]
    %v1945 = vld [vmem:[#allocation12 + $0x120] sm:$0xff]
    %v1946 = vld [vmem:[#allocation12 + $0x128] sm:$0xff]
    %v1947 = vld [vmem:[#allocation12 + $0x130] sm:$0xff]
    %v1948 = vld [vmem:[#allocation12 + $0x138] sm:$0xff]
    %v1949 = vld [vmem:[#allocation12 + $0x140] sm:$0xff]
    %v1950 = vld [vmem:[#allocation12 + $0x148] sm:$0xff]
    %v1951 = vld [vmem:[#allocation12 + $0x150] sm:$0xff]
    %v1952 = vld [vmem:[#allocation12 + $0x158] sm:$0xff]
    %v1953 = vld [vmem:[#allocation12 + $0x160] sm:$0xff]
    %v1954 = vld [vmem:[#allocation12 + $0x168] sm:$0xff]
    %v1955 = vld [vmem:[#allocation12 + $0x170] sm:$0xff]
    %v1956 = vld [vmem:[#allocation12 + $0x178] sm:$0xff]
    %v1957 = vld [vmem:[#allocation12 + $0x180] sm:$0xff]
    %v1958 = vld [vmem:[#allocation12 + $0x188] sm:$0xff]
    %v1959 = vld [vmem:[#allocation12 + $0x190] sm:$0xff]
    %v1960 = vld [vmem:[#allocation12 + $0x198] sm:$0xff]
    %v1961 = vld [vmem:[#allocation12 + $0x1a0] sm:$0xff]
    %v1962 = vld [vmem:[#allocation12 + $0x1a8] sm:$0xff]
    %v1963 = vld [vmem:[#allocation12 + $0x1b0] sm:$0xff]
    %v1964 = vld [vmem:[#allocation12 + $0x1b8] sm:$0xff]
    %v1965 = vld [vmem:[#allocation12 + $0x1c0] sm:$0xff]
    %v1966 = vld [vmem:[#allocation12 + $0x1c8] sm:$0xff]
    %v1967 = vld [vmem:[#allocation12 + $0x1d0] sm:$0xff]
    %v1968 = vld [vmem:[#allocation12 + $0x1d8] sm:$0xff]
    %v1969 = vld [vmem:[#allocation12 + $0x1e0] sm:$0xff]
    %v1970 = vld [vmem:[#allocation12 + $0x1e8] sm:$0xff]
    %v1971 = vld [vmem:[#allocation12 + $0x1f0] sm:$0xff]
    %v1972 = vld [vmem:[#allocation12 + $0x1f8] sm:$0xff]
    %v1973 = vld [vmem:[#allocation14] sm:$0xff]
    %v1974 = vld [vmem:[#allocation14 + $0x8] sm:$0xff]
    %v1975 = vld [vmem:[#allocation14 + $0x10] sm:$0xff]
    %v1976 = vld [vmem:[#allocation14 + $0x18] sm:$0xff]
    %v1977 = vld [vmem:[#allocation14 + $0x20] sm:$0xff]
    %v1978 = vld [vmem:[#allocation14 + $0x28] sm:$0xff]
    %v1979 = vld [vmem:[#allocation14 + $0x30] sm:$0xff]
    %v1980 = vld [vmem:[#allocation14 + $0x38] sm:$0xff]
    %v1981 = vld [vmem:[#allocation14 + $0x40] sm:$0xff]
    %v1982 = vld [vmem:[#allocation14 + $0x48] sm:$0xff]
    %v1983 = vld [vmem:[#allocation14 + $0x50] sm:$0xff]
    %v1984 = vld [vmem:[#allocation14 + $0x58] sm:$0xff]
    %v1985 = vld [vmem:[#allocation14 + $0x60] sm:$0xff]
    %v1986 = vld [vmem:[#allocation14 + $0x68] sm:$0xff]
    %v1987 = vld [vmem:[#allocation14 + $0x70] sm:$0xff]
    %v1988 = vld [vmem:[#allocation14 + $0x78] sm:$0xff]
    %v1989 = vld [vmem:[#allocation14 + $0x80] sm:$0xff]
    %v1990 = vld [vmem:[#allocation14 + $0x88] sm:$0xff]
    %v1991 = vld [vmem:[#allocation14 + $0x90] sm:$0xff]
    %v1992 = vld [vmem:[#allocation14 + $0x98] sm:$0xff]
    %v1993 = vld [vmem:[#allocation14 + $0xa0] sm:$0xff]
    %v1994 = vld [vmem:[#allocation14 + $0xa8] sm:$0xff]
    %v1995 = vld [vmem:[#allocation14 + $0xb0] sm:$0xff]
    %v1996 = vld [vmem:[#allocation14 + $0xb8] sm:$0xff]
    %v1997 = vld [vmem:[#allocation14 + $0xc0] sm:$0xff]
    %v1998 = vld [vmem:[#allocation14 + $0xc8] sm:$0xff]
    %v1999 = vld [vmem:[#allocation14 + $0xd0] sm:$0xff]
    %v2000 = vld [vmem:[#allocation14 + $0xd8] sm:$0xff]
    %v2001 = vld [vmem:[#allocation14 + $0xe0] sm:$0xff]
    %v2002 = vld [vmem:[#allocation14 + $0xe8] sm:$0xff]
    %v2003 = vld [vmem:[#allocation14 + $0xf0] sm:$0xff]
    %v2004 = vld [vmem:[#allocation14 + $0xf8] sm:$0xff]
    %v2005 = vld [vmem:[#allocation14 + $0x100] sm:$0xff]
    %v2006 = vld [vmem:[#allocation14 + $0x108] sm:$0xff]
    %v2007 = vld [vmem:[#allocation14 + $0x110] sm:$0xff]
    %v2008 = vld [vmem:[#allocation14 + $0x118] sm:$0xff]
    %v2009 = vld [vmem:[#allocation14 + $0x120] sm:$0xff]
    %v2010 = vld [vmem:[#allocation14 + $0x128] sm:$0xff]
    %v2011 = vld [vmem:[#allocation14 + $0x130] sm:$0xff]
    %v2012 = vld [vmem:[#allocation14 + $0x138] sm:$0xff]
    %v2013 = vld [vmem:[#allocation14 + $0x140] sm:$0xff]
    %v2014 = vld [vmem:[#allocation14 + $0x148] sm:$0xff]
    %v2015 = vld [vmem:[#allocation14 + $0x150] sm:$0xff]
    %v2016 = vld [vmem:[#allocation14 + $0x158] sm:$0xff]
    %v2017 = vld [vmem:[#allocation14 + $0x160] sm:$0xff]
    %v2018 = vld [vmem:[#allocation14 + $0x168] sm:$0xff]
    %v2019 = vld [vmem:[#allocation14 + $0x170] sm:$0xff]
    %v2020 = vld [vmem:[#allocation14 + $0x178] sm:$0xff]
    %v2021 = vld [vmem:[#allocation14 + $0x180] sm:$0xff]
    %v2022 = vld [vmem:[#allocation14 + $0x188] sm:$0xff]
    %v2023 = vld [vmem:[#allocation14 + $0x190] sm:$0xff]
    %v2024 = vld [vmem:[#allocation14 + $0x198] sm:$0xff]
    %v2025 = vld [vmem:[#allocation14 + $0x1a0] sm:$0xff]
    %v2026 = vld [vmem:[#allocation14 + $0x1a8] sm:$0xff]
    %v2027 = vld [vmem:[#allocation14 + $0x1b0] sm:$0xff]
    %v2028 = vld [vmem:[#allocation14 + $0x1b8] sm:$0xff]
    %v2029 = vld [vmem:[#allocation14 + $0x1c0] sm:$0xff]
    %v2030 = vld [vmem:[#allocation14 + $0x1c8] sm:$0xff]
    %v2031 = vld [vmem:[#allocation14 + $0x1d0] sm:$0xff]
    %v2032 = vld [vmem:[#allocation14 + $0x1d8] sm:$0xff]
    %v2033 = vld [vmem:[#allocation14 + $0x1e0] sm:$0xff]
    %v2034 = vld [vmem:[#allocation14 + $0x1e8] sm:$0xff]
    %v2035 = vld [vmem:[#allocation14 + $0x1f0] sm:$0xff]
    %v2036 = vld [vmem:[#allocation14 + $0x1f8] sm:$0xff]
    %v2037 = vld [vmem:[%s6] sm:$0xf]
    %v2038 = vld [vmem:[#allocation4] sm:$0xff]
    %v2039 = vld [vmem:[#allocation4 + $0x8] sm:$0xff]
    %v2040 = vld [vmem:[#allocation4 + $0x10] sm:$0xff]
    %v2041 = vld [vmem:[#allocation4 + $0x18] sm:$0xff]
    %v2042 = vld [vmem:[#allocation4 + $0x20] sm:$0xff]
    %v2043 = vld [vmem:[#allocation4 + $0x28] sm:$0xff]
    %v2044 = vld [vmem:[#allocation4 + $0x30] sm:$0xff]
    %v2045 = vld [vmem:[#allocation4 + $0x38] sm:$0xff]
    %v2047 = vlaneseq
    %v2048 = vshrl.u32 %v2047, 7
    %v2049 = vsub.s32 0, %v2048
    %v2050 = vrot.slane %v2037, %v2049
    %v2051 = vlaneseq
    %v2052 = vshrl.u32 %v2051, 7
    %v2053 = vsub.s32 1, %v2052
    %v2054 = vrot.slane %v2037, %v2053
    %v2055 = vlaneseq
    %v2056 = vshrl.u32 %v2055, 7
    %v2057 = vsub.s32 2, %v2056
    %v2058 = vrot.slane %v2037, %v2057
    %v2059 = vlaneseq
    %v2060 = vshrl.u32 %v2059, 7
    %v2061 = vsub.s32 3, %v2060
    %v2062 = vrot.slane %v2037, %v2061
    %2067 = vmatprep.subr.mxu0 %v1910
    %2068 = vmatpush1.msra.mxu0 %v1909
    %2069 = vmatprep.subr.mxu0 %v1914
    %2070 = vmatpush1.msra.mxu0 %v1913
    %2071 = vmatprep.subr.mxu0 %v1918
    %2072 = vmatpush1.msra.mxu0 %v1917
    %2073 = vmatprep.subr.mxu0 %v1922
    %2074 = vmatpush1.msra.mxu0 %v1921
    %2075 = vmatprep.subr.mxu0 %v1926
    %2076 = vmatpush1.msra.mxu0 %v1925
    %2077 = vmatprep.subr.mxu0 %v1930
    %2078 = vmatpush1.msra.mxu0 %v1929
    %2079 = vmatprep.subr.mxu0 %v1934
    %2080 = vmatpush1.msra.mxu0 %v1933
    %2081 = vmatprep.subr.mxu0 %v1938
    %2082 = vmatpush1.msra.mxu0 %v1937
    %2083 = vmatprep.subr.mxu0 %v1942
    %2084 = vmatpush1.msra.mxu0 %v1941
    %2085 = vmatprep.subr.mxu0 %v1946
    %2086 = vmatpush1.msra.mxu0 %v1945
    %2087 = vmatprep.subr.mxu0 %v1950
    %2088 = vmatpush1.msra.mxu0 %v1949
    %2089 = vmatprep.subr.mxu0 %v1954
    %2090 = vmatpush1.msra.mxu0 %v1953
    %2091 = vmatprep.subr.mxu0 %v1958
    %2092 = vmatpush1.msra.mxu0 %v1957
    %2093 = vmatprep.subr.mxu0 %v1962
    %2094 = vmatpush1.msra.mxu0 %v1961
    %2095 = vmatprep.subr.mxu0 %v1966
    %2096 = vmatpush1.msra.mxu0 %v1965
    %2097 = vmatprep.subr.mxu0 %v1970
    %2098 = vmatpush1.msra.mxu0 %v1969
    %2099 = vmatprep.subr.mxu0 0.0
    %2100 = vmatpush1.msra.mxu0 0.0
    %2101 = vmatprep.subr.mxu0 0.0
    %2102 = vmatpush1.msra.mxu0 0.0
    %2103 = vmatprep.subr.mxu0 0.0
    %2104 = vmatpush1.msra.mxu0 0.0
    %2105 = vmatprep.subr.mxu0 0.0
    %2106 = vmatpush1.msra.mxu0 0.0
    %2107 = vmatprep.subr.mxu0 0.0
    %2108 = vmatpush1.msra.mxu0 0.0
    %2109 = vmatprep.subr.mxu0 0.0
    %2110 = vmatpush1.msra.mxu0 0.0
    %2111 = vmatprep.subr.mxu0 0.0
    %2112 = vmatpush1.msra.mxu0 0.0
    %2113 = vmatprep.subr.mxu0 0.0
    %2114 = vmatpush1.msra.mxu0 0.0
    %2115 = vmatprep.subr.mxu0 0.0
    %2116 = vmatpush1.msra.mxu0 0.0
    %2117 = vmatprep.subr.mxu0 0.0
    %2118 = vmatpush1.msra.mxu0 0.0
    %2119 = vmatprep.subr.mxu0 0.0
    %2120 = vmatpush1.msra.mxu0 0.0
    %2121 = vmatprep.subr.mxu0 0.0
    %2122 = vmatpush1.msra.mxu0 0.0
    %2123 = vmatprep.subr.mxu0 0.0
    %2124 = vmatpush1.msra.mxu0 0.0
    %2125 = vmatprep.subr.mxu0 0.0
    %2126 = vmatpush1.msra.mxu0 0.0
    %2127 = vmatprep.subr.mxu0 0.0
    %2128 = vmatpush1.msra.mxu0 0.0
    %2129 = vmatprep.subr.mxu0 0.0
    %2130 = vmatpush1.msra.mxu0 0.0
    %2131 = vmatprep.mubr.f32.mxu0 0.0
    %2132 = vmatmul.mubr.f32.gmra.mrb[0].mxu0 %v2038
    %v2133 = vpop.f32.mrb[0].mxu0
    %v2134 = vadd.f32 %v2050, %v2133
    %v2135 = vpop.f32.mrb[0].mxu0
    %v2136 = vadd.f32 %v2054, %v2135
    %2137 = vmatprep.mubr.f32.mxu0 0.0
    %2138 = vmatmul.mubr.f32.gmra.mrb[0].mxu0 %v2039
    %v2139 = vpop.f32.mrb[0].mxu0
    %v2140 = vadd.f32 %v2050, %v2139
    %v2141 = vpop.f32.mrb[0].mxu0
    %v2142 = vadd.f32 %v2054, %v2141
    %2143 = vmatprep.mubr.f32.mxu0 0.0
    %2144 = vmatmul.mubr.f32.gmra.mrb[0].mxu0 %v2040
    %v2145 = vpop.f32.mrb[0].mxu0
    %v2146 = vadd.f32 %v2050, %v2145
    %v2147 = vpop.f32.mrb[0].mxu0
    %v2148 = vadd.f32 %v2054, %v2147
    %2149 = vmatprep.mubr.f32.mxu0 0.0
    %2150 = vmatmul.mubr.f32.gmra.mrb[0].mxu0 %v2041
    %v2151 = vpop.f32.mrb[0].mxu0
    %v2152 = vadd.f32 %v2050, %v2151
    %v2153 = vpop.f32.mrb[0].mxu0
    %v2154 = vadd.f32 %v2054, %v2153
    %2155 = vmatprep.mubr.f32.mxu0 0.0
    %2156 = vmatmul.mubr.f32.gmra.mrb[0].mxu0 %v2042
    %v2157 = vpop.f32.mrb[0].mxu0
    %v2158 = vadd.f32 %v2050, %v2157
    %v2159 = vpop.f32.mrb[0].mxu0
    %v2160 = vadd.f32 %v2054, %v2159
    %2161 = vmatprep.mubr.f32.mxu0 0.0
    %2162 = vmatmul.mubr.f32.gmra.mrb[0].mxu0 %v2043
    %v2163 = vpop.f32.mrb[0].mxu0
    %v2164 = vadd.f32 %v2050, %v2163
    %v2165 = vpop.f32.mrb[0].mxu0
    %v2166 = vadd.f32 %v2054, %v2165
    %2167 = vmatprep.mubr.f32.mxu0 0.0
    %2168 = vmatmul.mubr.f32.gmra.mrb[0].mxu0 %v2044
    %v2169 = vpop.f32.mrb[0].mxu0
    %v2170 = vadd.f32 %v2050, %v2169
    %v2171 = vpop.f32.mrb[0].mxu0
    %v2172 = vadd.f32 %v2054, %v2171
    %2173 = vmatprep.mubr.f32.mxu0 0.0
    %2174 = vmatmul.mubr.f32.gmra.mrb[0].mxu0 %v2045
    %v2175 = vpop.f32.mrb[0].mxu0
    %v2176 = vadd.f32 %v2050, %v2175
    %v2177 = vpop.f32.mrb[0].mxu0
    %v2178 = vadd.f32 %v2054, %v2177
    %2179 = vdwg.mxu0
    %2180 = vmatprep.subr.mxu0 %v1912
    %2181 = vmatpush1.msra.mxu0 %v1911
    %2182 = vmatprep.subr.mxu0 %v1916
    %2183 = vmatpush1.msra.mxu0 %v1915
    %2184 = vmatprep.subr.mxu0 %v1920
    %2185 = vmatpush1.msra.mxu0 %v1919
    %2186 = vmatprep.subr.mxu0 %v1924
    %2187 = vmatpush1.msra.mxu0 %v1923
    %2188 = vmatprep.subr.mxu0 %v1928
    %2189 = vmatpush1.msra.mxu0 %v1927
    %2190 = vmatprep.subr.mxu0 %v1932
    %2191 = vmatpush1.msra.mxu0 %v1931
    %2192 = vmatprep.subr.mxu0 %v1936
    %2193 = vmatpush1.msra.mxu0 %v1935
    %2194 = vmatprep.subr.mxu0 %v1940
    %2195 = vmatpush1.msra.mxu0 %v1939
    %2196 = vmatprep.subr.mxu0 %v1944
    %2197 = vmatpush1.msra.mxu0 %v1943
    %2198 = vmatprep.subr.mxu0 %v1948
    %2199 = vmatpush1.msra.mxu0 %v1947
    %2200 = vmatprep.subr.mxu0 %v1952
    %2201 = vmatpush1.msra.mxu0 %v1951
    %2202 = vmatprep.subr.mxu0 %v1956
    %2203 = vmatpush1.msra.mxu0 %v1955
    %2204 = vmatprep.subr.mxu0 %v1960
    %2205 = vmatpush1.msra.mxu0 %v1959
    %2206 = vmatprep.subr.mxu0 %v1964
    %2207 = vmatpush1.msra.mxu0 %v1963
    %2208 = vmatprep.subr.mxu0 %v1968
    %2209 = vmatpush1.msra.mxu0 %v1967
    %2210 = vmatprep.subr.mxu0 %v1972
    %2211 = vmatpush1.msra.mxu0 %v1971
    %2212 = vmatprep.subr.mxu0 0.0
    %2213 = vmatpush1.msra.mxu0 0.0
    %2214 = vmatprep.subr.mxu0 0.0
    %2215 = vmatpush1.msra.mxu0 0.0
    %2216 = vmatprep.subr.mxu0 0.0
    %2217 = vmatpush1.msra.mxu0 0.0
    %2218 = vmatprep.subr.mxu0 0.0
    %2219 = vmatpush1.msra.mxu0 0.0
    %2220 = vmatprep.subr.mxu0 0.0
    %2221 = vmatpush1.msra.mxu0 0.0
    %2222 = vmatprep.subr.mxu0 0.0
    %2223 = vmatpush1.msra.mxu0 0.0
    %2224 = vmatprep.subr.mxu0 0.0
    %2225 = vmatpush1.msra.mxu0 0.0
    %2226 = vmatprep.subr.mxu0 0.0
    %2227 = vmatpush1.msra.mxu0 0.0
    %2228 = vmatprep.subr.mxu0 0.0
    %2229 = vmatpush1.msra.mxu0 0.0
    %2230 = vmatprep.subr.mxu0 0.0
    %2231 = vmatpush1.msra.mxu0 0.0
    %2232 = vmatprep.subr.mxu0 0.0
    %2233 = vmatpush1.msra.mxu0 0.0
    %2234 = vmatprep.subr.mxu0 0.0
    %2235 = vmatpush1.msra.mxu0 0.0
    %2236 = vmatprep.subr.mxu0 0.0
    %2237 = vmatpush1.msra.mxu0 0.0
    %2238 = vmatprep.subr.mxu0 0.0
    %2239 = vmatpush1.msra.mxu0 0.0
    %2240 = vmatprep.subr.mxu0 0.0
    %2241 = vmatpush1.msra.mxu0 0.0
    %2242 = vmatprep.subr.mxu0 0.0
    %2243 = vmatpush1.msra.mxu0 0.0
    %2244 = vmatprep.mubr.f32.mxu0 0.0
    %2245 = vmatmul.mubr.f32.gmra.mrb[0].mxu0 %v2038
    %v2246 = vpop.f32.mrb[0].mxu0
    %v2247 = vadd.f32 %v2058, %v2246
    %v2248 = vpop.f32.mrb[0].mxu0
    %v2249 = vadd.f32 %v2062, %v2248
    %2250 = vmatprep.mubr.f32.mxu0 0.0
    %2251 = vmatmul.mubr.f32.gmra.mrb[0].mxu0 %v2039
    %v2252 = vpop.f32.mrb[0].mxu0
    %v2253 = vadd.f32 %v2058, %v2252
    %v2254 = vpop.f32.mrb[0].mxu0
    %v2255 = vadd.f32 %v2062, %v2254
    %2256 = vmatprep.mubr.f32.mxu0 0.0
    %2257 = vmatmul.mubr.f32.gmra.mrb[0].mxu0 %v2040
    %v2258 = vpop.f32.mrb[0].mxu0
    %v2259 = vadd.f32 %v2058, %v2258
    %v2260 = vpop.f32.mrb[0].mxu0
    %v2261 = vadd.f32 %v2062, %v2260
    %2262 = vmatprep.mubr.f32.mxu0 0.0
    %2263 = vmatmul.mubr.f32.gmra.mrb[0].mxu0 %v2041
    %v2264 = vpop.f32.mrb[0].mxu0
    %v2265 = vadd.f32 %v2058, %v2264
    %v2266 = vpop.f32.mrb[0].mxu0
    %v2267 = vadd.f32 %v2062, %v2266
    %2268 = vmatprep.mubr.f32.mxu0 0.0
    %2269 = vmatmul.mubr.f32.gmra.mrb[0].mxu0 %v2042
    %v2270 = vpop.f32.mrb[0].mxu0
    %v2271 = vadd.f32 %v2058, %v2270
    %v2272 = vpop.f32.mrb[0].mxu0
    %v2273 = vadd.f32 %v2062, %v2272
    %2274 = vmatprep.mubr.f32.mxu0 0.0
    %2275 = vmatmul.mubr.f32.gmra.mrb[0].mxu0 %v2043
    %v2276 = vpop.f32.mrb[0].mxu0
    %v2277 = vadd.f32 %v2058, %v2276
    %v2278 = vpop.f32.mrb[0].mxu0
    %v2279 = vadd.f32 %v2062, %v2278
    %2280 = vmatprep.mubr.f32.mxu0 0.0
    %2281 = vmatmul.mubr.f32.gmra.mrb[0].mxu0 %v2044
    %v2282 = vpop.f32.mrb[0].mxu0
    %v2283 = vadd.f32 %v2058, %v2282
    %v2284 = vpop.f32.mrb[0].mxu0
    %v2285 = vadd.f32 %v2062, %v2284
    %2286 = vmatprep.mubr.f32.mxu0 0.0
    %2287 = vmatmul.mubr.f32.gmra.mrb[0].mxu0 %v2045
    %v2288 = vpop.f32.mrb[0].mxu0
    %v2289 = vadd.f32 %v2058, %v2288
    %v2290 = vpop.f32.mrb[0].mxu0
    %v2291 = vadd.f32 %v2062, %v2290
    %2292 = vdwg.mxu0
    %2293 = vst [vmem:[#allocation5] sm:$0xff] %v2134
    %2294 = vst [vmem:[#allocation5 + $0x8] sm:$0xff] %v2136
    %2295 = vst [vmem:[#allocation5 + $0x10] sm:$0xff] %v2247
    %2296 = vst [vmem:[#allocation5 + $0x18] sm:$0xff] %v2249
    %2297 = vst [vmem:[#allocation5 + $0x20] sm:$0xff] %v2140
    %2298 = vst [vmem:[#allocation5 + $0x28] sm:$0xff] %v2142
    %2299 = vst [vmem:[#allocation5 + $0x30] sm:$0xff] %v2253
    %2300 = vst [vmem:[#allocation5 + $0x38] sm:$0xff] %v2255
    %2301 = vst [vmem:[#allocation5 + $0x40] sm:$0xff] %v2146
    %2302 = vst [vmem:[#allocation5 + $0x48] sm:$0xff] %v2148
    %2303 = vst [vmem:[#allocation5 + $0x50] sm:$0xff] %v2259
    %2304 = vst [vmem:[#allocation5 + $0x58] sm:$0xff] %v2261
    %2305 = vst [vmem:[#allocation5 + $0x60] sm:$0xff] %v2152
    %2306 = vst [vmem:[#allocation5 + $0x68] sm:$0xff] %v2154
    %2307 = vst [vmem:[#allocation5 + $0x70] sm:$0xff] %v2265
    %2308 = vst [vmem:[#allocation5 + $0x78] sm:$0xff] %v2267
    %2309 = vst [vmem:[#allocation5 + $0x80] sm:$0xff] %v2158
    %2310 = vst [vmem:[#allocation5 + $0x88] sm:$0xff] %v2160
    %2311 = vst [vmem:[#allocation5 + $0x90] sm:$0xff] %v2271
    %2312 = vst [vmem:[#allocation5 + $0x98] sm:$0xff] %v2273
    %2313 = vst [vmem:[#allocation5 + $0xa0] sm:$0xff] %v2164
    %2314 = vst [vmem:[#allocation5 + $0xa8] sm:$0xff] %v2166
    %2315 = vst [vmem:[#allocation5 + $0xb0] sm:$0xff] %v2277
    %2316 = vst [vmem:[#allocation5 + $0xb8] sm:$0xff] %v2279
    %2317 = vst [vmem:[#allocation5 + $0xc0] sm:$0xff] %v2170
    %2318 = vst [vmem:[#allocation5 + $0xc8] sm:$0xff] %v2172
    %2319 = vst [vmem:[#allocation5 + $0xd0] sm:$0xff] %v2283
    %2320 = vst [vmem:[#allocation5 + $0xd8] sm:$0xff] %v2285
    %2321 = vst [vmem:[#allocation5 + $0xe0] sm:$0xff] %v2176
    %2322 = vst [vmem:[#allocation5 + $0xe8] sm:$0xff] %v2178
    %2323 = vst [vmem:[#allocation5 + $0xf0] sm:$0xff] %v2289
    %2324 = vst [vmem:[#allocation5 + $0xf8] sm:$0xff] %v2291
    %s2325 = scalar_lea.vmem [#allocation2], 8
    %v2326 = vld [vmem:[%s2325] sm:$0xff]
    %s2327 = scalar_lea.vmem [#allocation3], 8
    %v2328 = vld [vmem:[%s2327] sm:$0xff]
    %v2329 = vld [vmem:[#allocation5] sm:$0xff]
    %v2330 = vld [vmem:[#allocation5 + $0x8] sm:$0xff]
    %v2331 = vld [vmem:[#allocation5 + $0x10] sm:$0xff]
    %v2332 = vld [vmem:[#allocation5 + $0x18] sm:$0xff]
    %2333 = vmatprep.subr.mxu0 %v1974
    %2334 = vmatpush1.msra.mxu0 %v1973
    %2335 = vmatprep.subr.mxu0 %v1978
    %2336 = vmatpush1.msra.mxu0 %v1977
    %2337 = vmatprep.subr.mxu0 %v1982
    %2338 = vmatpush1.msra.mxu0 %v1981
    %2339 = vmatprep.subr.mxu0 %v1986
    %2340 = vmatpush1.msra.mxu0 %v1985
    %2341 = vmatprep.subr.mxu0 %v1990
    %2342 = vmatpush1.msra.mxu0 %v1989
    %2343 = vmatprep.subr.mxu0 %v1994
    %2344 = vmatpush1.msra.mxu0 %v1993
    %2345 = vmatprep.subr.mxu0 %v1998
    %2346 = vmatpush1.msra.mxu0 %v1997
    %2347 = vmatprep.subr.mxu0 %v2002
    %2348 = vmatpush1.msra.mxu0 %v2001
    %2349 = vmatprep.subr.mxu0 %v2006
    %2350 = vmatpush1.msra.mxu0 %v2005
    %2351 = vmatprep.subr.mxu0 %v2010
    %2352 = vmatpush1.msra.mxu0 %v2009
    %2353 = vmatprep.subr.mxu0 %v2014
    %2354 = vmatpush1.msra.mxu0 %v2013
    %2355 = vmatprep.subr.mxu0 %v2018
    %2356 = vmatpush1.msra.mxu0 %v2017
    %2357 = vmatprep.subr.mxu0 %v2022
    %2358 = vmatpush1.msra.mxu0 %v2021
    %2359 = vmatprep.subr.mxu0 %v2026
    %2360 = vmatpush1.msra.mxu0 %v2025
    %2361 = vmatprep.subr.mxu0 %v2030
    %2362 = vmatpush1.msra.mxu0 %v2029
    %2363 = vmatprep.subr.mxu0 %v2034
    %2364 = vmatpush1.msra.mxu0 %v2033
    %2365 = vmatprep.subr.mxu0 0.0
    %2366 = vmatpush1.msra.mxu0 0.0
    %2367 = vmatprep.subr.mxu0 0.0
    %2368 = vmatpush1.msra.mxu0 0.0
    %2369 = vmatprep.subr.mxu0 0.0
    %2370 = vmatpush1.msra.mxu0 0.0
    %2371 = vmatprep.subr.mxu0 0.0
    %2372 = vmatpush1.msra.mxu0 0.0
    %2373 = vmatprep.subr.mxu0 0.0
    %2374 = vmatpush1.msra.mxu0 0.0
    %2375 = vmatprep.subr.mxu0 0.0
    %2376 = vmatpush1.msra.mxu0 0.0
    %2377 = vmatprep.subr.mxu0 0.0
    %2378 = vmatpush1.msra.mxu0 0.0
    %2379 = vmatprep.subr.mxu0 0.0
    %2380 = vmatpush1.msra.mxu0 0.0
    %2381 = vmatprep.subr.mxu0 0.0
    %2382 = vmatpush1.msra.mxu0 0.0
    %2383 = vmatprep.subr.mxu0 0.0
    %2384 = vmatpush1.msra.mxu0 0.0
    %2385 = vmatprep.subr.mxu0 0.0
    %2386 = vmatpush1.msra.mxu0 0.0
    %2387 = vmatprep.subr.mxu0 0.0
    %2388 = vmatpush1.msra.mxu0 0.0
    %2389 = vmatprep.subr.mxu0 0.0
    %2390 = vmatpush1.msra.mxu0 0.0
    %2391 = vmatprep.subr.mxu0 0.0
    %2392 = vmatpush1.msra.mxu0 0.0
    %2393 = vmatprep.subr.mxu0 0.0
    %2394 = vmatpush1.msra.mxu0 0.0
    %2395 = vmatprep.subr.mxu0 0.0
    %2396 = vmatpush1.msra.mxu0 0.0
    %2397 = vmatprep.mubr.f32.mxu0 0.0
    %2398 = vmatmul.mubr.f32.gmra.mrb[0].mxu0 %v2326
    %v2399 = vpop.f32.mrb[0].mxu0
    %v2400 = vadd.f32 0.0, %v2399
    %v2401 = vpop.f32.mrb[0].mxu0
    %v2402 = vadd.f32 0.0, %v2401
    %2403 = vdwg.mxu0
    %2404 = vmatprep.subr.mxu0 %v1976
    %2405 = vmatpush1.msra.mxu0 %v1975
    %2406 = vmatprep.subr.mxu0 %v1980
    %2407 = vmatpush1.msra.mxu0 %v1979
    %2408 = vmatprep.subr.mxu0 %v1984
    %2409 = vmatpush1.msra.mxu0 %v1983
    %2410 = vmatprep.subr.mxu0 %v1988
    %2411 = vmatpush1.msra.mxu0 %v1987
    %2412 = vmatprep.subr.mxu0 %v1992
    %2413 = vmatpush1.msra.mxu0 %v1991
    %2414 = vmatprep.subr.mxu0 %v1996
    %2415 = vmatpush1.msra.mxu0 %v1995
    %2416 = vmatprep.subr.mxu0 %v2000
    %2417 = vmatpush1.msra.mxu0 %v1999
    %2418 = vmatprep.subr.mxu0 %v2004
    %2419 = vmatpush1.msra.mxu0 %v2003
    %2420 = vmatprep.subr.mxu0 %v2008
    %2421 = vmatpush1.msra.mxu0 %v2007
    %2422 = vmatprep.subr.mxu0 %v2012
    %2423 = vmatpush1.msra.mxu0 %v2011
    %2424 = vmatprep.subr.mxu0 %v2016
    %2425 = vmatpush1.msra.mxu0 %v2015
    %2426 = vmatprep.subr.mxu0 %v2020
    %2427 = vmatpush1.msra.mxu0 %v2019
    %2428 = vmatprep.subr.mxu0 %v2024
    %2429 = vmatpush1.msra.mxu0 %v2023
    %2430 = vmatprep.subr.mxu0 %v2028
    %2431 = vmatpush1.msra.mxu0 %v2027
    %2432 = vmatprep.subr.mxu0 %v2032
    %2433 = vmatpush1.msra.mxu0 %v2031
    %2434 = vmatprep.subr.mxu0 %v2036
    %2435 = vmatpush1.msra.mxu0 %v2035
    %2436 = vmatprep.subr.mxu0 0.0
    %2437 = vmatpush1.msra.mxu0 0.0
    %2438 = vmatprep.subr.mxu0 0.0
    %2439 = vmatpush1.msra.mxu0 0.0
    %2440 = vmatprep.subr.mxu0 0.0
    %2441 = vmatpush1.msra.mxu0 0.0
    %2442 = vmatprep.subr.mxu0 0.0
    %2443 = vmatpush1.msra.mxu0 0.0
    %2444 = vmatprep.subr.mxu0 0.0
    %2445 = vmatpush1.msra.mxu0 0.0
    %2446 = vmatprep.subr.mxu0 0.0
    %2447 = vmatpush1.msra.mxu0 0.0
    %2448 = vmatprep.subr.mxu0 0.0
    %2449 = vmatpush1.msra.mxu0 0.0
    %2450 = vmatprep.subr.mxu0 0.0
    %2451 = vmatpush1.msra.mxu0 0.0
    %2452 = vmatprep.subr.mxu0 0.0
    %2453 = vmatpush1.msra.mxu0 0.0
    %2454 = vmatprep.subr.mxu0 0.0
    %2455 = vmatpush1.msra.mxu0 0.0
    %2456 = vmatprep.subr.mxu0 0.0
    %2457 = vmatpush1.msra.mxu0 0.0
    %2458 = vmatprep.subr.mxu0 0.0
    %2459 = vmatpush1.msra.mxu0 0.0
    %2460 = vmatprep.subr.mxu0 0.0
    %2461 = vmatpush1.msra.mxu0 0.0
    %2462 = vmatprep.subr.mxu0 0.0
    %2463 = vmatpush1.msra.mxu0 0.0
    %2464 = vmatprep.subr.mxu0 0.0
    %2465 = vmatpush1.msra.mxu0 0.0
    %2466 = vmatprep.subr.mxu0 0.0
    %2467 = vmatpush1.msra.mxu0 0.0
    %2468 = vmatprep.mubr.f32.mxu0 0.0
    %2469 = vmatmul.mubr.f32.gmra.mrb[0].mxu0 %v2326
    %v2470 = vpop.f32.mrb[0].mxu0
    %v2471 = vadd.f32 0.0, %v2470
    %v2472 = vpop.f32.mrb[0].mxu0
    %v2473 = vadd.f32 0.0, %v2472
    %2474 = vdwg.mxu0
    %v2475 = vadd.f32 %v2329, %v2400
    %v2476 = vadd.f32 %v2330, %v2402
    %v2477 = vadd.f32 %v2331, %v2471
    %v2478 = vadd.f32 %v2332, %v2473
    %v2479 = vmul.f32 %v2475, 0.5
    %v2480 = vtanh.pop %v2479
    %v2481 = vmul.f32 %v2480, 0.5
    %v2482 = vadd.f32 %v2481, 0.5
    %v2483 = vmul.f32 %v2476, 0.5
    %v2484 = vtanh.pop %v2483
    %v2485 = vmul.f32 %v2484, 0.5
    %v2486 = vadd.f32 %v2485, 0.5
    %v2487 = vtanh.pop %v2477
    %v2488 = vmul.f32 %v2478, 0.5
    %v2489 = vtanh.pop %v2488
    %v2490 = vmul.f32 %v2489, 0.5
    %v2491 = vadd.f32 %v2490, 0.5
    %v2492 = vmul.f32 %v2486, %v2328
    %v2493 = vmul.f32 %v2482, %v2487
    %v2494 = vadd.f32 %v2492, %v2493
    %v2495 = vtanh.pop %v2494
    %v2496 = vmul.f32 %v2491, %v2495
    %2497 = vst [vmem:[#allocation4] sm:$0xff] %v2496
    %v2498 = vld [vmem:[%s710] sm:$0xff]
    %v2499 = vld [vmem:[%s710 + $0x8] sm:$0xff]
    %v2500 = vld [vmem:[%s710 + $0x10] sm:$0xff]
    %v2501 = vld [vmem:[%s710 + $0x18] sm:$0xff]
    %2502 = vmatprep.subr.mxu0 %v1974
    %2503 = vmatpush1.msra.mxu0 %v1973
    %2504 = vmatprep.subr.mxu0 %v1978
    %2505 = vmatpush1.msra.mxu0 %v1977
    %2506 = vmatprep.subr.mxu0 %v1982
    %2507 = vmatpush1.msra.mxu0 %v1981
    %2508 = vmatprep.subr.mxu0 %v1986
    %2509 = vmatpush1.msra.mxu0 %v1985
    %2510 = vmatprep.subr.mxu0 %v1990
    %2511 = vmatpush1.msra.mxu0 %v1989
    %2512 = vmatprep.subr.mxu0 %v1994
    %2513 = vmatpush1.msra.mxu0 %v1993
    %2514 = vmatprep.subr.mxu0 %v1998
    %2515 = vmatpush1.msra.mxu0 %v1997
    %2516 = vmatprep.subr.mxu0 %v2002
    %2517 = vmatpush1.msra.mxu0 %v2001
    %2518 = vmatprep.subr.mxu0 %v2006
    %2519 = vmatpush1.msra.mxu0 %v2005
    %2520 = vmatprep.subr.mxu0 %v2010
    %2521 = vmatpush1.msra.mxu0 %v2009
    %2522 = vmatprep.subr.mxu0 %v2014
    %2523 = vmatpush1.msra.mxu0 %v2013
    %2524 = vmatprep.subr.mxu0 %v2018
    %2525 = vmatpush1.msra.mxu0 %v2017
    %2526 = vmatprep.subr.mxu0 %v2022
    %2527 = vmatpush1.msra.mxu0 %v2021
    %2528 = vmatprep.subr.mxu0 %v2026
    %2529 = vmatpush1.msra.mxu0 %v2025
    %2530 = vmatprep.subr.mxu0 %v2030
    %2531 = vmatpush1.msra.mxu0 %v2029
    %2532 = vmatprep.subr.mxu0 %v2034
    %2533 = vmatpush1.msra.mxu0 %v2033
    %2534 = vmatprep.subr.mxu0 0.0
    %2535 = vmatpush1.msra.mxu0 0.0
    %2536 = vmatprep.subr.mxu0 0.0
    %2537 = vmatpush1.msra.mxu0 0.0
    %2538 = vmatprep.subr.mxu0 0.0
    %2539 = vmatpush1.msra.mxu0 0.0
    %2540 = vmatprep.subr.mxu0 0.0
    %2541 = vmatpush1.msra.mxu0 0.0
    %2542 = vmatprep.subr.mxu0 0.0
    %2543 = vmatpush1.msra.mxu0 0.0
    %2544 = vmatprep.subr.mxu0 0.0
    %2545 = vmatpush1.msra.mxu0 0.0
    %2546 = vmatprep.subr.mxu0 0.0
    %2547 = vmatpush1.msra.mxu0 0.0
    %2548 = vmatprep.subr.mxu0 0.0
    %2549 = vmatpush1.msra.mxu0 0.0
    %2550 = vmatprep.subr.mxu0 0.0
    %2551 = vmatpush1.msra.mxu0 0.0
    %2552 = vmatprep.subr.mxu0 0.0
    %2553 = vmatpush1.msra.mxu0 0.0
    %2554 = vmatprep.subr.mxu0 0.0
    %2555 = vmatpush1.msra.mxu0 0.0
    %2556 = vmatprep.subr.mxu0 0.0
    %2557 = vmatpush1.msra.mxu0 0.0
    %2558 = vmatprep.subr.mxu0 0.0
    %2559 = vmatpush1.msra.mxu0 0.0
    %2560 = vmatprep.subr.mxu0 0.0
    %2561 = vmatpush1.msra.mxu0 0.0
    %2562 = vmatprep.subr.mxu0 0.0
    %2563 = vmatpush1.msra.mxu0 0.0
    %2564 = vmatprep.subr.mxu0 0.0
    %2565 = vmatpush1.msra.mxu0 0.0
    %2566 = vmatprep.mubr.f32.mxu0 0.0
    %2567 = vmatmul.mubr.f32.gmra.mrb[0].mxu0 %v2496
    %v2568 = vpop.f32.mrb[0].mxu0
    %v2569 = vadd.f32 0.0, %v2568
    %v2570 = vpop.f32.mrb[0].mxu0
    %v2571 = vadd.f32 0.0, %v2570
    %2572 = vdwg.mxu0
    %2573 = vmatprep.subr.mxu0 %v1976
    %2574 = vmatpush1.msra.mxu0 %v1975
    %2575 = vmatprep.subr.mxu0 %v1980
    %2576 = vmatpush1.msra.mxu0 %v1979
    %2577 = vmatprep.subr.mxu0 %v1984
    %2578 = vmatpush1.msra.mxu0 %v1983
    %2579 = vmatprep.subr.mxu0 %v1988
    %2580 = vmatpush1.msra.mxu0 %v1987
    %2581 = vmatprep.subr.mxu0 %v1992
    %2582 = vmatpush1.msra.mxu0 %v1991
    %2583 = vmatprep.subr.mxu0 %v1996
    %2584 = vmatpush1.msra.mxu0 %v1995
    %2585 = vmatprep.subr.mxu0 %v2000
    %2586 = vmatpush1.msra.mxu0 %v1999
    %2587 = vmatprep.subr.mxu0 %v2004
    %2588 = vmatpush1.msra.mxu0 %v2003
    %2589 = vmatprep.subr.mxu0 %v2008
    %2590 = vmatpush1.msra.mxu0 %v2007
    %2591 = vmatprep.subr.mxu0 %v2012
    %2592 = vmatpush1.msra.mxu0 %v2011
    %2593 = vmatprep.subr.mxu0 %v2016
    %2594 = vmatpush1.msra.mxu0 %v2015
    %2595 = vmatprep.subr.mxu0 %v2020
    %2596 = vmatpush1.msra.mxu0 %v2019
    %2597 = vmatprep.subr.mxu0 %v2024
    %2598 = vmatpush1.msra.mxu0 %v2023
    %2599 = vmatprep.subr.mxu0 %v2028
    %2600 = vmatpush1.msra.mxu0 %v2027
    %2601 = vmatprep.subr.mxu0 %v2032
    %2602 = vmatpush1.msra.mxu0 %v2031
    %2603 = vmatprep.subr.mxu0 %v2036
    %2604 = vmatpush1.msra.mxu0 %v2035
    %2605 = vmatprep.subr.mxu0 0.0
    %2606 = vmatpush1.msra.mxu0 0.0
    %2607 = vmatprep.subr.mxu0 0.0
    %2608 = vmatpush1.msra.mxu0 0.0
    %2609 = vmatprep.subr.mxu0 0.0
    %2610 = vmatpush1.msra.mxu0 0.0
    %2611 = vmatprep.subr.mxu0 0.0
    %2612 = vmatpush1.msra.mxu0 0.0
    %2613 = vmatprep.subr.mxu0 0.0
    %2614 = vmatpush1.msra.mxu0 0.0
    %2615 = vmatprep.subr.mxu0 0.0
    %2616 = vmatpush1.msra.mxu0 0.0
    %2617 = vmatprep.subr.mxu0 0.0
    %2618 = vmatpush1.msra.mxu0 0.0
    %2619 = vmatprep.subr.mxu0 0.0
    %2620 = vmatpush1.msra.mxu0 0.0
    %2621 = vmatprep.subr.mxu0 0.0
    %2622 = vmatpush1.msra.mxu0 0.0
    %2623 = vmatprep.subr.mxu0 0.0
    %2624 = vmatpush1.msra.mxu0 0.0
    %2625 = vmatprep.subr.mxu0 0.0
    %2626 = vmatpush1.msra.mxu0 0.0
    %2627 = vmatprep.subr.mxu0 0.0
    %2628 = vmatpush1.msra.mxu0 0.0
    %2629 = vmatprep.subr.mxu0 0.0
    %2630 = vmatpush1.msra.mxu0 0.0
    %2631 = vmatprep.subr.mxu0 0.0
    %2632 = vmatpush1.msra.mxu0 0.0
    %2633 = vmatprep.subr.mxu0 0.0
    %2634 = vmatpush1.msra.mxu0 0.0
    %2635 = vmatprep.subr.mxu0 0.0
    %2636 = vmatpush1.msra.mxu0 0.0
    %2637 = vmatprep.mubr.f32.mxu0 0.0
    %2638 = vmatmul.mubr.f32.gmra.mrb[0].mxu0 %v2496
    %v2639 = vpop.f32.mrb[0].mxu0
    %v2640 = vadd.f32 0.0, %v2639
    %v2641 = vpop.f32.mrb[0].mxu0
    %v2642 = vadd.f32 0.0, %v2641
    %2643 = vdwg.mxu0
    %v2644 = vadd.f32 %v2498, %v2569
    %v2645 = vadd.f32 %v2499, %v2571
    %v2646 = vadd.f32 %v2500, %v2640
    %v2647 = vadd.f32 %v2501, %v2642
    %v2648 = vmul.f32 %v2644, 0.5
    %v2649 = vtanh.pop %v2648
    %v2650 = vmul.f32 %v2649, 0.5
    %v2651 = vadd.f32 %v2650, 0.5
    %v2652 = vmul.f32 %v2645, 0.5
    %v2653 = vtanh.pop %v2652
    %v2654 = vmul.f32 %v2653, 0.5
    %v2655 = vadd.f32 %v2654, 0.5
    %v2656 = vtanh.pop %v2646
    %v2657 = vmul.f32 %v2647, 0.5
    %v2658 = vtanh.pop %v2657
    %v2659 = vmul.f32 %v2658, 0.5
    %v2660 = vadd.f32 %v2659, 0.5
    %v2661 = vmul.f32 %v2655, %v2494
    %v2662 = vmul.f32 %v2651, %v2656
    %v2663 = vadd.f32 %v2661, %v2662
    %v2664 = vtanh.pop %v2663
    %v2665 = vmul.f32 %v2660, %v2664
    %2666 = vst [vmem:[%s879] sm:$0xff] %v2665
    %v2667 = vld [vmem:[%s881] sm:$0xff]
    %v2668 = vld [vmem:[%s881 + $0x8] sm:$0xff]
    %v2669 = vld [vmem:[%s881 + $0x10] sm:$0xff]
    %v2670 = vld [vmem:[%s881 + $0x18] sm:$0xff]
    %2671 = vmatprep.subr.mxu0 %v1974
    %2672 = vmatpush1.msra.mxu0 %v1973
    %2673 = vmatprep.subr.mxu0 %v1978
    %2674 = vmatpush1.msra.mxu0 %v1977
    %2675 = vmatprep.subr.mxu0 %v1982
    %2676 = vmatpush1.msra.mxu0 %v1981
    %2677 = vmatprep.subr.mxu0 %v1986
    %2678 = vmatpush1.msra.mxu0 %v1985
    %2679 = vmatprep.subr.mxu0 %v1990
    %2680 = vmatpush1.msra.mxu0 %v1989
    %2681 = vmatprep.subr.mxu0 %v1994
    %2682 = vmatpush1.msra.mxu0 %v1993
    %2683 = vmatprep.subr.mxu0 %v1998
    %2684 = vmatpush1.msra.mxu0 %v1997
    %2685 = vmatprep.subr.mxu0 %v2002
    %2686 = vmatpush1.msra.mxu0 %v2001
    %2687 = vmatprep.subr.mxu0 %v2006
    %2688 = vmatpush1.msra.mxu0 %v2005
    %2689 = vmatprep.subr.mxu0 %v2010
    %2690 = vmatpush1.msra.mxu0 %v2009
    %2691 = vmatprep.subr.mxu0 %v2014
    %2692 = vmatpush1.msra.mxu0 %v2013
    %2693 = vmatprep.subr.mxu0 %v2018
    %2694 = vmatpush1.msra.mxu0 %v2017
    %2695 = vmatprep.subr.mxu0 %v2022
    %2696 = vmatpush1.msra.mxu0 %v2021
    %2697 = vmatprep.subr.mxu0 %v2026
    %2698 = vmatpush1.msra.mxu0 %v2025
    %2699 = vmatprep.subr.mxu0 %v2030
    %2700 = vmatpush1.msra.mxu0 %v2029
    %2701 = vmatprep.subr.mxu0 %v2034
    %2702 = vmatpush1.msra.mxu0 %v2033
    %2703 = vmatprep.subr.mxu0 0.0
    %2704 = vmatpush1.msra.mxu0 0.0
    %2705 = vmatprep.subr.mxu0 0.0
    %2706 = vmatpush1.msra.mxu0 0.0
    %2707 = vmatprep.subr.mxu0 0.0
    %2708 = vmatpush1.msra.mxu0 0.0
    %2709 = vmatprep.subr.mxu0 0.0
    %2710 = vmatpush1.msra.mxu0 0.0
    %2711 = vmatprep.subr.mxu0 0.0
    %2712 = vmatpush1.msra.mxu0 0.0
    %2713 = vmatprep.subr.mxu0 0.0
    %2714 = vmatpush1.msra.mxu0 0.0
    %2715 = vmatprep.subr.mxu0 0.0
    %2716 = vmatpush1.msra.mxu0 0.0
    %2717 = vmatprep.subr.mxu0 0.0
    %2718 = vmatpush1.msra.mxu0 0.0
    %2719 = vmatprep.subr.mxu0 0.0
    %2720 = vmatpush1.msra.mxu0 0.0
    %2721 = vmatprep.subr.mxu0 0.0
    %2722 = vmatpush1.msra.mxu0 0.0
    %2723 = vmatprep.subr.mxu0 0.0
    %2724 = vmatpush1.msra.mxu0 0.0
    %2725 = vmatprep.subr.mxu0 0.0
    %2726 = vmatpush1.msra.mxu0 0.0
    %2727 = vmatprep.subr.mxu0 0.0
    %2728 = vmatpush1.msra.mxu0 0.0
    %2729 = vmatprep.subr.mxu0 0.0
    %2730 = vmatpush1.msra.mxu0 0.0
    %2731 = vmatprep.subr.mxu0 0.0
    %2732 = vmatpush1.msra.mxu0 0.0
    %2733 = vmatprep.subr.mxu0 0.0
    %2734 = vmatpush1.msra.mxu0 0.0
    %2735 = vmatprep.mubr.f32.mxu0 0.0
    %2736 = vmatmul.mubr.f32.gmra.mrb[0].mxu0 %v2665
    %v2737 = vpop.f32.mrb[0].mxu0
    %v2738 = vadd.f32 0.0, %v2737
    %v2739 = vpop.f32.mrb[0].mxu0
    %v2740 = vadd.f32 0.0, %v2739
    %2741 = vdwg.mxu0
    %2742 = vmatprep.subr.mxu0 %v1976
    %2743 = vmatpush1.msra.mxu0 %v1975
    %2744 = vmatprep.subr.mxu0 %v1980
    %2745 = vmatpush1.msra.mxu0 %v1979
    %2746 = vmatprep.subr.mxu0 %v1984
    %2747 = vmatpush1.msra.mxu0 %v1983
    %2748 = vmatprep.subr.mxu0 %v1988
    %2749 = vmatpush1.msra.mxu0 %v1987
    %2750 = vmatprep.subr.mxu0 %v1992
    %2751 = vmatpush1.msra.mxu0 %v1991
    %2752 = vmatprep.subr.mxu0 %v1996
    %2753 = vmatpush1.msra.mxu0 %v1995
    %2754 = vmatprep.subr.mxu0 %v2000
    %2755 = vmatpush1.msra.mxu0 %v1999
    %2756 = vmatprep.subr.mxu0 %v2004
    %2757 = vmatpush1.msra.mxu0 %v2003
    %2758 = vmatprep.subr.mxu0 %v2008
    %2759 = vmatpush1.msra.mxu0 %v2007
    %2760 = vmatprep.subr.mxu0 %v2012
    %2761 = vmatpush1.msra.mxu0 %v2011
    %2762 = vmatprep.subr.mxu0 %v2016
    %2763 = vmatpush1.msra.mxu0 %v2015
    %2764 = vmatprep.subr.mxu0 %v2020
    %2765 = vmatpush1.msra.mxu0 %v2019
    %2766 = vmatprep.subr.mxu0 %v2024
    %2767 = vmatpush1.msra.mxu0 %v2023
    %2768 = vmatprep.subr.mxu0 %v2028
    %2769 = vmatpush1.msra.mxu0 %v2027
    %2770 = vmatprep.subr.mxu0 %v2032
    %2771 = vmatpush1.msra.mxu0 %v2031
    %2772 = vmatprep.subr.mxu0 %v2036
    %2773 = vmatpush1.msra.mxu0 %v2035
    %2774 = vmatprep.subr.mxu0 0.0
    %2775 = vmatpush1.msra.mxu0 0.0
    %2776 = vmatprep.subr.mxu0 0.0
    %2777 = vmatpush1.msra.mxu0 0.0
    %2778 = vmatprep.subr.mxu0 0.0
    %2779 = vmatpush1.msra.mxu0 0.0
    %2780 = vmatprep.subr.mxu0 0.0
    %2781 = vmatpush1.msra.mxu0 0.0
    %2782 = vmatprep.subr.mxu0 0.0
    %2783 = vmatpush1.msra.mxu0 0.0
    %2784 = vmatprep.subr.mxu0 0.0
    %2785 = vmatpush1.msra.mxu0 0.0
    %2786 = vmatprep.subr.mxu0 0.0
    %2787 = vmatpush1.msra.mxu0 0.0
    %2788 = vmatprep.subr.mxu0 0.0
    %2789 = vmatpush1.msra.mxu0 0.0
    %2790 = vmatprep.subr.mxu0 0.0
    %2791 = vmatpush1.msra.mxu0 0.0
    %2792 = vmatprep.subr.mxu0 0.0
    %2793 = vmatpush1.msra.mxu0 0.0
    %2794 = vmatprep.subr.mxu0 0.0
    %2795 = vmatpush1.msra.mxu0 0.0
    %2796 = vmatprep.subr.mxu0 0.0
    %2797 = vmatpush1.msra.mxu0 0.0
    %2798 = vmatprep.subr.mxu0 0.0
    %2799 = vmatpush1.msra.mxu0 0.0
    %2800 = vmatprep.subr.mxu0 0.0
    %2801 = vmatpush1.msra.mxu0 0.0
    %2802 = vmatprep.subr.mxu0 0.0
    %2803 = vmatpush1.msra.mxu0 0.0
    %2804 = vmatprep.subr.mxu0 0.0
    %2805 = vmatpush1.msra.mxu0 0.0
    %2806 = vmatprep.mubr.f32.mxu0 0.0
    %2807 = vmatmul.mubr.f32.gmra.mrb[0].mxu0 %v2665
    %v2808 = vpop.f32.mrb[0].mxu0
    %v2809 = vadd.f32 0.0, %v2808
    %v2810 = vpop.f32.mrb[0].mxu0
    %v2811 = vadd.f32 0.0, %v2810
    %2812 = vdwg.mxu0
    %v2813 = vadd.f32 %v2667, %v2738
    %v2814 = vadd.f32 %v2668, %v2740
    %v2815 = vadd.f32 %v2669, %v2809
    %v2816 = vadd.f32 %v2670, %v2811
    %v2817 = vmul.f32 %v2813, 0.5
    %v2818 = vtanh.pop %v2817
    %v2819 = vmul.f32 %v2818, 0.5
    %v2820 = vadd.f32 %v2819, 0.5
    %v2821 = vmul.f32 %v2814, 0.5
    %v2822 = vtanh.pop %v2821
    %v2823 = vmul.f32 %v2822, 0.5
    %v2824 = vadd.f32 %v2823, 0.5
    %v2825 = vtanh.pop %v2815
    %v2826 = vmul.f32 %v2816, 0.5
    %v2827 = vtanh.pop %v2826
    %v2828 = vmul.f32 %v2827, 0.5
    %v2829 = vadd.f32 %v2828, 0.5
    %v2830 = vmul.f32 %v2824, %v2663
    %v2831 = vmul.f32 %v2820, %v2825
    %v2832 = vadd.f32 %v2830, %v2831
    %v2833 = vtanh.pop %v2832
    %v2834 = vmul.f32 %v2829, %v2833
    %2835 = vst [vmem:[%s1050] sm:$0xff] %v2834
    %v2836 = vld [vmem:[%s1052] sm:$0xff]
    %v2837 = vld [vmem:[%s1052 + $0x8] sm:$0xff]
    %v2838 = vld [vmem:[%s1052 + $0x10] sm:$0xff]
    %v2839 = vld [vmem:[%s1052 + $0x18] sm:$0xff]
    %2840 = vmatprep.subr.mxu0 %v1974
    %2841 = vmatpush1.msra.mxu0 %v1973
    %2842 = vmatprep.subr.mxu0 %v1978
    %2843 = vmatpush1.msra.mxu0 %v1977
    %2844 = vmatprep.subr.mxu0 %v1982
    %2845 = vmatpush1.msra.mxu0 %v1981
    %2846 = vmatprep.subr.mxu0 %v1986
    %2847 = vmatpush1.msra.mxu0 %v1985
    %2848 = vmatprep.subr.mxu0 %v1990
    %2849 = vmatpush1.msra.mxu0 %v1989
    %2850 = vmatprep.subr.mxu0 %v1994
    %2851 = vmatpush1.msra.mxu0 %v1993
    %2852 = vmatprep.subr.mxu0 %v1998
    %2853 = vmatpush1.msra.mxu0 %v1997
    %2854 = vmatprep.subr.mxu0 %v2002
    %2855 = vmatpush1.msra.mxu0 %v2001
    %2856 = vmatprep.subr.mxu0 %v2006
    %2857 = vmatpush1.msra.mxu0 %v2005
    %2858 = vmatprep.subr.mxu0 %v2010
    %2859 = vmatpush1.msra.mxu0 %v2009
    %2860 = vmatprep.subr.mxu0 %v2014
    %2861 = vmatpush1.msra.mxu0 %v2013
    %2862 = vmatprep.subr.mxu0 %v2018
    %2863 = vmatpush1.msra.mxu0 %v2017
    %2864 = vmatprep.subr.mxu0 %v2022
    %2865 = vmatpush1.msra.mxu0 %v2021
    %2866 = vmatprep.subr.mxu0 %v2026
    %2867 = vmatpush1.msra.mxu0 %v2025
    %2868 = vmatprep.subr.mxu0 %v2030
    %2869 = vmatpush1.msra.mxu0 %v2029
    %2870 = vmatprep.subr.mxu0 %v2034
    %2871 = vmatpush1.msra.mxu0 %v2033
    %2872 = vmatprep.subr.mxu0 0.0
    %2873 = vmatpush1.msra.mxu0 0.0
    %2874 = vmatprep.subr.mxu0 0.0
    %2875 = vmatpush1.msra.mxu0 0.0
    %2876 = vmatprep.subr.mxu0 0.0
    %2877 = vmatpush1.msra.mxu0 0.0
    %2878 = vmatprep.subr.mxu0 0.0
    %2879 = vmatpush1.msra.mxu0 0.0
    %2880 = vmatprep.subr.mxu0 0.0
    %2881 = vmatpush1.msra.mxu0 0.0
    %2882 = vmatprep.subr.mxu0 0.0
    %2883 = vmatpush1.msra.mxu0 0.0
    %2884 = vmatprep.subr.mxu0 0.0
    %2885 = vmatpush1.msra.mxu0 0.0
    %2886 = vmatprep.subr.mxu0 0.0
    %2887 = vmatpush1.msra.mxu0 0.0
    %2888 = vmatprep.subr.mxu0 0.0
    %2889 = vmatpush1.msra.mxu0 0.0
    %2890 = vmatprep.subr.mxu0 0.0
    %2891 = vmatpush1.msra.mxu0 0.0
    %2892 = vmatprep.subr.mxu0 0.0
    %2893 = vmatpush1.msra.mxu0 0.0
    %2894 = vmatprep.subr.mxu0 0.0
    %2895 = vmatpush1.msra.mxu0 0.0
    %2896 = vmatprep.subr.mxu0 0.0
    %2897 = vmatpush1.msra.mxu0 0.0
    %2898 = vmatprep.subr.mxu0 0.0
    %2899 = vmatpush1.msra.mxu0 0.0
    %2900 = vmatprep.subr.mxu0 0.0
    %2901 = vmatpush1.msra.mxu0 0.0
    %2902 = vmatprep.subr.mxu0 0.0
    %2903 = vmatpush1.msra.mxu0 0.0
    %2904 = vmatprep.mubr.f32.mxu0 0.0
    %2905 = vmatmul.mubr.f32.gmra.mrb[0].mxu0 %v2834
    %v2906 = vpop.f32.mrb[0].mxu0
    %v2907 = vadd.f32 0.0, %v2906
    %v2908 = vpop.f32.mrb[0].mxu0
    %v2909 = vadd.f32 0.0, %v2908
    %2910 = vdwg.mxu0
    %2911 = vmatprep.subr.mxu0 %v1976
    %2912 = vmatpush1.msra.mxu0 %v1975
    %2913 = vmatprep.subr.mxu0 %v1980
    %2914 = vmatpush1.msra.mxu0 %v1979
    %2915 = vmatprep.subr.mxu0 %v1984
    %2916 = vmatpush1.msra.mxu0 %v1983
    %2917 = vmatprep.subr.mxu0 %v1988
    %2918 = vmatpush1.msra.mxu0 %v1987
    %2919 = vmatprep.subr.mxu0 %v1992
    %2920 = vmatpush1.msra.mxu0 %v1991
    %2921 = vmatprep.subr.mxu0 %v1996
    %2922 = vmatpush1.msra.mxu0 %v1995
    %2923 = vmatprep.subr.mxu0 %v2000
    %2924 = vmatpush1.msra.mxu0 %v1999
    %2925 = vmatprep.subr.mxu0 %v2004
    %2926 = vmatpush1.msra.mxu0 %v2003
    %2927 = vmatprep.subr.mxu0 %v2008
    %2928 = vmatpush1.msra.mxu0 %v2007
    %2929 = vmatprep.subr.mxu0 %v2012
    %2930 = vmatpush1.msra.mxu0 %v2011
    %2931 = vmatprep.subr.mxu0 %v2016
    %2932 = vmatpush1.msra.mxu0 %v2015
    %2933 = vmatprep.subr.mxu0 %v2020
    %2934 = vmatpush1.msra.mxu0 %v2019
    %2935 = vmatprep.subr.mxu0 %v2024
    %2936 = vmatpush1.msra.mxu0 %v2023
    %2937 = vmatprep.subr.mxu0 %v2028
    %2938 = vmatpush1.msra.mxu0 %v2027
    %2939 = vmatprep.subr.mxu0 %v2032
    %2940 = vmatpush1.msra.mxu0 %v2031
    %2941 = vmatprep.subr.mxu0 %v2036
    %2942 = vmatpush1.msra.mxu0 %v2035
    %2943 = vmatprep.subr.mxu0 0.0
    %2944 = vmatpush1.msra.mxu0 0.0
    %2945 = vmatprep.subr.mxu0 0.0
    %2946 = vmatpush1.msra.mxu0 0.0
    %2947 = vmatprep.subr.mxu0 0.0
    %2948 = vmatpush1.msra.mxu0 0.0
    %2949 = vmatprep.subr.mxu0 0.0
    %2950 = vmatpush1.msra.mxu0 0.0
    %2951 = vmatprep.subr.mxu0 0.0
    %2952 = vmatpush1.msra.mxu0 0.0
    %2953 = vmatprep.subr.mxu0 0.0
    %2954 = vmatpush1.msra.mxu0 0.0
    %2955 = vmatprep.subr.mxu0 0.0
    %2956 = vmatpush1.msra.mxu0 0.0
    %2957 = vmatprep.subr.mxu0 0.0
    %2958 = vmatpush1.msra.mxu0 0.0
    %2959 = vmatprep.subr.mxu0 0.0
    %2960 = vmatpush1.msra.mxu0 0.0
    %2961 = vmatprep.subr.mxu0 0.0
    %2962 = vmatpush1.msra.mxu0 0.0
    %2963 = vmatprep.subr.mxu0 0.0
    %2964 = vmatpush1.msra.mxu0 0.0
    %2965 = vmatprep.subr.mxu0 0.0
    %2966 = vmatpush1.msra.mxu0 0.0
    %2967 = vmatprep.subr.mxu0 0.0
    %2968 = vmatpush1.msra.mxu0 0.0
    %2969 = vmatprep.subr.mxu0 0.0
    %2970 = vmatpush1.msra.mxu0 0.0
    %2971 = vmatprep.subr.mxu0 0.0
    %2972 = vmatpush1.msra.mxu0 0.0
    %2973 = vmatprep.subr.mxu0 0.0
    %2974 = vmatpush1.msra.mxu0 0.0
    %2975 = vmatprep.mubr.f32.mxu0 0.0
    %2976 = vmatmul.mubr.f32.gmra.mrb[0].mxu0 %v2834
    %v2977 = vpop.f32.mrb[0].mxu0
    %v2978 = vadd.f32 0.0, %v2977
    %v2979 = vpop.f32.mrb[0].mxu0
    %v2980 = vadd.f32 0.0, %v2979
    %2981 = vdwg.mxu0
    %v2982 = vadd.f32 %v2836, %v2907
    %v2983 = vadd.f32 %v2837, %v2909
    %v2984 = vadd.f32 %v2838, %v2978
    %v2985 = vadd.f32 %v2839, %v2980
    %v2986 = vmul.f32 %v2982, 0.5
    %v2987 = vtanh.pop %v2986
    %v2988 = vmul.f32 %v2987, 0.5
    %v2989 = vadd.f32 %v2988, 0.5
    %v2990 = vmul.f32 %v2983, 0.5
    %v2991 = vtanh.pop %v2990
    %v2992 = vmul.f32 %v2991, 0.5
    %v2993 = vadd.f32 %v2992, 0.5
    %v2994 = vtanh.pop %v2984
    %v2995 = vmul.f32 %v2985, 0.5
    %v2996 = vtanh.pop %v2995
    %v2997 = vmul.f32 %v2996, 0.5
    %v2998 = vadd.f32 %v2997, 0.5
    %v2999 = vmul.f32 %v2993, %v2832
    %v3000 = vmul.f32 %v2989, %v2994
    %v3001 = vadd.f32 %v2999, %v3000
    %v3002 = vtanh.pop %v3001
    %v3003 = vmul.f32 %v2998, %v3002
    %3004 = vst [vmem:[%s1221] sm:$0xff] %v3003
    %v3005 = vld [vmem:[%s1223] sm:$0xff]
    %v3006 = vld [vmem:[%s1223 + $0x8] sm:$0xff]
    %v3007 = vld [vmem:[%s1223 + $0x10] sm:$0xff]
    %v3008 = vld [vmem:[%s1223 + $0x18] sm:$0xff]
    %3009 = vmatprep.subr.mxu0 %v1974
    %3010 = vmatpush1.msra.mxu0 %v1973
    %3011 = vmatprep.subr.mxu0 %v1978
    %3012 = vmatpush1.msra.mxu0 %v1977
    %3013 = vmatprep.subr.mxu0 %v1982
    %3014 = vmatpush1.msra.mxu0 %v1981
    %3015 = vmatprep.subr.mxu0 %v1986
    %3016 = vmatpush1.msra.mxu0 %v1985
    %3017 = vmatprep.subr.mxu0 %v1990
    %3018 = vmatpush1.msra.mxu0 %v1989
    %3019 = vmatprep.subr.mxu0 %v1994
    %3020 = vmatpush1.msra.mxu0 %v1993
    %3021 = vmatprep.subr.mxu0 %v1998
    %3022 = vmatpush1.msra.mxu0 %v1997
    %3023 = vmatprep.subr.mxu0 %v2002
    %3024 = vmatpush1.msra.mxu0 %v2001
    %3025 = vmatprep.subr.mxu0 %v2006
    %3026 = vmatpush1.msra.mxu0 %v2005
    %3027 = vmatprep.subr.mxu0 %v2010
    %3028 = vmatpush1.msra.mxu0 %v2009
    %3029 = vmatprep.subr.mxu0 %v2014
    %3030 = vmatpush1.msra.mxu0 %v2013
    %3031 = vmatprep.subr.mxu0 %v2018
    %3032 = vmatpush1.msra.mxu0 %v2017
    %3033 = vmatprep.subr.mxu0 %v2022
    %3034 = vmatpush1.msra.mxu0 %v2021
    %3035 = vmatprep.subr.mxu0 %v2026
    %3036 = vmatpush1.msra.mxu0 %v2025
    %3037 = vmatprep.subr.mxu0 %v2030
    %3038 = vmatpush1.msra.mxu0 %v2029
    %3039 = vmatprep.subr.mxu0 %v2034
    %3040 = vmatpush1.msra.mxu0 %v2033
    %3041 = vmatprep.subr.mxu0 0.0
    %3042 = vmatpush1.msra.mxu0 0.0
    %3043 = vmatprep.subr.mxu0 0.0
    %3044 = vmatpush1.msra.mxu0 0.0
    %3045 = vmatprep.subr.mxu0 0.0
    %3046 = vmatpush1.msra.mxu0 0.0
    %3047 = vmatprep.subr.mxu0 0.0
    %3048 = vmatpush1.msra.mxu0 0.0
    %3049 = vmatprep.subr.mxu0 0.0
    %3050 = vmatpush1.msra.mxu0 0.0
    %3051 = vmatprep.subr.mxu0 0.0
    %3052 = vmatpush1.msra.mxu0 0.0
    %3053 = vmatprep.subr.mxu0 0.0
    %3054 = vmatpush1.msra.mxu0 0.0
    %3055 = vmatprep.subr.mxu0 0.0
    %3056 = vmatpush1.msra.mxu0 0.0
    %3057 = vmatprep.subr.mxu0 0.0
    %3058 = vmatpush1.msra.mxu0 0.0
    %3059 = vmatprep.subr.mxu0 0.0
    %3060 = vmatpush1.msra.mxu0 0.0
    %3061 = vmatprep.subr.mxu0 0.0
    %3062 = vmatpush1.msra.mxu0 0.0
    %3063 = vmatprep.subr.mxu0 0.0
    %3064 = vmatpush1.msra.mxu0 0.0
    %3065 = vmatprep.subr.mxu0 0.0
    %3066 = vmatpush1.msra.mxu0 0.0
    %3067 = vmatprep.subr.mxu0 0.0
    %3068 = vmatpush1.msra.mxu0 0.0
    %3069 = vmatprep.subr.mxu0 0.0
    %3070 = vmatpush1.msra.mxu0 0.0
    %3071 = vmatprep.subr.mxu0 0.0
    %3072 = vmatpush1.msra.mxu0 0.0
    %3073 = vmatprep.mubr.f32.mxu0 0.0
    %3074 = vmatmul.mubr.f32.gmra.mrb[0].mxu0 %v3003
    %v3075 = vpop.f32.mrb[0].mxu0
    %v3076 = vadd.f32 0.0, %v3075
    %v3077 = vpop.f32.mrb[0].mxu0
    %v3078 = vadd.f32 0.0, %v3077
    %3079 = vdwg.mxu0
    %3080 = vmatprep.subr.mxu0 %v1976
    %3081 = vmatpush1.msra.mxu0 %v1975
    %3082 = vmatprep.subr.mxu0 %v1980
    %3083 = vmatpush1.msra.mxu0 %v1979
    %3084 = vmatprep.subr.mxu0 %v1984
    %3085 = vmatpush1.msra.mxu0 %v1983
    %3086 = vmatprep.subr.mxu0 %v1988
    %3087 = vmatpush1.msra.mxu0 %v1987
    %3088 = vmatprep.subr.mxu0 %v1992
    %3089 = vmatpush1.msra.mxu0 %v1991
    %3090 = vmatprep.subr.mxu0 %v1996
    %3091 = vmatpush1.msra.mxu0 %v1995
    %3092 = vmatprep.subr.mxu0 %v2000
    %3093 = vmatpush1.msra.mxu0 %v1999
    %3094 = vmatprep.subr.mxu0 %v2004
    %3095 = vmatpush1.msra.mxu0 %v2003
    %3096 = vmatprep.subr.mxu0 %v2008
    %3097 = vmatpush1.msra.mxu0 %v2007
    %3098 = vmatprep.subr.mxu0 %v2012
    %3099 = vmatpush1.msra.mxu0 %v2011
    %3100 = vmatprep.subr.mxu0 %v2016
    %3101 = vmatpush1.msra.mxu0 %v2015
    %3102 = vmatprep.subr.mxu0 %v2020
    %3103 = vmatpush1.msra.mxu0 %v2019
    %3104 = vmatprep.subr.mxu0 %v2024
    %3105 = vmatpush1.msra.mxu0 %v2023
    %3106 = vmatprep.subr.mxu0 %v2028
    %3107 = vmatpush1.msra.mxu0 %v2027
    %3108 = vmatprep.subr.mxu0 %v2032
    %3109 = vmatpush1.msra.mxu0 %v2031
    %3110 = vmatprep.subr.mxu0 %v2036
    %3111 = vmatpush1.msra.mxu0 %v2035
    %3112 = vmatprep.subr.mxu0 0.0
    %3113 = vmatpush1.msra.mxu0 0.0
    %3114 = vmatprep.subr.mxu0 0.0
    %3115 = vmatpush1.msra.mxu0 0.0
    %3116 = vmatprep.subr.mxu0 0.0
    %3117 = vmatpush1.msra.mxu0 0.0
    %3118 = vmatprep.subr.mxu0 0.0
    %3119 = vmatpush1.msra.mxu0 0.0
    %3120 = vmatprep.subr.mxu0 0.0
    %3121 = vmatpush1.msra.mxu0 0.0
    %3122 = vmatprep.subr.mxu0 0.0
    %3123 = vmatpush1.msra.mxu0 0.0
    %3124 = vmatprep.subr.mxu0 0.0
    %3125 = vmatpush1.msra.mxu0 0.0
    %3126 = vmatprep.subr.mxu0 0.0
    %3127 = vmatpush1.msra.mxu0 0.0
    %3128 = vmatprep.subr.mxu0 0.0
    %3129 = vmatpush1.msra.mxu0 0.0
    %3130 = vmatprep.subr.mxu0 0.0
    %3131 = vmatpush1.msra.mxu0 0.0
    %3132 = vmatprep.subr.mxu0 0.0
    %3133 = vmatpush1.msra.mxu0 0.0
    %3134 = vmatprep.subr.mxu0 0.0
    %3135 = vmatpush1.msra.mxu0 0.0
    %3136 = vmatprep.subr.mxu0 0.0
    %3137 = vmatpush1.msra.mxu0 0.0
    %3138 = vmatprep.subr.mxu0 0.0
    %3139 = vmatpush1.msra.mxu0 0.0
    %3140 = vmatprep.subr.mxu0 0.0
    %3141 = vmatpush1.msra.mxu0 0.0
    %3142 = vmatprep.subr.mxu0 0.0
    %3143 = vmatpush1.msra.mxu0 0.0
    %3144 = vmatprep.mubr.f32.mxu0 0.0
    %3145 = vmatmul.mubr.f32.gmra.mrb[0].mxu0 %v3003
    %v3146 = vpop.f32.mrb[0].mxu0
    %v3147 = vadd.f32 0.0, %v3146
    %v3148 = vpop.f32.mrb[0].mxu0
    %v3149 = vadd.f32 0.0, %v3148
    %3150 = vdwg.mxu0
    %v3151 = vadd.f32 %v3005, %v3076
    %v3152 = vadd.f32 %v3006, %v3078
    %v3153 = vadd.f32 %v3007, %v3147
    %v3154 = vadd.f32 %v3008, %v3149
    %v3155 = vmul.f32 %v3151, 0.5
    %v3156 = vtanh.pop %v3155
    %v3157 = vmul.f32 %v3156, 0.5
    %v3158 = vadd.f32 %v3157, 0.5
    %v3159 = vmul.f32 %v3152, 0.5
    %v3160 = vtanh.pop %v3159
    %v3161 = vmul.f32 %v3160, 0.5
    %v3162 = vadd.f32 %v3161, 0.5
    %v3163 = vtanh.pop %v3153
    %v3164 = vmul.f32 %v3154, 0.5
    %v3165 = vtanh.pop %v3164
    %v3166 = vmul.f32 %v3165, 0.5
    %v3167 = vadd.f32 %v3166, 0.5
    %v3168 = vmul.f32 %v3162, %v3001
    %v3169 = vmul.f32 %v3158, %v3163
    %v3170 = vadd.f32 %v3168, %v3169
    %v3171 = vtanh.pop %v3170
    %v3172 = vmul.f32 %v3167, %v3171
    %3173 = vst [vmem:[%s1392] sm:$0xff] %v3172
    %v3174 = vld [vmem:[%s1394] sm:$0xff]
    %v3175 = vld [vmem:[%s1394 + $0x8] sm:$0xff]
    %v3176 = vld [vmem:[%s1394 + $0x10] sm:$0xff]
    %v3177 = vld [vmem:[%s1394 + $0x18] sm:$0xff]
    %3178 = vmatprep.subr.mxu0 %v1974
    %3179 = vmatpush1.msra.mxu0 %v1973
    %3180 = vmatprep.subr.mxu0 %v1978
    %3181 = vmatpush1.msra.mxu0 %v1977
    %3182 = vmatprep.subr.mxu0 %v1982
    %3183 = vmatpush1.msra.mxu0 %v1981
    %3184 = vmatprep.subr.mxu0 %v1986
    %3185 = vmatpush1.msra.mxu0 %v1985
    %3186 = vmatprep.subr.mxu0 %v1990
    %3187 = vmatpush1.msra.mxu0 %v1989
    %3188 = vmatprep.subr.mxu0 %v1994
    %3189 = vmatpush1.msra.mxu0 %v1993
    %3190 = vmatprep.subr.mxu0 %v1998
    %3191 = vmatpush1.msra.mxu0 %v1997
    %3192 = vmatprep.subr.mxu0 %v2002
    %3193 = vmatpush1.msra.mxu0 %v2001
    %3194 = vmatprep.subr.mxu0 %v2006
    %3195 = vmatpush1.msra.mxu0 %v2005
    %3196 = vmatprep.subr.mxu0 %v2010
    %3197 = vmatpush1.msra.mxu0 %v2009
    %3198 = vmatprep.subr.mxu0 %v2014
    %3199 = vmatpush1.msra.mxu0 %v2013
    %3200 = vmatprep.subr.mxu0 %v2018
    %3201 = vmatpush1.msra.mxu0 %v2017
    %3202 = vmatprep.subr.mxu0 %v2022
    %3203 = vmatpush1.msra.mxu0 %v2021
    %3204 = vmatprep.subr.mxu0 %v2026
    %3205 = vmatpush1.msra.mxu0 %v2025
    %3206 = vmatprep.subr.mxu0 %v2030
    %3207 = vmatpush1.msra.mxu0 %v2029
    %3208 = vmatprep.subr.mxu0 %v2034
    %3209 = vmatpush1.msra.mxu0 %v2033
    %3210 = vmatprep.subr.mxu0 0.0
    %3211 = vmatpush1.msra.mxu0 0.0
    %3212 = vmatprep.subr.mxu0 0.0
    %3213 = vmatpush1.msra.mxu0 0.0
    %3214 = vmatprep.subr.mxu0 0.0
    %3215 = vmatpush1.msra.mxu0 0.0
    %3216 = vmatprep.subr.mxu0 0.0
    %3217 = vmatpush1.msra.mxu0 0.0
    %3218 = vmatprep.subr.mxu0 0.0
    %3219 = vmatpush1.msra.mxu0 0.0
    %3220 = vmatprep.subr.mxu0 0.0
    %3221 = vmatpush1.msra.mxu0 0.0
    %3222 = vmatprep.subr.mxu0 0.0
    %3223 = vmatpush1.msra.mxu0 0.0
    %3224 = vmatprep.subr.mxu0 0.0
    %3225 = vmatpush1.msra.mxu0 0.0
    %3226 = vmatprep.subr.mxu0 0.0
    %3227 = vmatpush1.msra.mxu0 0.0
    %3228 = vmatprep.subr.mxu0 0.0
    %3229 = vmatpush1.msra.mxu0 0.0
    %3230 = vmatprep.subr.mxu0 0.0
    %3231 = vmatpush1.msra.mxu0 0.0
    %3232 = vmatprep.subr.mxu0 0.0
    %3233 = vmatpush1.msra.mxu0 0.0
    %3234 = vmatprep.subr.mxu0 0.0
    %3235 = vmatpush1.msra.mxu0 0.0
    %3236 = vmatprep.subr.mxu0 0.0
    %3237 = vmatpush1.msra.mxu0 0.0
    %3238 = vmatprep.subr.mxu0 0.0
    %3239 = vmatpush1.msra.mxu0 0.0
    %3240 = vmatprep.subr.mxu0 0.0
    %3241 = vmatpush1.msra.mxu0 0.0
    %3242 = vmatprep.mubr.f32.mxu0 0.0
    %3243 = vmatmul.mubr.f32.gmra.mrb[0].mxu0 %v3172
    %v3244 = vpop.f32.mrb[0].mxu0
    %v3245 = vadd.f32 0.0, %v3244
    %v3246 = vpop.f32.mrb[0].mxu0
    %v3247 = vadd.f32 0.0, %v3246
    %3248 = vdwg.mxu0
    %3249 = vmatprep.subr.mxu0 %v1976
    %3250 = vmatpush1.msra.mxu0 %v1975
    %3251 = vmatprep.subr.mxu0 %v1980
    %3252 = vmatpush1.msra.mxu0 %v1979
    %3253 = vmatprep.subr.mxu0 %v1984
    %3254 = vmatpush1.msra.mxu0 %v1983
    %3255 = vmatprep.subr.mxu0 %v1988
    %3256 = vmatpush1.msra.mxu0 %v1987
    %3257 = vmatprep.subr.mxu0 %v1992
    %3258 = vmatpush1.msra.mxu0 %v1991
    %3259 = vmatprep.subr.mxu0 %v1996
    %3260 = vmatpush1.msra.mxu0 %v1995
    %3261 = vmatprep.subr.mxu0 %v2000
    %3262 = vmatpush1.msra.mxu0 %v1999
    %3263 = vmatprep.subr.mxu0 %v2004
    %3264 = vmatpush1.msra.mxu0 %v2003
    %3265 = vmatprep.subr.mxu0 %v2008
    %3266 = vmatpush1.msra.mxu0 %v2007
    %3267 = vmatprep.subr.mxu0 %v2012
    %3268 = vmatpush1.msra.mxu0 %v2011
    %3269 = vmatprep.subr.mxu0 %v2016
    %3270 = vmatpush1.msra.mxu0 %v2015
    %3271 = vmatprep.subr.mxu0 %v2020
    %3272 = vmatpush1.msra.mxu0 %v2019
    %3273 = vmatprep.subr.mxu0 %v2024
    %3274 = vmatpush1.msra.mxu0 %v2023
    %3275 = vmatprep.subr.mxu0 %v2028
    %3276 = vmatpush1.msra.mxu0 %v2027
    %3277 = vmatprep.subr.mxu0 %v2032
    %3278 = vmatpush1.msra.mxu0 %v2031
    %3279 = vmatprep.subr.mxu0 %v2036
    %3280 = vmatpush1.msra.mxu0 %v2035
    %3281 = vmatprep.subr.mxu0 0.0
    %3282 = vmatpush1.msra.mxu0 0.0
    %3283 = vmatprep.subr.mxu0 0.0
    %3284 = vmatpush1.msra.mxu0 0.0
    %3285 = vmatprep.subr.mxu0 0.0
    %3286 = vmatpush1.msra.mxu0 0.0
    %3287 = vmatprep.subr.mxu0 0.0
    %3288 = vmatpush1.msra.mxu0 0.0
    %3289 = vmatprep.subr.mxu0 0.0
    %3290 = vmatpush1.msra.mxu0 0.0
    %3291 = vmatprep.subr.mxu0 0.0
    %3292 = vmatpush1.msra.mxu0 0.0
    %3293 = vmatprep.subr.mxu0 0.0
    %3294 = vmatpush1.msra.mxu0 0.0
    %3295 = vmatprep.subr.mxu0 0.0
    %3296 = vmatpush1.msra.mxu0 0.0
    %3297 = vmatprep.subr.mxu0 0.0
    %3298 = vmatpush1.msra.mxu0 0.0
    %3299 = vmatprep.subr.mxu0 0.0
    %3300 = vmatpush1.msra.mxu0 0.0
    %3301 = vmatprep.subr.mxu0 0.0
    %3302 = vmatpush1.msra.mxu0 0.0
    %3303 = vmatprep.subr.mxu0 0.0
    %3304 = vmatpush1.msra.mxu0 0.0
    %3305 = vmatprep.subr.mxu0 0.0
    %3306 = vmatpush1.msra.mxu0 0.0
    %3307 = vmatprep.subr.mxu0 0.0
    %3308 = vmatpush1.msra.mxu0 0.0
    %3309 = vmatprep.subr.mxu0 0.0
    %3310 = vmatpush1.msra.mxu0 0.0
    %3311 = vmatprep.subr.mxu0 0.0
    %3312 = vmatpush1.msra.mxu0 0.0
    %3313 = vmatprep.mubr.f32.mxu0 0.0
    %3314 = vmatmul.mubr.f32.gmra.mrb[0].mxu0 %v3172
    %v3315 = vpop.f32.mrb[0].mxu0
    %v3316 = vadd.f32 0.0, %v3315
    %v3317 = vpop.f32.mrb[0].mxu0
    %v3318 = vadd.f32 0.0, %v3317
    %3319 = vdwg.mxu0
    %v3320 = vadd.f32 %v3174, %v3245
    %v3321 = vadd.f32 %v3175, %v3247
    %v3322 = vadd.f32 %v3176, %v3316
    %v3323 = vadd.f32 %v3177, %v3318
    %v3324 = vmul.f32 %v3320, 0.5
    %v3325 = vtanh.pop %v3324
    %v3326 = vmul.f32 %v3325, 0.5
    %v3327 = vadd.f32 %v3326, 0.5
    %v3328 = vmul.f32 %v3321, 0.5
    %v3329 = vtanh.pop %v3328
    %v3330 = vmul.f32 %v3329, 0.5
    %v3331 = vadd.f32 %v3330, 0.5
    %v3332 = vtanh.pop %v3322
    %v3333 = vmul.f32 %v3323, 0.5
    %v3334 = vtanh.pop %v3333
    %v3335 = vmul.f32 %v3334, 0.5
    %v3336 = vadd.f32 %v3335, 0.5
    %v3337 = vmul.f32 %v3331, %v3170
    %v3338 = vmul.f32 %v3327, %v3332
    %v3339 = vadd.f32 %v3337, %v3338
    %v3340 = vtanh.pop %v3339
    %v3341 = vmul.f32 %v3336, %v3340
    %3342 = vst [vmem:[%s1563] sm:$0xff] %v3341
    %v3343 = vld [vmem:[%s1565] sm:$0xff]
    %v3344 = vld [vmem:[%s1565 + $0x8] sm:$0xff]
    %v3345 = vld [vmem:[%s1565 + $0x10] sm:$0xff]
    %v3346 = vld [vmem:[%s1565 + $0x18] sm:$0xff]
    %3347 = vmatprep.subr.mxu0 %v1974
    %3348 = vmatpush1.msra.mxu0 %v1973
    %3349 = vmatprep.subr.mxu0 %v1978
    %3350 = vmatpush1.msra.mxu0 %v1977
    %3351 = vmatprep.subr.mxu0 %v1982
    %3352 = vmatpush1.msra.mxu0 %v1981
    %3353 = vmatprep.subr.mxu0 %v1986
    %3354 = vmatpush1.msra.mxu0 %v1985
    %3355 = vmatprep.subr.mxu0 %v1990
    %3356 = vmatpush1.msra.mxu0 %v1989
    %3357 = vmatprep.subr.mxu0 %v1994
    %3358 = vmatpush1.msra.mxu0 %v1993
    %3359 = vmatprep.subr.mxu0 %v1998
    %3360 = vmatpush1.msra.mxu0 %v1997
    %3361 = vmatprep.subr.mxu0 %v2002
    %3362 = vmatpush1.msra.mxu0 %v2001
    %3363 = vmatprep.subr.mxu0 %v2006
    %3364 = vmatpush1.msra.mxu0 %v2005
    %3365 = vmatprep.subr.mxu0 %v2010
    %3366 = vmatpush1.msra.mxu0 %v2009
    %3367 = vmatprep.subr.mxu0 %v2014
    %3368 = vmatpush1.msra.mxu0 %v2013
    %3369 = vmatprep.subr.mxu0 %v2018
    %3370 = vmatpush1.msra.mxu0 %v2017
    %3371 = vmatprep.subr.mxu0 %v2022
    %3372 = vmatpush1.msra.mxu0 %v2021
    %3373 = vmatprep.subr.mxu0 %v2026
    %3374 = vmatpush1.msra.mxu0 %v2025
    %3375 = vmatprep.subr.mxu0 %v2030
    %3376 = vmatpush1.msra.mxu0 %v2029
    %3377 = vmatprep.subr.mxu0 %v2034
    %3378 = vmatpush1.msra.mxu0 %v2033
    %3379 = vmatprep.subr.mxu0 0.0
    %3380 = vmatpush1.msra.mxu0 0.0
    %3381 = vmatprep.subr.mxu0 0.0
    %3382 = vmatpush1.msra.mxu0 0.0
    %3383 = vmatprep.subr.mxu0 0.0
    %3384 = vmatpush1.msra.mxu0 0.0
    %3385 = vmatprep.subr.mxu0 0.0
    %3386 = vmatpush1.msra.mxu0 0.0
    %3387 = vmatprep.subr.mxu0 0.0
    %3388 = vmatpush1.msra.mxu0 0.0
    %3389 = vmatprep.subr.mxu0 0.0
    %3390 = vmatpush1.msra.mxu0 0.0
    %3391 = vmatprep.subr.mxu0 0.0
    %3392 = vmatpush1.msra.mxu0 0.0
    %3393 = vmatprep.subr.mxu0 0.0
    %3394 = vmatpush1.msra.mxu0 0.0
    %3395 = vmatprep.subr.mxu0 0.0
    %3396 = vmatpush1.msra.mxu0 0.0
    %3397 = vmatprep.subr.mxu0 0.0
    %3398 = vmatpush1.msra.mxu0 0.0
    %3399 = vmatprep.subr.mxu0 0.0
    %3400 = vmatpush1.msra.mxu0 0.0
    %3401 = vmatprep.subr.mxu0 0.0
    %3402 = vmatpush1.msra.mxu0 0.0
    %3403 = vmatprep.subr.mxu0 0.0
    %3404 = vmatpush1.msra.mxu0 0.0
    %3405 = vmatprep.subr.mxu0 0.0
    %3406 = vmatpush1.msra.mxu0 0.0
    %3407 = vmatprep.subr.mxu0 0.0
    %3408 = vmatpush1.msra.mxu0 0.0
    %3409 = vmatprep.subr.mxu0 0.0
    %3410 = vmatpush1.msra.mxu0 0.0
    %3411 = vmatprep.mubr.f32.mxu0 0.0
    %3412 = vmatmul.mubr.f32.gmra.mrb[0].mxu0 %v3341
    %v3413 = vpop.f32.mrb[0].mxu0
    %v3414 = vadd.f32 0.0, %v3413
    %v3415 = vpop.f32.mrb[0].mxu0
    %v3416 = vadd.f32 0.0, %v3415
    %3417 = vdwg.mxu0
    %3418 = vmatprep.subr.mxu0 %v1976
    %3419 = vmatpush1.msra.mxu0 %v1975
    %3420 = vmatprep.subr.mxu0 %v1980
    %3421 = vmatpush1.msra.mxu0 %v1979
    %3422 = vmatprep.subr.mxu0 %v1984
    %3423 = vmatpush1.msra.mxu0 %v1983
    %3424 = vmatprep.subr.mxu0 %v1988
    %3425 = vmatpush1.msra.mxu0 %v1987
    %3426 = vmatprep.subr.mxu0 %v1992
    %3427 = vmatpush1.msra.mxu0 %v1991
    %3428 = vmatprep.subr.mxu0 %v1996
    %3429 = vmatpush1.msra.mxu0 %v1995
    %3430 = vmatprep.subr.mxu0 %v2000
    %3431 = vmatpush1.msra.mxu0 %v1999
    %3432 = vmatprep.subr.mxu0 %v2004
    %3433 = vmatpush1.msra.mxu0 %v2003
    %3434 = vmatprep.subr.mxu0 %v2008
    %3435 = vmatpush1.msra.mxu0 %v2007
    %3436 = vmatprep.subr.mxu0 %v2012
    %3437 = vmatpush1.msra.mxu0 %v2011
    %3438 = vmatprep.subr.mxu0 %v2016
    %3439 = vmatpush1.msra.mxu0 %v2015
    %3440 = vmatprep.subr.mxu0 %v2020
    %3441 = vmatpush1.msra.mxu0 %v2019
    %3442 = vmatprep.subr.mxu0 %v2024
    %3443 = vmatpush1.msra.mxu0 %v2023
    %3444 = vmatprep.subr.mxu0 %v2028
    %3445 = vmatpush1.msra.mxu0 %v2027
    %3446 = vmatprep.subr.mxu0 %v2032
    %3447 = vmatpush1.msra.mxu0 %v2031
    %3448 = vmatprep.subr.mxu0 %v2036
    %3449 = vmatpush1.msra.mxu0 %v2035
    %3450 = vmatprep.subr.mxu0 0.0
    %3451 = vmatpush1.msra.mxu0 0.0
    %3452 = vmatprep.subr.mxu0 0.0
    %3453 = vmatpush1.msra.mxu0 0.0
    %3454 = vmatprep.subr.mxu0 0.0
    %3455 = vmatpush1.msra.mxu0 0.0
    %3456 = vmatprep.subr.mxu0 0.0
    %3457 = vmatpush1.msra.mxu0 0.0
    %3458 = vmatprep.subr.mxu0 0.0
    %3459 = vmatpush1.msra.mxu0 0.0
    %3460 = vmatprep.subr.mxu0 0.0
    %3461 = vmatpush1.msra.mxu0 0.0
    %3462 = vmatprep.subr.mxu0 0.0
    %3463 = vmatpush1.msra.mxu0 0.0
    %3464 = vmatprep.subr.mxu0 0.0
    %3465 = vmatpush1.msra.mxu0 0.0
    %3466 = vmatprep.subr.mxu0 0.0
    %3467 = vmatpush1.msra.mxu0 0.0
    %3468 = vmatprep.subr.mxu0 0.0
    %3469 = vmatpush1.msra.mxu0 0.0
    %3470 = vmatprep.subr.mxu0 0.0
    %3471 = vmatpush1.msra.mxu0 0.0
    %3472 = vmatprep.subr.mxu0 0.0
    %3473 = vmatpush1.msra.mxu0 0.0
    %3474 = vmatprep.subr.mxu0 0.0
    %3475 = vmatpush1.msra.mxu0 0.0
    %3476 = vmatprep.subr.mxu0 0.0
    %3477 = vmatpush1.msra.mxu0 0.0
    %3478 = vmatprep.subr.mxu0 0.0
    %3479 = vmatpush1.msra.mxu0 0.0
    %3480 = vmatprep.subr.mxu0 0.0
    %3481 = vmatpush1.msra.mxu0 0.0
    %3482 = vmatprep.mubr.f32.mxu0 0.0
    %3483 = vmatmul.mubr.f32.gmra.mrb[0].mxu0 %v3341
    %v3484 = vpop.f32.mrb[0].mxu0
    %v3485 = vadd.f32 0.0, %v3484
    %v3486 = vpop.f32.mrb[0].mxu0
    %v3487 = vadd.f32 0.0, %v3486
    %3488 = vdwg.mxu0
    %v3489 = vadd.f32 %v3343, %v3414
    %v3490 = vadd.f32 %v3344, %v3416
    %v3491 = vadd.f32 %v3345, %v3485
    %v3492 = vadd.f32 %v3346, %v3487
    %v3493 = vmul.f32 %v3489, 0.5
    %v3494 = vtanh.pop %v3493
    %v3495 = vmul.f32 %v3494, 0.5
    %v3496 = vadd.f32 %v3495, 0.5
    %v3497 = vmul.f32 %v3490, 0.5
    %v3498 = vtanh.pop %v3497
    %v3499 = vmul.f32 %v3498, 0.5
    %v3500 = vadd.f32 %v3499, 0.5
    %v3501 = vtanh.pop %v3491
    %v3502 = vmul.f32 %v3492, 0.5
    %v3503 = vtanh.pop %v3502
    %v3504 = vmul.f32 %v3503, 0.5
    %v3505 = vadd.f32 %v3504, 0.5
    %v3506 = vmul.f32 %v3500, %v3339
    %v3507 = vmul.f32 %v3496, %v3501
    %v3508 = vadd.f32 %v3506, %v3507
    %v3509 = vtanh.pop %v3508
    %v3510 = vmul.f32 %v3505, %v3509
    %3511 = vst [vmem:[%s1734] sm:$0xff] %v3510
    %v3512 = vld [vmem:[%s1736] sm:$0xff]
    %v3513 = vld [vmem:[%s1736 + $0x8] sm:$0xff]
    %v3514 = vld [vmem:[%s1736 + $0x10] sm:$0xff]
    %v3515 = vld [vmem:[%s1736 + $0x18] sm:$0xff]
    %3516 = vmatprep.subr.mxu0 %v1974
    %3517 = vmatpush1.msra.mxu0 %v1973
    %3518 = vmatprep.subr.mxu0 %v1978
    %3519 = vmatpush1.msra.mxu0 %v1977
    %3520 = vmatprep.subr.mxu0 %v1982
    %3521 = vmatpush1.msra.mxu0 %v1981
    %3522 = vmatprep.subr.mxu0 %v1986
    %3523 = vmatpush1.msra.mxu0 %v1985
    %3524 = vmatprep.subr.mxu0 %v1990
    %3525 = vmatpush1.msra.mxu0 %v1989
    %3526 = vmatprep.subr.mxu0 %v1994
    %3527 = vmatpush1.msra.mxu0 %v1993
    %3528 = vmatprep.subr.mxu0 %v1998
    %3529 = vmatpush1.msra.mxu0 %v1997
    %3530 = vmatprep.subr.mxu0 %v2002
    %3531 = vmatpush1.msra.mxu0 %v2001
    %3532 = vmatprep.subr.mxu0 %v2006
    %3533 = vmatpush1.msra.mxu0 %v2005
    %3534 = vmatprep.subr.mxu0 %v2010
    %3535 = vmatpush1.msra.mxu0 %v2009
    %3536 = vmatprep.subr.mxu0 %v2014
    %3537 = vmatpush1.msra.mxu0 %v2013
    %3538 = vmatprep.subr.mxu0 %v2018
    %3539 = vmatpush1.msra.mxu0 %v2017
    %3540 = vmatprep.subr.mxu0 %v2022
    %3541 = vmatpush1.msra.mxu0 %v2021
    %3542 = vmatprep.subr.mxu0 %v2026
    %3543 = vmatpush1.msra.mxu0 %v2025
    %3544 = vmatprep.subr.mxu0 %v2030
    %3545 = vmatpush1.msra.mxu0 %v2029
    %3546 = vmatprep.subr.mxu0 %v2034
    %3547 = vmatpush1.msra.mxu0 %v2033
    %3548 = vmatprep.subr.mxu0 0.0
    %3549 = vmatpush1.msra.mxu0 0.0
    %3550 = vmatprep.subr.mxu0 0.0
    %3551 = vmatpush1.msra.mxu0 0.0
    %3552 = vmatprep.subr.mxu0 0.0
    %3553 = vmatpush1.msra.mxu0 0.0
    %3554 = vmatprep.subr.mxu0 0.0
    %3555 = vmatpush1.msra.mxu0 0.0
    %3556 = vmatprep.subr.mxu0 0.0
    %3557 = vmatpush1.msra.mxu0 0.0
    %3558 = vmatprep.subr.mxu0 0.0
    %3559 = vmatpush1.msra.mxu0 0.0
    %3560 = vmatprep.subr.mxu0 0.0
    %3561 = vmatpush1.msra.mxu0 0.0
    %3562 = vmatprep.subr.mxu0 0.0
    %3563 = vmatpush1.msra.mxu0 0.0
    %3564 = vmatprep.subr.mxu0 0.0
    %3565 = vmatpush1.msra.mxu0 0.0
    %3566 = vmatprep.subr.mxu0 0.0
    %3567 = vmatpush1.msra.mxu0 0.0
    %3568 = vmatprep.subr.mxu0 0.0
    %3569 = vmatpush1.msra.mxu0 0.0
    %3570 = vmatprep.subr.mxu0 0.0
    %3571 = vmatpush1.msra.mxu0 0.0
    %3572 = vmatprep.subr.mxu0 0.0
    %3573 = vmatpush1.msra.mxu0 0.0
    %3574 = vmatprep.subr.mxu0 0.0
    %3575 = vmatpush1.msra.mxu0 0.0
    %3576 = vmatprep.subr.mxu0 0.0
    %3577 = vmatpush1.msra.mxu0 0.0
    %3578 = vmatprep.subr.mxu0 0.0
    %3579 = vmatpush1.msra.mxu0 0.0
    %3580 = vmatprep.mubr.f32.mxu0 0.0
    %3581 = vmatmul.mubr.f32.gmra.mrb[0].mxu0 %v3510
    %v3582 = vpop.f32.mrb[0].mxu0
    %v3583 = vadd.f32 0.0, %v3582
    %v3584 = vpop.f32.mrb[0].mxu0
    %v3585 = vadd.f32 0.0, %v3584
    %3586 = vdwg.mxu0
    %3587 = vmatprep.subr.mxu0 %v1976
    %3588 = vmatpush1.msra.mxu0 %v1975
    %3589 = vmatprep.subr.mxu0 %v1980
    %3590 = vmatpush1.msra.mxu0 %v1979
    %3591 = vmatprep.subr.mxu0 %v1984
    %3592 = vmatpush1.msra.mxu0 %v1983
    %3593 = vmatprep.subr.mxu0 %v1988
    %3594 = vmatpush1.msra.mxu0 %v1987
    %3595 = vmatprep.subr.mxu0 %v1992
    %3596 = vmatpush1.msra.mxu0 %v1991
    %3597 = vmatprep.subr.mxu0 %v1996
    %3598 = vmatpush1.msra.mxu0 %v1995
    %3599 = vmatprep.subr.mxu0 %v2000
    %3600 = vmatpush1.msra.mxu0 %v1999
    %3601 = vmatprep.subr.mxu0 %v2004
    %3602 = vmatpush1.msra.mxu0 %v2003
    %3603 = vmatprep.subr.mxu0 %v2008
    %3604 = vmatpush1.msra.mxu0 %v2007
    %3605 = vmatprep.subr.mxu0 %v2012
    %3606 = vmatpush1.msra.mxu0 %v2011
    %3607 = vmatprep.subr.mxu0 %v2016
    %3608 = vmatpush1.msra.mxu0 %v2015
    %3609 = vmatprep.subr.mxu0 %v2020
    %3610 = vmatpush1.msra.mxu0 %v2019
    %3611 = vmatprep.subr.mxu0 %v2024
    %3612 = vmatpush1.msra.mxu0 %v2023
    %3613 = vmatprep.subr.mxu0 %v2028
    %3614 = vmatpush1.msra.mxu0 %v2027
    %3615 = vmatprep.subr.mxu0 %v2032
    %3616 = vmatpush1.msra.mxu0 %v2031
    %3617 = vmatprep.subr.mxu0 %v2036
    %3618 = vmatpush1.msra.mxu0 %v2035
    %3619 = vmatprep.subr.mxu0 0.0
    %3620 = vmatpush1.msra.mxu0 0.0
    %3621 = vmatprep.subr.mxu0 0.0
    %3622 = vmatpush1.msra.mxu0 0.0
    %3623 = vmatprep.subr.mxu0 0.0
    %3624 = vmatpush1.msra.mxu0 0.0
    %3625 = vmatprep.subr.mxu0 0.0
    %3626 = vmatpush1.msra.mxu0 0.0
    %3627 = vmatprep.subr.mxu0 0.0
    %3628 = vmatpush1.msra.mxu0 0.0
    %3629 = vmatprep.subr.mxu0 0.0
    %3630 = vmatpush1.msra.mxu0 0.0
    %3631 = vmatprep.subr.mxu0 0.0
    %3632 = vmatpush1.msra.mxu0 0.0
    %3633 = vmatprep.subr.mxu0 0.0
    %3634 = vmatpush1.msra.mxu0 0.0
    %3635 = vmatprep.subr.mxu0 0.0
    %3636 = vmatpush1.msra.mxu0 0.0
    %3637 = vmatprep.subr.mxu0 0.0
    %3638 = vmatpush1.msra.mxu0 0.0
    %3639 = vmatprep.subr.mxu0 0.0
    %3640 = vmatpush1.msra.mxu0 0.0
    %3641 = vmatprep.subr.mxu0 0.0
    %3642 = vmatpush1.msra.mxu0 0.0
    %3643 = vmatprep.subr.mxu0 0.0
    %3644 = vmatpush1.msra.mxu0 0.0
    %3645 = vmatprep.subr.mxu0 0.0
    %3646 = vmatpush1.msra.mxu0 0.0
    %3647 = vmatprep.subr.mxu0 0.0
    %3648 = vmatpush1.msra.mxu0 0.0
    %3649 = vmatprep.subr.mxu0 0.0
    %3650 = vmatpush1.msra.mxu0 0.0
    %3651 = vmatprep.mubr.f32.mxu0 0.0
    %3652 = vmatmul.mubr.f32.gmra.mrb[0].mxu0 %v3510
    %v3653 = vpop.f32.mrb[0].mxu0
    %v3654 = vadd.f32 0.0, %v3653
    %v3655 = vpop.f32.mrb[0].mxu0
    %v3656 = vadd.f32 0.0, %v3655
    %3657 = vdwg.mxu0
    %v3658 = vadd.f32 %v3512, %v3583
    %v3659 = vadd.f32 %v3513, %v3585
    %v3660 = vadd.f32 %v3514, %v3654
    %v3661 = vadd.f32 %v3515, %v3656
    %v3662 = vmul.f32 %v3658, 0.5
    %v3663 = vtanh.pop %v3662
    %v3664 = vmul.f32 %v3663, 0.5
    %v3665 = vadd.f32 %v3664, 0.5
    %v3666 = vmul.f32 %v3659, 0.5
    %v3667 = vtanh.pop %v3666
    %v3668 = vmul.f32 %v3667, 0.5
    %v3669 = vadd.f32 %v3668, 0.5
    %v3670 = vtanh.pop %v3660
    %v3671 = vmul.f32 %v3661, 0.5
    %v3672 = vtanh.pop %v3671
    %v3673 = vmul.f32 %v3672, 0.5
    %v3674 = vadd.f32 %v3673, 0.5
    %v3675 = vmul.f32 %v3669, %v3508
    %v3676 = vmul.f32 %v3665, %v3670
    %v3677 = vadd.f32 %v3675, %v3676
    %v3678 = vtanh.pop %v3677
    %v3679 = vmul.f32 %v3674, %v3678
    %3680 = vst [vmem:[%s1905] sm:$0xff] %v3679
    %3681 = vst [vmem:[%s2325] sm:$0xff] %v3679
    %3682 = vst [vmem:[%s2327] sm:$0xff] %v3677
    %v3683 = vld [vmem:[#allocation15] sm:$0xff]
    %v3684 = vld [vmem:[#allocation15 + $0x8] sm:$0xff]
    %v3685 = vld [vmem:[#allocation15 + $0x10] sm:$0xff]
    %v3686 = vld [vmem:[#allocation15 + $0x18] sm:$0xff]
    %v3687 = vld [vmem:[#allocation15 + $0x20] sm:$0xff]
    %v3688 = vld [vmem:[#allocation15 + $0x28] sm:$0xff]
    %v3689 = vld [vmem:[#allocation15 + $0x30] sm:$0xff]
    %v3690 = vld [vmem:[#allocation15 + $0x38] sm:$0xff]
    %v3691 = vld [vmem:[#allocation15 + $0x40] sm:$0xff]
    %v3692 = vld [vmem:[#allocation15 + $0x48] sm:$0xff]
    %v3693 = vld [vmem:[#allocation15 + $0x50] sm:$0xff]
    %v3694 = vld [vmem:[#allocation15 + $0x58] sm:$0xff]
    %v3695 = vld [vmem:[#allocation15 + $0x60] sm:$0xff]
    %v3696 = vld [vmem:[#allocation15 + $0x68] sm:$0xff]
    %v3697 = vld [vmem:[#allocation15 + $0x70] sm:$0xff]
    %v3698 = vld [vmem:[#allocation15 + $0x78] sm:$0xff]
    %v3699 = vld [vmem:[%s8] sm:$0x1]
    %v3700 = vld [vmem:[#allocation4] sm:$0xff]
    %v3701 = vld [vmem:[#allocation4 + $0x8] sm:$0xff]
    %v3702 = vld [vmem:[#allocation4 + $0x10] sm:$0xff]
    %v3703 = vld [vmem:[#allocation4 + $0x18] sm:$0xff]
    %v3704 = vld [vmem:[#allocation4 + $0x20] sm:$0xff]
    %v3705 = vld [vmem:[#allocation4 + $0x28] sm:$0xff]
    %v3706 = vld [vmem:[#allocation4 + $0x30] sm:$0xff]
    %v3707 = vld [vmem:[#allocation4 + $0x38] sm:$0xff]
    %v3709 = vlaneseq
    %v3710 = vshrl.u32 %v3709, 7
    %v3711 = vsub.s32 0, %v3710
    %v3712 = vrot.slane %v3699, %v3711
    %3714 = vmatprep.subr.mxu0 0.0
    %3715 = vmatpush1.msra.mxu0 %v3683
    %3716 = vmatprep.subr.mxu0 0.0
    %3717 = vmatpush1.msra.mxu0 %v3684
    %3718 = vmatprep.subr.mxu0 0.0
    %3719 = vmatpush1.msra.mxu0 %v3685
    %3720 = vmatprep.subr.mxu0 0.0
    %3721 = vmatpush1.msra.mxu0 %v3686
    %3722 = vmatprep.subr.mxu0 0.0
    %3723 = vmatpush1.msra.mxu0 %v3687
    %3724 = vmatprep.subr.mxu0 0.0
    %3725 = vmatpush1.msra.mxu0 %v3688
    %3726 = vmatprep.subr.mxu0 0.0
    %3727 = vmatpush1.msra.mxu0 %v3689
    %3728 = vmatprep.subr.mxu0 0.0
    %3729 = vmatpush1.msra.mxu0 %v3690
    %3730 = vmatprep.subr.mxu0 0.0
    %3731 = vmatpush1.msra.mxu0 %v3691
    %3732 = vmatprep.subr.mxu0 0.0
    %3733 = vmatpush1.msra.mxu0 %v3692
    %3734 = vmatprep.subr.mxu0 0.0
    %3735 = vmatpush1.msra.mxu0 %v3693
    %3736 = vmatprep.subr.mxu0 0.0
    %3737 = vmatpush1.msra.mxu0 %v3694
    %3738 = vmatprep.subr.mxu0 0.0
    %3739 = vmatpush1.msra.mxu0 %v3695
    %3740 = vmatprep.subr.mxu0 0.0
    %3741 = vmatpush1.msra.mxu0 %v3696
    %3742 = vmatprep.subr.mxu0 0.0
    %3743 = vmatpush1.msra.mxu0 %v3697
    %3744 = vmatprep.subr.mxu0 0.0
    %3745 = vmatpush1.msra.mxu0 %v3698
    %3746 = vmatprep.subr.mxu0 0.0
    %3747 = vmatpush1.msra.mxu0 0.0
    %3748 = vmatprep.subr.mxu0 0.0
    %3749 = vmatpush1.msra.mxu0 0.0
    %3750 = vmatprep.subr.mxu0 0.0
    %3751 = vmatpush1.msra.mxu0 0.0
    %3752 = vmatprep.subr.mxu0 0.0
    %3753 = vmatpush1.msra.mxu0 0.0
    %3754 = vmatprep.subr.mxu0 0.0
    %3755 = vmatpush1.msra.mxu0 0.0
    %3756 = vmatprep.subr.mxu0 0.0
    %3757 = vmatpush1.msra.mxu0 0.0
    %3758 = vmatprep.subr.mxu0 0.0
    %3759 = vmatpush1.msra.mxu0 0.0
    %3760 = vmatprep.subr.mxu0 0.0
    %3761 = vmatpush1.msra.mxu0 0.0
    %3762 = vmatprep.subr.mxu0 0.0
    %3763 = vmatpush1.msra.mxu0 0.0
    %3764 = vmatprep.subr.mxu0 0.0
    %3765 = vmatpush1.msra.mxu0 0.0
    %3766 = vmatprep.subr.mxu0 0.0
    %3767 = vmatpush1.msra.mxu0 0.0
    %3768 = vmatprep.subr.mxu0 0.0
    %3769 = vmatpush1.msra.mxu0 0.0
    %3770 = vmatprep.subr.mxu0 0.0
    %3771 = vmatpush1.msra.mxu0 0.0
    %3772 = vmatprep.subr.mxu0 0.0
    %3773 = vmatpush1.msra.mxu0 0.0
    %3774 = vmatprep.subr.mxu0 0.0
    %3775 = vmatpush1.msra.mxu0 0.0
    %3776 = vmatprep.subr.mxu0 0.0
    %3777 = vmatpush1.msra.mxu0 0.0
    %3778 = vmatprep.mubr.f32.mxu0 0.0
    %3779 = vmatmul.mubr.f32.gmra.mrb[0].mxu0 %v3700
    %v3780 = vpop.f32.mrb[0].mxu0
    %v3781 = vadd.f32 %v3712, %v3780
    %v3782 = vpop.f32.mrb[0].mxu0
    %3783 = vmatprep.mubr.f32.mxu0 0.0
    %3784 = vmatmul.mubr.f32.gmra.mrb[0].mxu0 %v3701
    %v3785 = vpop.f32.mrb[0].mxu0
    %v3786 = vadd.f32 %v3712, %v3785
    %v3787 = vpop.f32.mrb[0].mxu0
    %3788 = vmatprep.mubr.f32.mxu0 0.0
    %3789 = vmatmul.mubr.f32.gmra.mrb[0].mxu0 %v3702
    %v3790 = vpop.f32.mrb[0].mxu0
    %v3791 = vadd.f32 %v3712, %v3790
    %v3792 = vpop.f32.mrb[0].mxu0
    %3793 = vmatprep.mubr.f32.mxu0 0.0
    %3794 = vmatmul.mubr.f32.gmra.mrb[0].mxu0 %v3703
    %v3795 = vpop.f32.mrb[0].mxu0
    %v3796 = vadd.f32 %v3712, %v3795
    %v3797 = vpop.f32.mrb[0].mxu0
    %3798 = vmatprep.mubr.f32.mxu0 0.0
    %3799 = vmatmul.mubr.f32.gmra.mrb[0].mxu0 %v3704
    %v3800 = vpop.f32.mrb[0].mxu0
    %v3801 = vadd.f32 %v3712, %v3800
    %v3802 = vpop.f32.mrb[0].mxu0
    %3803 = vmatprep.mubr.f32.mxu0 0.0
    %3804 = vmatmul.mubr.f32.gmra.mrb[0].mxu0 %v3705
    %v3805 = vpop.f32.mrb[0].mxu0
    %v3806 = vadd.f32 %v3712, %v3805
    %v3807 = vpop.f32.mrb[0].mxu0
    %3808 = vmatprep.mubr.f32.mxu0 0.0
    %3809 = vmatmul.mubr.f32.gmra.mrb[0].mxu0 %v3706
    %v3810 = vpop.f32.mrb[0].mxu0
    %v3811 = vadd.f32 %v3712, %v3810
    %v3812 = vpop.f32.mrb[0].mxu0
    %3813 = vmatprep.mubr.f32.mxu0 0.0
    %3814 = vmatmul.mubr.f32.gmra.mrb[0].mxu0 %v3707
    %v3815 = vpop.f32.mrb[0].mxu0
    %v3816 = vadd.f32 %v3712, %v3815
    %v3817 = vpop.f32.mrb[0].mxu0
    %3818 = vdwg.mxu0
    %3819 = vst [vmem:[#allocation17] sm:$0xff] %v3781
    %3820 = vst [vmem:[#allocation17 + $0x8] sm:$0xff] %v3786
    %3821 = vst [vmem:[#allocation17 + $0x10] sm:$0xff] %v3791
    %3822 = vst [vmem:[#allocation17 + $0x18] sm:$0xff] %v3796
    %3823 = vst [vmem:[#allocation17 + $0x20] sm:$0xff] %v3801
    %3824 = vst [vmem:[#allocation17 + $0x28] sm:$0xff] %v3806
    %3825 = vst [vmem:[#allocation17 + $0x30] sm:$0xff] %v3811
    %3826 = vst [vmem:[#allocation17 + $0x38] sm:$0xff] %v3816
    // Predicated region
    $region66: #{tpu_custom_call.1} parent=1 // pred_check
      _
    $region67: #{tpu_custom_call.1} parent=1 // pred_check_branch
      %3828 = sbr.rel (0) target = $region69
    $region68: #{tpu_custom_call.1} parent=1 // pred_region
      %s3830 = ssub.s32 1024, 1024
      %3831 = vsyncadd [#allocation8], %s3830
      %s3832 = sshll.u32 [#allocation17], 4
      %s3833 = int_to_ptr.vmem [resolvable:$true] %s3832
      %3838 = dma.vmem_to_hbm [thread:$0]  %s3833, 1024, %s9, [#allocation8], 128, 128, 8
    $region69: #{tpu_custom_call.1} parent=1 // pred_fallthru
      _
    // Predicated region
    $region70: #{tpu_custom_call.1} parent=1 // pred_check
      _
    $region71: #{tpu_custom_call.1} parent=1 // pred_check_branch
      %3840 = sbr.rel (0) target = $region73
    $region72: #{tpu_custom_call.1} parent=1 // pred_region
      %3841 = dma.done [#allocation8], 1024
    $region73: #{tpu_custom_call.1} parent=1 // pred_fallthru
      _
    %3842 = vsyncpa [#allocation7], 1
    %3843 = vsyncpa [#allocation10], 1
    %3844 = vsyncpa [#allocation13], 1
    %3845 = vsyncpa [#allocation16], 1
    %3846 = vsyncpa [#allocation8], 1

</llo_original>
